<compile_context>
chip_gen: v6e
topology: v6e:2x2x1
jax: 0.10.0
libtpu: 0.0.40
codegen_flags: <defaults>
</compile_context>

<pallas_src>
import numpy as np
import jax
import jax.numpy as jnp
from jax.experimental import pallas as pl
from jax.experimental.pallas import tpu as pltpu

# ----------------------------- model sizes ---------------------------------
H = 32              # hidden_size
N_ORI_POI = 20 + 1  # origin POIs (+1 pad)
N_DST_POI = 24 + 1  # destination POIs (+1 pad) == NTM bow size
N_USER = 8
TOPIC = 8           # opt.dst_topic
SAMPLE = 4          # sample_size
V_PAD = 128         # lane-dense padding of the destination-POI axis
PACK_LANES = 128    # packed parameter/data buffer lane width
STDV = 1.0 / np.sqrt(H)


def _ceil8(x):
    return ((x + 7) // 8) * 8


# ----------------------------- parameters ----------------------------------
def _uinit(key, shape):
    return jax.random.uniform(key, shape, jnp.float32, -STDV, STDV)


def init_params(key):
    keys = iter(jax.random.split(key, 48))
    p = {}
    p['ori_poi_emb'] = _uinit(next(keys), (N_ORI_POI, H))
    p['dst_poi_emb'] = _uinit(next(keys), (N_DST_POI, H))
    p['dst_user_emb'] = _uinit(next(keys), (N_USER, H))
    # GGNN
    p['ggnn_w_ih'] = _uinit(next(keys), (2 * H, 3 * H))
    p['ggnn_w_hh'] = _uinit(next(keys), (H, 3 * H))
    p['ggnn_b_ih'] = _uinit(next(keys), (1, 3 * H))
    p['ggnn_b_hh'] = _uinit(next(keys), (1, 3 * H))
    p['ggnn_b_iah'] = _uinit(next(keys), (1, H))
    p['ggnn_b_oah'] = _uinit(next(keys), (1, H))
    p['edge_in_w'] = _uinit(next(keys), (H, H))
    p['edge_in_b'] = _uinit(next(keys), (1, H))
    p['edge_out_w'] = _uinit(next(keys), (H, H))
    p['edge_out_b'] = _uinit(next(keys), (1, H))
    # mlp (Linear + Tanh)
    p['mlp_w'] = _uinit(next(keys), (H, H))
    p['mlp_b'] = _uinit(next(keys), (1, H))
    # GCN
    p['gcn_w'] = _uinit(next(keys), (H, H))
    p['gcn_b'] = _uinit(next(keys), (1, H))
    # NTM
    p['ntm_topic'] = _uinit(next(keys), (TOPIC, H))
    p['ntm_word'] = _uinit(next(keys), (N_DST_POI, H))
    p['ntm_enc1_w'] = _uinit(next(keys), (N_DST_POI, H))
    p['ntm_enc1_b'] = _uinit(next(keys), (1, H))
    p['ntm_enc2_w'] = _uinit(next(keys), (H, H))
    p['ntm_enc2_b'] = _uinit(next(keys), (1, H))
    p['ntm_mean_w'] = _uinit(next(keys), (H, TOPIC))
    p['ntm_mean_b'] = _uinit(next(keys), (1, TOPIC))
    p['ntm_logsig_w'] = _uinit(next(keys), (H, TOPIC))
    p['ntm_logsig_b'] = _uinit(next(keys), (1, TOPIC))
    p['ntm_gsm_w'] = _uinit(next(keys), (TOPIC, TOPIC))
    p['ntm_gsm_b'] = _uinit(next(keys), (1, TOPIC))
    # attention + scoring
    p['linear_q_w'] = _uinit(next(keys), (H, H))
    p['linear_q_b'] = _uinit(next(keys), (1, H))
    p['linear_attn_w'] = _uinit(next(keys), (H, 1))
    p['linear_attn_b'] = _uinit(next(keys), (1, 1))
    p['linear_dst_w1'] = _uinit(next(keys), (H, H))
    p['fusion_w'] = _uinit(next(keys), (2 * H, H))
    p['fusion_b'] = _uinit(next(keys), (1, H))
    return p


# -------------------- host-side packing (one buffer per kind) ---------------
def pack_arrays(entries):
    """Pack a dict of 2D float arrays into one (R, 128) buffer.

    Each entry is padded to a multiple of 8 rows (sublane aligned) and 128 lanes,
    so static in-kernel slices are aligned sub-views.  Returns (buffer, offsets)
    where offsets[name] = (row_start, n_rows, n_cols).
    """
    offs, blocks, row = {}, [], 0
    for name, a in entries.items():
        a = np.asarray(a, np.float32)
        if a.ndim == 1:
            a = a[None, :]
        nr, nc = a.shape
        assert nc <= PACK_LANES, name
        nr_pad = _ceil8(nr)
        buf = np.zeros((nr_pad, PACK_LANES), np.float32)
        buf[:nr, :nc] = a
        blocks.append(buf)
        offs[name] = (row, nr, nc)
        row += nr_pad
    return np.concatenate(blocks, axis=0), offs


def make_param_entries(p):
    """Pre-split / pre-concat / pad parameters so the kernel never shuffles lanes."""
    e = {}
    e['ori_poi_emb'] = p['ori_poi_emb']
    e['dst_user_emb'] = p['dst_user_emb']
    poi_pad = np.zeros((V_PAD, H), np.float32)              # lane-dense head padding
    poi_pad[:N_DST_POI] = np.asarray(p['dst_poi_emb'])
    e['dst_poi_emb'] = poi_pad
    # GGNN
    e['edge_w2'] = np.concatenate([np.asarray(p['edge_in_w']),
                                   np.asarray(p['edge_out_w'])], axis=1)   # (H, 2H)
    e['edge_b2'] = np.concatenate([np.asarray(p['edge_in_b']),
                                   np.asarray(p['edge_out_b'])], axis=1)   # (1, 2H)
    e['ggnn_b_iah'] = p['ggnn_b_iah']
    e['ggnn_b_oah'] = p['ggnn_b_oah']
    e['ggnn_w_ih_in'] = np.asarray(p['ggnn_w_ih'])[:H]      # (H, 3H)
    e['ggnn_w_ih_out'] = np.asarray(p['ggnn_w_ih'])[H:]     # (H, 3H)
    e['ggnn_b_ih'] = p['ggnn_b_ih']
    e['ggnn_w_hh'] = p['ggnn_w_hh']
    e['ggnn_b_hh'] = p['ggnn_b_hh']
    e['linear_q_w'] = p['linear_q_w']
    e['linear_q_b'] = p['linear_q_b']
    e['linear_attn_w'] = p['linear_attn_w']
    e['linear_attn_b'] = p['linear_attn_b']
    # head
    e['mlp_w'] = p['mlp_w']
    e['mlp_b'] = p['mlp_b']
    e['gcn_w'] = p['gcn_w']
    e['gcn_b'] = p['gcn_b']
    e['linear_dst_w1'] = p['linear_dst_w1']
    e['fusion_w_i'] = np.asarray(p['fusion_w'])[:H]         # intent half
    e['fusion_w_x'] = np.asarray(p['fusion_w'])[H:]         # hat / dst_pref half
    e['fusion_b'] = p['fusion_b']
    # NTM
    e['ntm_topic'] = p['ntm_topic']
    e['ntm_word'] = p['ntm_word']
    e['ntm_enc1_w'] = p['ntm_enc1_w']
    e['ntm_enc1_b'] = p['ntm_enc1_b']
    e['ntm_enc2_w'] = p['ntm_enc2_w']
    e['ntm_enc2_b'] = p['ntm_enc2_b']
    e['ntm_mls_w'] = np.concatenate([np.asarray(p['ntm_mean_w']),
                                     np.asarray(p['ntm_logsig_w'])], axis=1)  # (H, 2T)
    e['ntm_mls_b'] = np.concatenate([np.asarray(p['ntm_mean_b']),
                                     np.asarray(p['ntm_logsig_b'])], axis=1)  # (1, 2T)
    e['ntm_gsm_w'] = p['ntm_gsm_w']
    e['ntm_gsm_b'] = p['ntm_gsm_b']
    return {k: np.asarray(v, np.float32) for k, v in e.items()}


# ------------------------------ the fused kernel -----------------------------
def make_trainor_kernel(d_offs, p_offs, dims):
    B = dims['B']
    Hh = dims['H']
    T = dims['T']
    S = dims['S']
    BS = B * S
    f32 = jnp.float32

    def kernel(data_ref, pack_ref, loss_ref, pred_ref):
        def D(name):
            r, nr, nc = d_offs[name]
            return data_ref[pl.ds(r, nr), pl.ds(0, nc)]

        def P(name):
            r, nr, nc = p_offs[name]
            return pack_ref[pl.ds(r, nr), pl.ds(0, nc)]

        # ---------------- NTM: encoder -> reparam -> theta/phi -> loss -------
        bow = D('bow')                                              # (B, V)
        eps = D('eps')                                              # (B, T)
        en1 = jnp.maximum(jnp.dot(bow, P('ntm_enc1_w'),
                                  preferred_element_type=f32) + P('ntm_enc1_b'), 0.0)
        enc = jnp.maximum(jnp.dot(en1, P('ntm_enc2_w'),
                                  preferred_element_type=f32) + P('ntm_enc2_b'), 0.0)
        ml = jnp.dot(enc, P('ntm_mls_w'), preferred_element_type=f32) + P('ntm_mls_b')
        mean = ml[:, :T]
        logsig = ml[:, T:]
        z = mean + eps * jnp.exp(0.5 * logsig)
        theta = jax.nn.softmax(
            jnp.dot(z, P('ntm_gsm_w'), preferred_element_type=f32) + P('ntm_gsm_b'),
            axis=-1)                                                # (B, T)
        topic = P('ntm_topic')                                      # (T, H)
        tw = jax.lax.dot_general(topic, P('ntm_word'), (((1,), (1,)), ((), ())),
                                 preferred_element_type=f32)        # (T, V)
        phi = jax.nn.softmax(tw, axis=-1)
        w_n = jnp.dot(theta, phi, preferred_element_type=f32)       # (B, V)
        kld = -0.5 * jnp.sum(1.0 - mean * mean + 2.0 * logsig - jnp.exp(2.0 * logsig),
                             axis=1, keepdims=True)                 # (B, 1)
        rec = -jnp.sum(bow * jnp.log(w_n + 1e-32), axis=1, keepdims=True)
        ntm_loss = jnp.sum(rec + kld, axis=0, keepdims=True) / B    # (1, 1)

        # ------------- GGNN (fully batched via block-diagonal host matrices) -
        h = jnp.dot(D('items1h'), P('ori_poi_emb'),
                    preferred_element_type=f32)                     # (BN, H)
        eo = jnp.dot(h, P('edge_w2'), preferred_element_type=f32) + P('edge_b2')
        ein = eo[:, :Hh]
        eout = eo[:, Hh:]
        input_in = jnp.dot(D('A_in_blk'), ein,
                           preferred_element_type=f32) + P('ggnn_b_iah')
        input_out = jnp.dot(D('A_out_blk'), eout,
                            preferred_element_type=f32) + P('ggnn_b_oah')
        gi = (jnp.dot(input_in, P('ggnn_w_ih_in'), preferred_element_type=f32)
              + jnp.dot(input_out, P('ggnn_w_ih_out'), preferred_element_type=f32)
              + P('ggnn_b_ih'))                                     # (BN, 3H)
        gh = jnp.dot(h, P('ggnn_w_hh'), preferred_element_type=f32) + P('ggnn_b_hh')
        i_r, i_i, i_n = gi[:, :Hh], gi[:, Hh:2 * Hh], gi[:, 2 * Hh:]
        h_r, h_i, h_n = gh[:, :Hh], gh[:, Hh:2 * Hh], gh[:, 2 * Hh:]
        resetgate = jax.nn.sigmoid(i_r + h_r)
        inputgate = jax.nn.sigmoid(i_i + h_i)
        newgate = jnp.tanh(i_n + resetgate * h_n)
        hy = newgate + inputgate * (h - newgate)                    # (BN, H)

        # alias gather + attention pooling (block-diag gather, masked-pool matmul)
        it_hidden = jnp.dot(D('gat_blk'), hy, preferred_element_type=f32)   # (BL, H)
        q = jnp.dot(it_hidden, P('linear_q_w'),
                    preferred_element_type=f32) + P('linear_q_b')
        alpha = jnp.dot(jax.nn.sigmoid(q), P('linear_attn_w'),
                        preferred_element_type=f32) + P('linear_attn_b')    # (BL, 1)
        ori_pref = jnp.dot(D('pool_mask'), alpha * it_hidden,
                           preferred_element_type=f32)              # (B, H)

        # ---------------------------- head -----------------------------------
        dpref = jnp.dot(D('users1h'), P('dst_user_emb'),
                        preferred_element_type=f32)                 # (B, H)
        hat = jnp.tanh(jnp.dot(ori_pref, P('mlp_w'),
                               preferred_element_type=f32) + P('mlp_b'))    # (B, H)
        # GCN on (lane-padded) destination POI embeddings
        support = jnp.dot(P('dst_poi_emb'), P('gcn_w'),
                          preferred_element_type=f32)               # (VP, H)
        dpe = jnp.maximum(jnp.dot(D('graph'), support,
                                  preferred_element_type=f32) + P('gcn_b'), 0.0)
        # topic attention
        w1m = jnp.dot(topic, P('linear_dst_w1'), preferred_element_type=f32)  # (T, H)
        logits = jax.lax.dot_general(ori_pref, w1m, (((1,), (1,)), ((), ())),
                                     preferred_element_type=f32)    # (B, T)
        att = jax.nn.softmax(logits, axis=-1)
        intent = jnp.dot(att, topic, preferred_element_type=f32)    # (B, H)

        # fusion: shared intent half once; stack [hat; dpref] for the other half
        base = jnp.dot(intent, P('fusion_w_i'),
                       preferred_element_type=f32) + P('fusion_b')  # (B, H)
        hd = jnp.concatenate([hat, dpref], axis=0)                  # (2B, H)
        sec = jnp.dot(hd, P('fusion_w_x'), preferred_element_type=f32)
        fused = jnp.maximum(jnp.concatenate([base, base], axis=0) + sec, 0.0)
        scores2 = jax.lax.dot_general(fused, dpe, (((1,), (1,)), ((), ())),
                                      preferred_element_type=f32)   # (2B, VP)
        pred = scores2[:B, :]                                       # from hat
        score = scores2[B:, :]                                      # from dpref
        pred_ref[...] = pred                                        # lane-dense store

        # ---------------------------- losses ----------------------------------
        # BPR: signed pos/neg selection matrix (host-built) dotted against score rows
        k_idx = jax.lax.broadcasted_iota(jnp.int32, (BS, B), 0)
        b_idx = jax.lax.broadcasted_iota(jnp.int32, (BS, B), 1)
        rep = jnp.logical_and(k_idx >= b_idx * S,
                              k_idx < (b_idx + 1) * S).astype(f32)  # (BS, B)
        score_rep = jnp.dot(rep, score, preferred_element_type=f32)  # (BS, VP)
        diff = jnp.sum(D('pn_sel') * score_rep, axis=1, keepdims=True)  # (BS, 1)
        bpr = -jnp.sum(jax.nn.log_sigmoid(diff), axis=0, keepdims=True) / BS
        transfer = jnp.sum(jnp.sum((hat - dpref) ** 2, axis=1, keepdims=True),
                           axis=0, keepdims=True) / (B * Hh)
        var = 0.9
        loss_ref[...] = ((1 - var) / 2 * bpr + (1 - var) / 2 * transfer
                         + var * ntm_loss)

    return kernel


def build_trainor_forward(d_offs, p_offs, dims):
    kernel = make_trainor_kernel(d_offs, p_offs, dims)
    B, V, VP = dims['B'], dims['V'], dims['VP']

    @jax.jit
    def fwd(data_pack, param_pack):
        loss11, pred_full = pl.pallas_call(
            kernel,
            out_shape=(jax.ShapeDtypeStruct((1, 1), jnp.float32),
                       jax.ShapeDtypeStruct((B, VP), jnp.float32)),
            grid=(1,),
            in_specs=[pl.BlockSpec(data_pack.shape, lambda i: (0, 0)),
                      pl.BlockSpec(param_pack.shape, lambda i: (0, 0))],
            out_specs=(pl.BlockSpec((1, 1), lambda i: (0, 0)),
                       pl.BlockSpec((B, VP), lambda i: (0, 0))),
            compiler_params=pltpu.CompilerParams(
                dimension_semantics=("arbitrary",)),
        )(data_pack, param_pack)
        return loss11[0, 0], pred_full[:, :V]

    return fwd


# --------------------- host-side (data-dependent) glue ----------------------
def build_session_graph(inputs):
    # Exact port of TRAINOR.gated_gnn's numpy preamble.
    items, n_node, A, alias_inputs = [], [], [], []
    for u_input in inputs:
        n_node.append(len(np.unique(u_input)))
    max_n_node = int(np.max(n_node))
    for u_input in inputs:
        node = np.unique(u_input)
        items.append(node.tolist() + (max_n_node - len(node)) * [0])
        u_A = np.zeros((max_n_node, max_n_node))
        for i in np.arange(len(u_input) - 1):
            if u_input[i + 1] == 0:
                break
            u = np.where(node == u_input[i])[0][0]
            v = np.where(node == u_input[i + 1])[0][0]
            u_A[u][v] = 1
        u_sum_in = np.sum(u_A, 0)
        u_sum_in[np.where(u_sum_in == 0)] = 1
        u_A_in = np.divide(u_A, u_sum_in)
        u_sum_out = np.sum(u_A, 1)
        u_sum_out[np.where(u_sum_out == 0)] = 1
        u_A_out = np.divide(u_A.transpose(), u_sum_out)
        u_A = np.concatenate([u_A_in, u_A_out]).transpose()
        A.append(u_A)
        alias_inputs.append([np.where(node == i)[0][0] for i in u_input])
    return (np.asarray(alias_inputs, dtype=np.int32),
            np.asarray(A, dtype=np.float32),
            np.asarray(items, dtype=np.int32))


# --------------------------------- main --------------------------------------
if __name__ == "__main__":
    key = jax.random.PRNGKey(0)
    pkey, gkey, ekey = jax.random.split(key, 3)
    params = init_params(pkey)

    B = 4
    rng = np.random.default_rng(0)
    ori_lens = [5, 3, 6, 4]
    dst_lens = [4, 6, 3, 5]
    ori_checkin = [rng.integers(1, N_ORI_POI, size=l) for l in ori_lens]
    dst_checkin = [rng.integers(1, N_DST_POI, size=l) for l in dst_lens]
    users = rng.integers(0, N_USER, size=B)

    # pad_sequence(batch_first=True) equivalent
    L0 = max(ori_lens)
    pad_ori = np.zeros((B, L0), dtype=np.int64)
    for i, s in enumerate(ori_checkin):
        pad_ori[i, :len(s)] = s

    alias, A, items = build_session_graph(pad_ori)
    maxn = items.shape[1]
    N_pad = _ceil8(maxn)            # sublane-aligned node count
    L_pad = _ceil8(L0)              # sublane-aligned sequence length
    BN, BL = B * N_pad, B * L_pad

    # items one-hot (in-kernel embedding gather)
    items_pad = np.zeros((B, N_pad), np.int64)
    items_pad[:, :maxn] = items
    items1h = np.zeros((BN, N_ORI_POI), np.float32)
    items1h[np.arange(BN), items_pad.reshape(-1)] = 1.0

    # block-diagonal session adjacencies (in / out halves)
    A_in_blk = np.zeros((BN, BN), np.float32)
    A_out_blk = np.zeros((BN, BN), np.float32)
    for b in range(B):
        r = b * N_pad
        A_in_blk[r:r + maxn, r:r + maxn] = A[b][:, :maxn]
        A_out_blk[r:r + maxn, r:r + maxn] = A[b][:, maxn:]

    # block-diagonal alias gather + masked pooling matrix
    gat_blk = np.zeros((BL, BN), np.float32)
    pool_mask = np.zeros((B, BL), np.float32)
    for b in range(B):
        for l in range(L0):
            gat_blk[b * L_pad + l, b * N_pad + alias[b, l]] = 1.0
            if pad_ori[b, l] != 0:
                pool_mask[b, b * L_pad + l] = 1.0

    # user one-hot (in-kernel embedding gather)
    users1h = np.zeros((B, N_USER), np.float32)
    users1h[np.arange(B), users] = 1.0

    # dst_bow: bincount(unique(x), minlength=n_dst_poi) == binary presence
    dst_bow = np.zeros((B, N_DST_POI), np.float32)
    for i, s in enumerate(dst_checkin):
        dst_bow[i, np.unique(s)] = 1.0

    # positive / negative sampling -> signed selection matrix (pos one-hot minus neg one-hot)
    pn_sel = np.zeros((B * SAMPLE, V_PAD), np.float32)
    for b in range(B):
        pos = rng.choice(dst_checkin[b], SAMPLE)
        neg = rng.choice(np.setdiff1d(np.arange(N_DST_POI), dst_checkin[b]), SAMPLE)
        for s in range(SAMPLE):
            pn_sel[b * SAMPLE + s, pos[s]] += 1.0
            pn_sel[b * SAMPLE + s, neg[s]] -= 1.0

    # destination POI graph (row-normalized random adjacency), lane-padded to V_PAD
    g = (jax.random.uniform(gkey, (N_DST_POI, N_DST_POI)) > 0.7).astype(jnp.float32)
    g = g + jnp.eye(N_DST_POI, dtype=jnp.float32)
    graph = np.asarray(g / jnp.sum(g, axis=1, keepdims=True), np.float32)
    graph_pad = np.zeros((V_PAD, V_PAD), np.float32)
    graph_pad[:N_DST_POI, :N_DST_POI] = graph

    # NTM reparameterization noise
    eps = np.asarray(jax.random.normal(ekey, (B, TOPIC), jnp.float32))

    # ---- pack everything into exactly two VMEM buffers -----------------------
    data_entries = {
        'bow': dst_bow, 'eps': eps, 'items1h': items1h,
        'A_in_blk': A_in_blk, 'A_out_blk': A_out_blk,
        'gat_blk': gat_blk, 'pool_mask': pool_mask,
        'users1h': users1h, 'graph': graph_pad, 'pn_sel': pn_sel,
    }
    data_pack, d_offs = pack_arrays(data_entries)
    param_pack, p_offs = pack_arrays(make_param_entries(params))

    dims = dict(B=B, N=N_pad, L=L_pad, H=H, T=TOPIC,
                V=N_DST_POI, VP=V_PAD, S=SAMPLE)
    trainor_forward = build_trainor_forward(d_offs, p_offs, dims)

    loss, pred = trainor_forward(jnp.asarray(data_pack), jnp.asarray(param_pack))
    jax.block_until_ready((loss, pred))

    assert pred.shape == (B, N_DST_POI)
    assert np.isfinite(np.asarray(loss))
    print("KERNEL_OK")
</pallas_src>

<mosaic_0001>
module attributes {stable_mosaic.version = 11 : i64} {
  func.func @kernel(%arg0: i32, %arg1: memref<304x128xf32, #tpu.memory_space<vmem>>, %arg2: memref<768x128xf32, #tpu.memory_space<vmem>>, %arg3: memref<1x1xf32, #tpu.memory_space<vmem>>, %arg4: memref<4x128xf32, #tpu.memory_space<vmem>>) attributes {dimension_semantics = [#tpu.dimension_semantics<arbitrary>], iteration_bounds = array<i64: 1>, scalar_prefetch = 0 : i64, scratch_operands = 0 : i64, tpu.core_type = #tpu.core_type<tc>, window_params = [{pipeline_mode = #tpu.pipeline_mode<synchronous>, transform_indices = @transform_0, window_bounds = array<i64: 304, 128>}, {pipeline_mode = #tpu.pipeline_mode<synchronous>, transform_indices = @transform_1, window_bounds = array<i64: 768, 128>}, {pipeline_mode = #tpu.pipeline_mode<synchronous>, transform_indices = @transform_2, window_bounds = array<i64: 1, 1>}, {pipeline_mode = #tpu.pipeline_mode<synchronous>, transform_indices = @transform_3, window_bounds = array<i64: 4, 128>}]} {
    %c0 = arith.constant 0 : index
    %c0_0 = arith.constant 0 : index
    %0 = vector.load %arg1[%c0, %c0_0] : memref<304x128xf32, #tpu.memory_space<vmem>>, vector<4x25xf32>
    %c8 = arith.constant 8 : index
    %c0_1 = arith.constant 0 : index
    %1 = vector.load %arg1[%c8, %c0_1] : memref<304x128xf32, #tpu.memory_space<vmem>>, vector<4x8xf32>
    %c632 = arith.constant 632 : index
    %c0_2 = arith.constant 0 : index
    %2 = vector.load %arg2[%c632, %c0_2] : memref<768x128xf32, #tpu.memory_space<vmem>>, vector<25x32xf32>
    %cst = arith.constant dense<0.000000e+00> : vector<4x32xf32>
    %3 = tpu.matmul %0, %2, %cst {dimension_numbers = #tpu.dot_dimension_numbers<[1], [0], [0], [1], [0, 0, 1, 1], [], []>} : vector<4x25xf32>, vector<25x32xf32>, vector<4x32xf32> -> vector<4x32xf32>
    %c664 = arith.constant 664 : index
    %c0_3 = arith.constant 0 : index
    %4 = vector.load %arg2[%c664, %c0_3] : memref<768x128xf32, #tpu.memory_space<vmem>>, vector<1x32xf32>
    %5 = vector.broadcast %4 : vector<1x32xf32> to vector<4x32xf32>
    %6 = arith.addf %3, %5 : vector<4x32xf32>
    %cst_4 = arith.constant 0.000000e+00 : f32
    %7 = vector.broadcast %cst_4 : f32 to vector<4x32xf32>
    %8 = arith.maximumf %6, %7 : vector<4x32xf32>
    %c672 = arith.constant 672 : index
    %c0_5 = arith.constant 0 : index
    %9 = vector.load %arg2[%c672, %c0_5] : memref<768x128xf32, #tpu.memory_space<vmem>>, vector<32x32xf32>
    %cst_6 = arith.constant dense<0.000000e+00> : vector<4x32xf32>
    %10 = tpu.matmul %8, %9, %cst_6 {dimension_numbers = #tpu.dot_dimension_numbers<[1], [0], [0], [1], [0, 0, 1, 1], [], []>} : vector<4x32xf32>, vector<32x32xf32>, vector<4x32xf32> -> vector<4x32xf32>
    %c704 = arith.constant 704 : index
    %c0_7 = arith.constant 0 : index
    %11 = vector.load %arg2[%c704, %c0_7] : memref<768x128xf32, #tpu.memory_space<vmem>>, vector<1x32xf32>
    %12 = vector.broadcast %11 : vector<1x32xf32> to vector<4x32xf32>
    %13 = arith.addf %10, %12 : vector<4x32xf32>
    %cst_8 = arith.constant 0.000000e+00 : f32
    %14 = vector.broadcast %cst_8 : f32 to vector<4x32xf32>
    %15 = arith.maximumf %13, %14 : vector<4x32xf32>
    %c712 = arith.constant 712 : index
    %c0_9 = arith.constant 0 : index
    %16 = vector.load %arg2[%c712, %c0_9] : memref<768x128xf32, #tpu.memory_space<vmem>>, vector<32x16xf32>
    %cst_10 = arith.constant dense<0.000000e+00> : vector<4x16xf32>
    %17 = tpu.matmul %15, %16, %cst_10 {dimension_numbers = #tpu.dot_dimension_numbers<[1], [0], [0], [1], [0, 0, 1, 1], [], []>} : vector<4x32xf32>, vector<32x16xf32>, vector<4x16xf32> -> vector<4x16xf32>
    %c744 = arith.constant 744 : index
    %c0_11 = arith.constant 0 : index
    %18 = vector.load %arg2[%c744, %c0_11] : memref<768x128xf32, #tpu.memory_space<vmem>>, vector<1x16xf32>
    %19 = vector.broadcast %18 : vector<1x16xf32> to vector<4x16xf32>
    %20 = arith.addf %17, %19 : vector<4x16xf32>
    %21 = vector.extract_strided_slice %20 {offsets = [0, 0], sizes = [4, 8], strides = [1, 1]} : vector<4x16xf32> to vector<4x8xf32>
    %22 = vector.extract_strided_slice %20 {offsets = [0, 8], sizes = [4, 8], strides = [1, 1]} : vector<4x16xf32> to vector<4x8xf32>
    %cst_12 = arith.constant 5.000000e-01 : f32
    %23 = vector.broadcast %cst_12 : f32 to vector<4x8xf32>
    %24 = arith.mulf %23, %22 : vector<4x8xf32>
    %25 = math.exp %24 : vector<4x8xf32>
    %26 = arith.mulf %1, %25 : vector<4x8xf32>
    %27 = arith.addf %21, %26 : vector<4x8xf32>
    %c752 = arith.constant 752 : index
    %c0_13 = arith.constant 0 : index
    %28 = vector.load %arg2[%c752, %c0_13] : memref<768x128xf32, #tpu.memory_space<vmem>>, vector<8x8xf32>
    %cst_14 = arith.constant dense<0.000000e+00> : vector<4x8xf32>
    %29 = tpu.matmul %27, %28, %cst_14 {dimension_numbers = #tpu.dot_dimension_numbers<[1], [0], [0], [1], [0, 0, 1, 1], [], []>} : vector<4x8xf32>, vector<8x8xf32>, vector<4x8xf32> -> vector<4x8xf32>
    %c760 = arith.constant 760 : index
    %c0_15 = arith.constant 0 : index
    %30 = vector.load %arg2[%c760, %c0_15] : memref<768x128xf32, #tpu.memory_space<vmem>>, vector<1x8xf32>
    %31 = vector.broadcast %30 : vector<1x8xf32> to vector<4x8xf32>
    %32 = arith.addf %29, %31 : vector<4x8xf32>
    %cst_16 = arith.constant dense<0xFF800000> : vector<4xf32>
    %33 = vector.multi_reduction <maximumf>, %32, %cst_16 [1] : vector<4x8xf32> to vector<4xf32>
    %cst_17 = arith.constant 0xFF800000 : f32
    %34 = vector.broadcast %cst_17 : f32 to vector<4xf32>
    %35 = arith.maximumf %34, %33 : vector<4xf32>
    %36 = vector.shape_cast %35 : vector<4xf32> to vector<4x1xf32>
    %37 = vector.broadcast %36 : vector<4x1xf32> to vector<4x8xf32>
    %38 = arith.subf %32, %37 : vector<4x8xf32>
    %39 = math.exp %38 : vector<4x8xf32>
    %cst_18 = arith.constant dense<0.000000e+00> : vector<4xf32>
    %40 = vector.multi_reduction <add>, %39, %cst_18 [1] : vector<4x8xf32> to vector<4xf32>
    %41 = vector.shape_cast %40 : vector<4xf32> to vector<4x1xf32>
    %42 = vector.broadcast %41 : vector<4x1xf32> to vector<4x8xf32>
    %43 = arith.divf %39, %42 : vector<4x8xf32>
    %c592 = arith.constant 592 : index
    %c0_19 = arith.constant 0 : index
    %44 = vector.load %arg2[%c592, %c0_19] : memref<768x128xf32, #tpu.memory_space<vmem>>, vector<8x32xf32>
    %c600 = arith.constant 600 : index
    %c0_20 = arith.constant 0 : index
    %45 = vector.load %arg2[%c600, %c0_20] : memref<768x128xf32, #tpu.memory_space<vmem>>, vector<25x32xf32>
    %cst_21 = arith.constant dense<0.000000e+00> : vector<8x25xf32>
    %46 = tpu.matmul %44, %45, %cst_21 {dimension_numbers = #tpu.dot_dimension_numbers<[1], [1], [0], [0], [0, 0, 1, 0], [], []>} : vector<8x32xf32>, vector<25x32xf32>, vector<8x25xf32> -> vector<8x25xf32>
    %cst_22 = arith.constant dense<0xFF800000> : vector<8xf32>
    %47 = vector.multi_reduction <maximumf>, %46, %cst_22 [1] : vector<8x25xf32> to vector<8xf32>
    %cst_23 = arith.constant 0xFF800000 : f32
    %48 = vector.broadcast %cst_23 : f32 to vector<8xf32>
    %49 = arith.maximumf %48, %47 : vector<8xf32>
    %50 = vector.shape_cast %49 : vector<8xf32> to vector<8x1xf32>
    %51 = vector.broadcast %50 : vector<8x1xf32> to vector<8x25xf32>
    %52 = arith.subf %46, %51 : vector<8x25xf32>
    %53 = math.exp %52 : vector<8x25xf32>
    %cst_24 = arith.constant dense<0.000000e+00> : vector<8xf32>
    %54 = vector.multi_reduction <add>, %53, %cst_24 [1] : vector<8x25xf32> to vector<8xf32>
    %55 = vector.shape_cast %54 : vector<8xf32> to vector<8x1xf32>
    %56 = vector.broadcast %55 : vector<8x1xf32> to vector<8x25xf32>
    %57 = arith.divf %53, %56 : vector<8x25xf32>
    %cst_25 = arith.constant dense<0.000000e+00> : vector<4x25xf32>
    %58 = tpu.matmul %43, %57, %cst_25 {dimension_numbers = #tpu.dot_dimension_numbers<[1], [0], [0], [1], [0, 0, 1, 1], [], []>} : vector<4x8xf32>, vector<8x25xf32>, vector<4x25xf32> -> vector<4x25xf32>
    %59 = arith.mulf %21, %21 : vector<4x8xf32>
    %cst_26 = arith.constant 1.000000e+00 : f32
    %60 = vector.broadcast %cst_26 : f32 to vector<4x8xf32>
    %61 = arith.subf %60, %59 : vector<4x8xf32>
    %cst_27 = arith.constant 2.000000e+00 : f32
    %62 = vector.broadcast %cst_27 : f32 to vector<4x8xf32>
    %63 = arith.mulf %62, %22 : vector<4x8xf32>
    %64 = arith.addf %61, %63 : vector<4x8xf32>
    %cst_28 = arith.constant 2.000000e+00 : f32
    %65 = vector.broadcast %cst_28 : f32 to vector<4x8xf32>
    %66 = arith.mulf %65, %22 : vector<4x8xf32>
    %67 = math.exp %66 : vector<4x8xf32>
    %68 = arith.subf %64, %67 : vector<4x8xf32>
    %cst_29 = arith.constant dense<0.000000e+00> : vector<4xf32>
    %69 = vector.multi_reduction <add>, %68, %cst_29 [1] : vector<4x8xf32> to vector<4xf32>
    %70 = vector.shape_cast %69 : vector<4xf32> to vector<4x1xf32>
    %cst_30 = arith.constant -5.000000e-01 : f32
    %71 = vector.broadcast %cst_30 : f32 to vector<4x1xf32>
    %72 = arith.mulf %71, %70 : vector<4x1xf32>
    %cst_31 = arith.constant 1.000000e-32 : f32
    %73 = vector.broadcast %cst_31 : f32 to vector<4x25xf32>
    %74 = arith.addf %58, %73 : vector<4x25xf32>
    %75 = math.log %74 : vector<4x25xf32>
    %76 = arith.mulf %0, %75 : vector<4x25xf32>
    %cst_32 = arith.constant dense<0.000000e+00> : vector<4xf32>
    %77 = vector.multi_reduction <add>, %76, %cst_32 [1] : vector<4x25xf32> to vector<4xf32>
    %78 = vector.shape_cast %77 : vector<4xf32> to vector<4x1xf32>
    %cst_33 = arith.constant 0.000000e+00 : f32
    %79 = vector.broadcast %cst_33 : f32 to vector<4x1xf32>
    %80 = arith.subf %79, %78 : vector<4x1xf32>
    %81 = arith.addf %80, %72 : vector<4x1xf32>
    %cst_34 = arith.constant dense<0.000000e+00> : vector<1xf32>
    %82 = vector.multi_reduction <add>, %81, %cst_34 [0] : vector<4x1xf32> to vector<1xf32>
    %83 = vector.shape_cast %82 : vector<1xf32> to vector<1x1xf32>
    %cst_35 = arith.constant 4.000000e+00 : f32
    %84 = vector.broadcast %cst_35 : f32 to vector<1x1xf32>
    %85 = arith.divf %83, %84 : vector<1x1xf32>
    %c16 = arith.constant 16 : index
    %c0_36 = arith.constant 0 : index
    %86 = vector.load %arg1[%c16, %c0_36] : memref<304x128xf32, #tpu.memory_space<vmem>>, vector<32x21xf32>
    %c0_37 = arith.constant 0 : index
    %c0_38 = arith.constant 0 : index
    %87 = vector.load %arg2[%c0_37, %c0_38] : memref<768x128xf32, #tpu.memory_space<vmem>>, vector<21x32xf32>
    %cst_39 = arith.constant dense<0.000000e+00> : vector<32x32xf32>
    %88 = tpu.matmul %86, %87, %cst_39 {dimension_numbers = #tpu.dot_dimension_numbers<[1], [0], [0], [1], [0, 0, 1, 1], [], []>} : vector<32x21xf32>, vector<21x32xf32>, vector<32x32xf32> -> vector<32x32xf32>
    %c160 = arith.constant 160 : index
    %c0_40 = arith.constant 0 : index
    %89 = vector.load %arg2[%c160, %c0_40] : memref<768x128xf32, #tpu.memory_space<vmem>>, vector<32x64xf32>
    %cst_41 = arith.constant dense<0.000000e+00> : vector<32x64xf32>
    %90 = tpu.matmul %88, %89, %cst_41 {dimension_numbers = #tpu.dot_dimension_numbers<[1], [0], [0], [1], [0, 0, 1, 1], [], []>} : vector<32x32xf32>, vector<32x64xf32>, vector<32x64xf32> -> vector<32x64xf32>
    %c192 = arith.constant 192 : index
    %c0_42 = arith.constant 0 : index
    %91 = vector.load %arg2[%c192, %c0_42] : memref<768x128xf32, #tpu.memory_space<vmem>>, vector<1x64xf32>
    %92 = vector.broadcast %91 : vector<1x64xf32> to vector<32x64xf32>
    %93 = arith.addf %90, %92 : vector<32x64xf32>
    %94 = vector.extract_strided_slice %93 {offsets = [0, 0], sizes = [32, 32], strides = [1, 1]} : vector<32x64xf32> to vector<32x32xf32>
    %95 = vector.extract_strided_slice %93 {offsets = [0, 32], sizes = [32, 32], strides = [1, 1]} : vector<32x64xf32> to vector<32x32xf32>
    %c48 = arith.constant 48 : index
    %c0_43 = arith.constant 0 : index
    %96 = vector.load %arg1[%c48, %c0_43] : memref<304x128xf32, #tpu.memory_space<vmem>>, vector<32x32xf32>
    %cst_44 = arith.constant dense<0.000000e+00> : vector<32x32xf32>
    %97 = tpu.matmul %96, %94, %cst_44 {dimension_numbers = #tpu.dot_dimension_numbers<[1], [0], [0], [1], [0, 0, 1, 1], [], []>} : vector<32x32xf32>, vector<32x32xf32>, vector<32x32xf32> -> vector<32x32xf32>
    %c200 = arith.constant 200 : index
    %c0_45 = arith.constant 0 : index
    %98 = vector.load %arg2[%c200, %c0_45] : memref<768x128xf32, #tpu.memory_space<vmem>>, vector<1x32xf32>
    %99 = vector.broadcast %98 : vector<1x32xf32> to vector<32x32xf32>
    %100 = arith.addf %97, %99 : vector<32x32xf32>
    %c80 = arith.constant 80 : index
    %c0_46 = arith.constant 0 : index
    %101 = vector.load %arg1[%c80, %c0_46] : memref<304x128xf32, #tpu.memory_space<vmem>>, vector<32x32xf32>
    %cst_47 = arith.constant dense<0.000000e+00> : vector<32x32xf32>
    %102 = tpu.matmul %101, %95, %cst_47 {dimension_numbers = #tpu.dot_dimension_numbers<[1], [0], [0], [1], [0, 0, 1, 1], [], []>} : vector<32x32xf32>, vector<32x32xf32>, vector<32x32xf32> -> vector<32x32xf32>
    %c208 = arith.constant 208 : index
    %c0_48 = arith.constant 0 : index
    %103 = vector.load %arg2[%c208, %c0_48] : memref<768x128xf32, #tpu.memory_space<vmem>>, vector<1x32xf32>
    %104 = vector.broadcast %103 : vector<1x32xf32> to vector<32x32xf32>
    %105 = arith.addf %102, %104 : vector<32x32xf32>
    %c216 = arith.constant 216 : index
    %c0_49 = arith.constant 0 : index
    %106 = vector.load %arg2[%c216, %c0_49] : memref<768x128xf32, #tpu.memory_space<vmem>>, vector<32x96xf32>
    %cst_50 = arith.constant dense<0.000000e+00> : vector<32x96xf32>
    %107 = tpu.matmul %100, %106, %cst_50 {dimension_numbers = #tpu.dot_dimension_numbers<[1], [0], [0], [1], [0, 0, 1, 1], [], []>} : vector<32x32xf32>, vector<32x96xf32>, vector<32x96xf32> -> vector<32x96xf32>
    %c248 = arith.constant 248 : index
    %c0_51 = arith.constant 0 : index
    %108 = vector.load %arg2[%c248, %c0_51] : memref<768x128xf32, #tpu.memory_space<vmem>>, vector<32x96xf32>
    %cst_52 = arith.constant dense<0.000000e+00> : vector<32x96xf32>
    %109 = tpu.matmul %105, %108, %cst_52 {dimension_numbers = #tpu.dot_dimension_numbers<[1], [0], [0], [1], [0, 0, 1, 1], [], []>} : vector<32x32xf32>, vector<32x96xf32>, vector<32x96xf32> -> vector<32x96xf32>
    %110 = arith.addf %107, %109 : vector<32x96xf32>
    %c280 = arith.constant 280 : index
    %c0_53 = arith.constant 0 : index
    %111 = vector.load %arg2[%c280, %c0_53] : memref<768x128xf32, #tpu.memory_space<vmem>>, vector<1x96xf32>
    %112 = vector.broadcast %111 : vector<1x96xf32> to vector<32x96xf32>
    %113 = arith.addf %110, %112 : vector<32x96xf32>
    %c288 = arith.constant 288 : index
    %c0_54 = arith.constant 0 : index
    %114 = vector.load %arg2[%c288, %c0_54] : memref<768x128xf32, #tpu.memory_space<vmem>>, vector<32x96xf32>
    %cst_55 = arith.constant dense<0.000000e+00> : vector<32x96xf32>
    %115 = tpu.matmul %88, %114, %cst_55 {dimension_numbers = #tpu.dot_dimension_numbers<[1], [0], [0], [1], [0, 0, 1, 1], [], []>} : vector<32x32xf32>, vector<32x96xf32>, vector<32x96xf32> -> vector<32x96xf32>
    %c320 = arith.constant 320 : index
    %c0_56 = arith.constant 0 : index
    %116 = vector.load %arg2[%c320, %c0_56] : memref<768x128xf32, #tpu.memory_space<vmem>>, vector<1x96xf32>
    %117 = vector.broadcast %116 : vector<1x96xf32> to vector<32x96xf32>
    %118 = arith.addf %115, %117 : vector<32x96xf32>
    %119 = vector.extract_strided_slice %113 {offsets = [0, 0], sizes = [32, 32], strides = [1, 1]} : vector<32x96xf32> to vector<32x32xf32>
    %120 = vector.extract_strided_slice %113 {offsets = [0, 32], sizes = [32, 32], strides = [1, 1]} : vector<32x96xf32> to vector<32x32xf32>
    %121 = vector.extract_strided_slice %113 {offsets = [0, 64], sizes = [32, 32], strides = [1, 1]} : vector<32x96xf32> to vector<32x32xf32>
    %122 = vector.extract_strided_slice %118 {offsets = [0, 0], sizes = [32, 32], strides = [1, 1]} : vector<32x96xf32> to vector<32x32xf32>
    %123 = vector.extract_strided_slice %118 {offsets = [0, 32], sizes = [32, 32], strides = [1, 1]} : vector<32x96xf32> to vector<32x32xf32>
    %124 = vector.extract_strided_slice %118 {offsets = [0, 64], sizes = [32, 32], strides = [1, 1]} : vector<32x96xf32> to vector<32x32xf32>
    %125 = arith.addf %119, %122 : vector<32x32xf32>
    %126 = arith.negf %125 : vector<32x32xf32>
    %127 = math.exp %126 : vector<32x32xf32>
    %cst_57 = arith.constant 1.000000e+00 : f32
    %128 = vector.broadcast %cst_57 : f32 to vector<32x32xf32>
    %129 = arith.addf %128, %127 : vector<32x32xf32>
    %130 = arith.divf %128, %129 : vector<32x32xf32>
    %131 = arith.addf %120, %123 : vector<32x32xf32>
    %132 = arith.negf %131 : vector<32x32xf32>
    %133 = math.exp %132 : vector<32x32xf32>
    %cst_58 = arith.constant 1.000000e+00 : f32
    %134 = vector.broadcast %cst_58 : f32 to vector<32x32xf32>
    %135 = arith.addf %134, %133 : vector<32x32xf32>
    %136 = arith.divf %134, %135 : vector<32x32xf32>
    %137 = arith.mulf %130, %124 : vector<32x32xf32>
    %138 = arith.addf %121, %137 : vector<32x32xf32>
    %139 = math.tanh %138 : vector<32x32xf32>
    %140 = arith.subf %88, %139 : vector<32x32xf32>
    %141 = arith.mulf %136, %140 : vector<32x32xf32>
    %142 = arith.addf %139, %141 : vector<32x32xf32>
    %c112 = arith.constant 112 : index
    %c0_59 = arith.constant 0 : index
    %143 = vector.load %arg1[%c112, %c0_59] : memref<304x128xf32, #tpu.memory_space<vmem>>, vector<32x32xf32>
    %cst_60 = arith.constant dense<0.000000e+00> : vector<32x32xf32>
    %144 = tpu.matmul %143, %142, %cst_60 {dimension_numbers = #tpu.dot_dimension_numbers<[1], [0], [0], [1], [0, 0, 1, 1], [], []>} : vector<32x32xf32>, vector<32x32xf32>, vector<32x32xf32> -> vector<32x32xf32>
    %c328 = arith.constant 328 : index
    %c0_61 = arith.constant 0 : index
    %145 = vector.load %arg2[%c328, %c0_61] : memref<768x128xf32, #tpu.memory_space<vmem>>, vector<32x32xf32>
    %cst_62 = arith.constant dense<0.000000e+00> : vector<32x32xf32>
    %146 = tpu.matmul %144, %145, %cst_62 {dimension_numbers = #tpu.dot_dimension_numbers<[1], [0], [0], [1], [0, 0, 1, 1], [], []>} : vector<32x32xf32>, vector<32x32xf32>, vector<32x32xf32> -> vector<32x32xf32>
    %c360 = arith.constant 360 : index
    %c0_63 = arith.constant 0 : index
    %147 = vector.load %arg2[%c360, %c0_63] : memref<768x128xf32, #tpu.memory_space<vmem>>, vector<1x32xf32>
    %148 = vector.broadcast %147 : vector<1x32xf32> to vector<32x32xf32>
    %149 = arith.addf %146, %148 : vector<32x32xf32>
    %150 = arith.negf %149 : vector<32x32xf32>
    %151 = math.exp %150 : vector<32x32xf32>
    %cst_64 = arith.constant 1.000000e+00 : f32
    %152 = vector.broadcast %cst_64 : f32 to vector<32x32xf32>
    %153 = arith.addf %152, %151 : vector<32x32xf32>
    %154 = arith.divf %152, %153 : vector<32x32xf32>
    %c368 = arith.constant 368 : index
    %c0_65 = arith.constant 0 : index
    %155 = vector.load %arg2[%c368, %c0_65] : memref<768x128xf32, #tpu.memory_space<vmem>>, vector<32x1xf32>
    %cst_66 = arith.constant dense<0.000000e+00> : vector<32x1xf32>
    %156 = tpu.matmul %154, %155, %cst_66 {dimension_numbers = #tpu.dot_dimension_numbers<[1], [0], [0], [1], [0, 0, 1, 1], [], []>} : vector<32x32xf32>, vector<32x1xf32>, vector<32x1xf32> -> vector<32x1xf32>
    %c400 = arith.constant 400 : index
    %c0_67 = arith.constant 0 : index
    %157 = vector.load %arg2[%c400, %c0_67] : memref<768x128xf32, #tpu.memory_space<vmem>>, vector<1x1xf32>
    %158 = vector.broadcast %157 : vector<1x1xf32> to vector<32x1xf32>
    %159 = arith.addf %156, %158 : vector<32x1xf32>
    %c144 = arith.constant 144 : index
    %c0_68 = arith.constant 0 : index
    %160 = vector.load %arg1[%c144, %c0_68] : memref<304x128xf32, #tpu.memory_space<vmem>>, vector<4x32xf32>
    %161 = vector.broadcast %159 : vector<32x1xf32> to vector<32x32xf32>
    %162 = arith.mulf %161, %144 : vector<32x32xf32>
    %cst_69 = arith.constant dense<0.000000e+00> : vector<4x32xf32>
    %163 = tpu.matmul %160, %162, %cst_69 {dimension_numbers = #tpu.dot_dimension_numbers<[1], [0], [0], [1], [0, 0, 1, 1], [], []>} : vector<4x32xf32>, vector<32x32xf32>, vector<4x32xf32> -> vector<4x32xf32>
    %c152 = arith.constant 152 : index
    %c0_70 = arith.constant 0 : index
    %164 = vector.load %arg1[%c152, %c0_70] : memref<304x128xf32, #tpu.memory_space<vmem>>, vector<4x8xf32>
    %c24 = arith.constant 24 : index
    %c0_71 = arith.constant 0 : index
    %165 = vector.load %arg2[%c24, %c0_71] : memref<768x128xf32, #tpu.memory_space<vmem>>, vector<8x32xf32>
    %cst_72 = arith.constant dense<0.000000e+00> : vector<4x32xf32>
    %166 = tpu.matmul %164, %165, %cst_72 {dimension_numbers = #tpu.dot_dimension_numbers<[1], [0], [0], [1], [0, 0, 1, 1], [], []>} : vector<4x8xf32>, vector<8x32xf32>, vector<4x32xf32> -> vector<4x32xf32>
    %c408 = arith.constant 408 : index
    %c0_73 = arith.constant 0 : index
    %167 = vector.load %arg2[%c408, %c0_73] : memref<768x128xf32, #tpu.memory_space<vmem>>, vector<32x32xf32>
    %cst_74 = arith.constant dense<0.000000e+00> : vector<4x32xf32>
    %168 = tpu.matmul %163, %167, %cst_74 {dimension_numbers = #tpu.dot_dimension_numbers<[1], [0], [0], [1], [0, 0, 1, 1], [], []>} : vector<4x32xf32>, vector<32x32xf32>, vector<4x32xf32> -> vector<4x32xf32>
    %c440 = arith.constant 440 : index
    %c0_75 = arith.constant 0 : index
    %169 = vector.load %arg2[%c440, %c0_75] : memref<768x128xf32, #tpu.memory_space<vmem>>, vector<1x32xf32>
    %170 = vector.broadcast %169 : vector<1x32xf32> to vector<4x32xf32>
    %171 = arith.addf %168, %170 : vector<4x32xf32>
    %172 = math.tanh %171 : vector<4x32xf32>
    %c32 = arith.constant 32 : index
    %c0_76 = arith.constant 0 : index
    %173 = vector.load %arg2[%c32, %c0_76] : memref<768x128xf32, #tpu.memory_space<vmem>>, vector<128x32xf32>
    %c448 = arith.constant 448 : index
    %c0_77 = arith.constant 0 : index
    %174 = vector.load %arg2[%c448, %c0_77] : memref<768x128xf32, #tpu.memory_space<vmem>>, vector<32x32xf32>
    %cst_78 = arith.constant dense<0.000000e+00> : vector<128x32xf32>
    %175 = tpu.matmul %173, %174, %cst_78 {dimension_numbers = #tpu.dot_dimension_numbers<[1], [0], [0], [1], [0, 0, 1, 1], [], []>} : vector<128x32xf32>, vector<32x32xf32>, vector<128x32xf32> -> vector<128x32xf32>
    %c160_79 = arith.constant 160 : index
    %c0_80 = arith.constant 0 : index
    %176 = vector.load %arg1[%c160_79, %c0_80] : memref<304x128xf32, #tpu.memory_space<vmem>>, vector<128x128xf32>
    %cst_81 = arith.constant dense<0.000000e+00> : vector<128x32xf32>
    %177 = tpu.matmul %176, %175, %cst_81 {dimension_numbers = #tpu.dot_dimension_numbers<[1], [0], [0], [1], [0, 0, 1, 1], [], []>} : vector<128x128xf32>, vector<128x32xf32>, vector<128x32xf32> -> vector<128x32xf32>
    %c480 = arith.constant 480 : index
    %c0_82 = arith.constant 0 : index
    %178 = vector.load %arg2[%c480, %c0_82] : memref<768x128xf32, #tpu.memory_space<vmem>>, vector<1x32xf32>
    %179 = vector.broadcast %178 : vector<1x32xf32> to vector<128x32xf32>
    %180 = arith.addf %177, %179 : vector<128x32xf32>
    %cst_83 = arith.constant 0.000000e+00 : f32
    %181 = vector.broadcast %cst_83 : f32 to vector<128x32xf32>
    %182 = arith.maximumf %180, %181 : vector<128x32xf32>
    %c488 = arith.constant 488 : index
    %c0_84 = arith.constant 0 : index
    %183 = vector.load %arg2[%c488, %c0_84] : memref<768x128xf32, #tpu.memory_space<vmem>>, vector<32x32xf32>
    %cst_85 = arith.constant dense<0.000000e+00> : vector<8x32xf32>
    %184 = tpu.matmul %44, %183, %cst_85 {dimension_numbers = #tpu.dot_dimension_numbers<[1], [0], [0], [1], [0, 0, 1, 1], [], []>} : vector<8x32xf32>, vector<32x32xf32>, vector<8x32xf32> -> vector<8x32xf32>
    %cst_86 = arith.constant dense<0.000000e+00> : vector<4x8xf32>
    %185 = tpu.matmul %163, %184, %cst_86 {dimension_numbers = #tpu.dot_dimension_numbers<[1], [1], [0], [0], [0, 0, 1, 0], [], []>} : vector<4x32xf32>, vector<8x32xf32>, vector<4x8xf32> -> vector<4x8xf32>
    %cst_87 = arith.constant dense<0xFF800000> : vector<4xf32>
    %186 = vector.multi_reduction <maximumf>, %185, %cst_87 [1] : vector<4x8xf32> to vector<4xf32>
    %cst_88 = arith.constant 0xFF800000 : f32
    %187 = vector.broadcast %cst_88 : f32 to vector<4xf32>
    %188 = arith.maximumf %187, %186 : vector<4xf32>
    %189 = vector.shape_cast %188 : vector<4xf32> to vector<4x1xf32>
    %190 = vector.broadcast %189 : vector<4x1xf32> to vector<4x8xf32>
    %191 = arith.subf %185, %190 : vector<4x8xf32>
    %192 = math.exp %191 : vector<4x8xf32>
    %cst_89 = arith.constant dense<0.000000e+00> : vector<4xf32>
    %193 = vector.multi_reduction <add>, %192, %cst_89 [1] : vector<4x8xf32> to vector<4xf32>
    %194 = vector.shape_cast %193 : vector<4xf32> to vector<4x1xf32>
    %195 = vector.broadcast %194 : vector<4x1xf32> to vector<4x8xf32>
    %196 = arith.divf %192, %195 : vector<4x8xf32>
    %cst_90 = arith.constant dense<0.000000e+00> : vector<4x32xf32>
    %197 = tpu.matmul %196, %44, %cst_90 {dimension_numbers = #tpu.dot_dimension_numbers<[1], [0], [0], [1], [0, 0, 1, 1], [], []>} : vector<4x8xf32>, vector<8x32xf32>, vector<4x32xf32> -> vector<4x32xf32>
    %c520 = arith.constant 520 : index
    %c0_91 = arith.constant 0 : index
    %198 = vector.load %arg2[%c520, %c0_91] : memref<768x128xf32, #tpu.memory_space<vmem>>, vector<32x32xf32>
    %cst_92 = arith.constant dense<0.000000e+00> : vector<4x32xf32>
    %199 = tpu.matmul %197, %198, %cst_92 {dimension_numbers = #tpu.dot_dimension_numbers<[1], [0], [0], [1], [0, 0, 1, 1], [], []>} : vector<4x32xf32>, vector<32x32xf32>, vector<4x32xf32> -> vector<4x32xf32>
    %c584 = arith.constant 584 : index
    %c0_93 = arith.constant 0 : index
    %200 = vector.load %arg2[%c584, %c0_93] : memref<768x128xf32, #tpu.memory_space<vmem>>, vector<1x32xf32>
    %201 = vector.broadcast %200 : vector<1x32xf32> to vector<4x32xf32>
    %202 = arith.addf %199, %201 : vector<4x32xf32>
    %203 = tpu.concatenate %172, %166 in 0 : vector<4x32xf32>, vector<4x32xf32> -> vector<8x32xf32>
    %c552 = arith.constant 552 : index
    %c0_94 = arith.constant 0 : index
    %204 = vector.load %arg2[%c552, %c0_94] : memref<768x128xf32, #tpu.memory_space<vmem>>, vector<32x32xf32>
    %cst_95 = arith.constant dense<0.000000e+00> : vector<8x32xf32>
    %205 = tpu.matmul %203, %204, %cst_95 {dimension_numbers = #tpu.dot_dimension_numbers<[1], [0], [0], [1], [0, 0, 1, 1], [], []>} : vector<8x32xf32>, vector<32x32xf32>, vector<8x32xf32> -> vector<8x32xf32>
    %206 = tpu.concatenate %202, %202 in 0 : vector<4x32xf32>, vector<4x32xf32> -> vector<8x32xf32>
    %207 = arith.addf %206, %205 : vector<8x32xf32>
    %cst_96 = arith.constant 0.000000e+00 : f32
    %208 = vector.broadcast %cst_96 : f32 to vector<8x32xf32>
    %209 = arith.maximumf %207, %208 : vector<8x32xf32>
    %cst_97 = arith.constant dense<0.000000e+00> : vector<8x128xf32>
    %210 = tpu.matmul %209, %182, %cst_97 {dimension_numbers = #tpu.dot_dimension_numbers<[1], [1], [0], [0], [0, 0, 1, 0], [], []>} : vector<8x32xf32>, vector<128x32xf32>, vector<8x128xf32> -> vector<8x128xf32>
    %211 = vector.extract_strided_slice %210 {offsets = [0, 0], sizes = [4, 128], strides = [1, 1]} : vector<8x128xf32> to vector<4x128xf32>
    %212 = vector.extract_strided_slice %210 {offsets = [4, 0], sizes = [4, 128], strides = [1, 1]} : vector<8x128xf32> to vector<4x128xf32>
    %c0_98 = arith.constant 0 : index
    %c0_99 = arith.constant 0 : index
    %213 = vector.load %arg4[%c0_98, %c0_99] : memref<4x128xf32, #tpu.memory_space<vmem>>, vector<4x128xf32>
    tpu.vector_store %arg4[%c0_98, %c0_99], %211 {strides = array<i32>} : memref<4x128xf32, #tpu.memory_space<vmem>>, vector<4x128xf32>,
    %214 = tpu.iota {dimensions = array<i32: 0>} : vector<16x4xi32>
    %215 = tpu.iota {dimensions = array<i32: 1>} : vector<16x4xi32>
    %c4_i32 = arith.constant 4 : i32
    %216 = vector.broadcast %c4_i32 : i32 to vector<16x4xi32>
    %217 = arith.muli %215, %216 : vector<16x4xi32>
    %218 = arith.cmpi sge, %214, %217 : vector<16x4xi32>
    %c1_i32 = arith.constant 1 : i32
    %219 = vector.broadcast %c1_i32 : i32 to vector<16x4xi32>
    %220 = arith.addi %215, %219 : vector<16x4xi32>
    %c4_i32_100 = arith.constant 4 : i32
    %221 = vector.broadcast %c4_i32_100 : i32 to vector<16x4xi32>
    %222 = arith.muli %220, %221 : vector<16x4xi32>
    %223 = arith.cmpi slt, %214, %222 : vector<16x4xi32>
    %224 = arith.andi %218, %223 : vector<16x4xi1>
    %225 = arith.extui %224 : vector<16x4xi1> to vector<16x4xi32>
    %226 = arith.sitofp %225 : vector<16x4xi32> to vector<16x4xf32>
    %cst_101 = arith.constant dense<0.000000e+00> : vector<16x128xf32>
    %227 = tpu.matmul %226, %212, %cst_101 {dimension_numbers = #tpu.dot_dimension_numbers<[1], [0], [0], [1], [0, 0, 1, 1], [], []>} : vector<16x4xf32>, vector<4x128xf32>, vector<16x128xf32> -> vector<16x128xf32>
    %c288_102 = arith.constant 288 : index
    %c0_103 = arith.constant 0 : index
    %228 = vector.load %arg1[%c288_102, %c0_103] : memref<304x128xf32, #tpu.memory_space<vmem>>, vector<16x128xf32>
    %229 = arith.mulf %228, %227 : vector<16x128xf32>
    %cst_104 = arith.constant dense<0.000000e+00> : vector<16xf32>
    %230 = vector.multi_reduction <add>, %229, %cst_104 [1] : vector<16x128xf32> to vector<16xf32>
    %231 = vector.shape_cast %230 : vector<16xf32> to vector<16x1xf32>
    %cst_105 = arith.constant 0.000000e+00 : f32
    %232 = vector.broadcast %cst_105 : f32 to vector<16x1xf32>
    %233 = arith.subf %232, %231 : vector<16x1xf32>
    %cst_106 = arith.constant 0.000000e+00 : f32
    %234 = vector.broadcast %cst_106 : f32 to vector<16x1xf32>
    %235 = arith.maximumf %233, %234 : vector<16x1xf32>
    %236 = vector.broadcast %cst_106 : f32 to vector<16x1xf32>
    %237 = arith.subf %233, %236 : vector<16x1xf32>
    %238 = arith.cmpf one, %237, %237 : vector<16x1xf32>
    %239 = vector.broadcast %cst_106 : f32 to vector<16x1xf32>
    %240 = arith.addf %233, %239 : vector<16x1xf32>
    %241 = math.absf %237 : vector<16x1xf32>
    %cst_107 = arith.constant 0.000000e+00 : f32
    %242 = vector.broadcast %cst_107 : f32 to vector<16x1xf32>
    %243 = arith.subf %242, %241 : vector<16x1xf32>
    %244 = math.exp %243 : vector<16x1xf32>
    %245 = math.log1p %244 : vector<16x1xf32>
    %246 = arith.addf %235, %245 : vector<16x1xf32>
    %247 = arith.select %238, %240, %246 : vector<16x1xi1>, vector<16x1xf32>
    %cst_108 = arith.constant 0.000000e+00 : f32
    %248 = vector.broadcast %cst_108 : f32 to vector<16x1xf32>
    %249 = arith.subf %248, %247 : vector<16x1xf32>
    %cst_109 = arith.constant dense<0.000000e+00> : vector<1xf32>
    %250 = vector.multi_reduction <add>, %249, %cst_109 [0] : vector<16x1xf32> to vector<1xf32>
    %251 = vector.shape_cast %250 : vector<1xf32> to vector<1x1xf32>
    %cst_110 = arith.constant 0.000000e+00 : f32
    %252 = vector.broadcast %cst_110 : f32 to vector<1x1xf32>
    %253 = arith.subf %252, %251 : vector<1x1xf32>
    %cst_111 = arith.constant 1.600000e+01 : f32
    %254 = vector.broadcast %cst_111 : f32 to vector<1x1xf32>
    %255 = arith.divf %253, %254 : vector<1x1xf32>
    %256 = arith.subf %172, %166 : vector<4x32xf32>
    %257 = arith.mulf %256, %256 : vector<4x32xf32>
    %cst_112 = arith.constant dense<0.000000e+00> : vector<4xf32>
    %258 = vector.multi_reduction <add>, %257, %cst_112 [1] : vector<4x32xf32> to vector<4xf32>
    %259 = vector.shape_cast %258 : vector<4xf32> to vector<4x1xf32>
    %cst_113 = arith.constant dense<0.000000e+00> : vector<1xf32>
    %260 = vector.multi_reduction <add>, %259, %cst_113 [0] : vector<4x1xf32> to vector<1xf32>
    %261 = vector.shape_cast %260 : vector<1xf32> to vector<1x1xf32>
    %cst_114 = arith.constant 1.280000e+02 : f32
    %262 = vector.broadcast %cst_114 : f32 to vector<1x1xf32>
    %263 = arith.divf %261, %262 : vector<1x1xf32>
    %cst_115 = arith.constant 5.000000e-02 : f32
    %264 = vector.broadcast %cst_115 : f32 to vector<1x1xf32>
    %265 = arith.mulf %264, %255 : vector<1x1xf32>
    %cst_116 = arith.constant 5.000000e-02 : f32
    %266 = vector.broadcast %cst_116 : f32 to vector<1x1xf32>
    %267 = arith.mulf %266, %263 : vector<1x1xf32>
    %268 = arith.addf %265, %267 : vector<1x1xf32>
    %cst_117 = arith.constant 0.899999976 : f32
    %269 = vector.broadcast %cst_117 : f32 to vector<1x1xf32>
    %270 = arith.mulf %269, %85 : vector<1x1xf32>
    %271 = arith.addf %268, %270 : vector<1x1xf32>
    %c0_118 = arith.constant 0 : index
    %c0_119 = arith.constant 0 : index
    %272 = vector.load %arg3[%c0_118, %c0_119] : memref<1x1xf32, #tpu.memory_space<vmem>>, vector<1x1xf32>
    tpu.vector_store %arg3[%c0_118, %c0_119], %271 {strides = array<i32>} : memref<1x1xf32, #tpu.memory_space<vmem>>, vector<1x1xf32>,
    return
  }
  func.func @transform_0(%arg0: i32) -> (i32, i32) {
    %c0_i32 = arith.constant 0 : i32
    %c0_i32_0 = arith.constant 0 : i32
    %c0_i32_1 = arith.constant 0 : i32
    return %c0_i32, %c0_i32_0 : i32, i32
  }
  func.func @transform_1(%arg0: i32) -> (i32, i32) {
    %c0_i32 = arith.constant 0 : i32
    %c0_i32_0 = arith.constant 0 : i32
    %c0_i32_1 = arith.constant 0 : i32
    return %c0_i32, %c0_i32_0 : i32, i32
  }
  func.func @transform_2(%arg0: i32) -> (i32, i32) {
    %c0_i32 = arith.constant 0 : i32
    %c0_i32_0 = arith.constant 0 : i32
    %c0_i32_1 = arith.constant 0 : i32
    return %c0_i32, %c0_i32_0 : i32, i32
  }
  func.func @transform_3(%arg0: i32) -> (i32, i32) {
    %c0_i32 = arith.constant 0 : i32
    %c0_i32_0 = arith.constant 0 : i32
    %c0_i32_1 = arith.constant 0 : i32
    return %c0_i32, %c0_i32_0 : i32, i32
  }
}

</mosaic_0001>

<llo_original>
// kernel: fwd.1
$region0: #{fwd.1}
  #allocation0 [shape = 'u32[]', space=smem, size = 0x4, offset = 0x4, fixed_abs, tag = 'smem constant byte address 0x4 - core index']
  #allocation1 [shape = 'u32[144,128]{1,0:T(1,128)}', space=vmem, size = 0x12000, scoped, tag = 'internal scratch']
  %s0 = inlined_call_operand.hbm [shape: f32[304,128], index: 0, kind: input, shape index: {}]
  %s1 = inlined_call_operand.hbm [shape: f32[768,128], index: 1, kind: input, shape index: {}]
  %s2 = inlined_call_operand.hbm [shape: f32[1,1], index: 2, kind: output, shape index: {0}]
  %s3 = inlined_call_operand.hbm [shape: f32[4,128], index: 3, kind: output, shape index: {1}]
  %4 = xla_tuple %s2, %s3
  %s5 = sld [smem:[#allocation0]]
  $region34: #{fwd.1} parent=0
    _
  %s7 = ssub.s32 1, %s5
  %s8 = scalar_select 0, %s7, %s5
  $region1: #{fwd.1} parent=0
    #allocation2 [shape = 'u8[155648]{0}', space=vmem, size = 0x26000, scoped, tag = 'input window, operand 0, single buffered']
    #allocation3 [shape = 's32[1]{0}', space=sflag, size = 0x4, scoped, tag = 'scoped memory for fwd.1']
    #allocation4 [shape = 's32[1]{0}', space=sflag, size = 0x4, scoped, tag = 'scoped memory for fwd.1']
    #allocation5 [shape = 'u8[393216]{0}', space=vmem, size = 0x60000, scoped, tag = 'input window, operand 1, single buffered']
    #allocation6 [shape = 's32[1]{0}', space=sflag, size = 0x4, scoped, tag = 'scoped memory for fwd.1']
    #allocation7 [shape = 'u8[512]{0}', space=vmem, size = 0x400, scoped, tag = 'output window, operand 0, single buffered']
    #allocation8 [shape = 'u8[2048]{0}', space=vmem, size = 0x800, scoped, tag = 'output window, operand 1, single buffered']
    #allocation9 [shape = 's32[1]{0}', space=sflag, size = 0x4, scoped, tag = 'scoped memory for fwd.1']
    %9 = vsyncpa [#allocation3], 0
    %10 = vsyncpa [#allocation6], 0
    %11 = vsyncpa [#allocation4], 0
    %12 = vsyncpa [#allocation9], 0
    // Predicated region
    $region2: #{fwd.1} parent=1 // pred_check
      _
    $region3: #{fwd.1} parent=1 // pred_check_branch
      %14 = sbr.rel (0) target = $region5
    $region4: #{fwd.1} parent=1 // pred_region
      %s16 = ssub.s32 4864, 4864
      %17 = vsyncadd [#allocation3], %s16
      %s18 = sshll.u32 [#allocation2], 4
      %s19 = int_to_ptr.vmem [resolvable:$true] %s18
      %24 = dma.hbm_to_vmem [thread:$0]  %s0, 4864, %s19, [#allocation3], 128, 128, 8
    $region5: #{fwd.1} parent=1 // pred_fallthru
      _
    // Predicated region
    $region6: #{fwd.1} parent=1 // pred_check
      _
    $region7: #{fwd.1} parent=1 // pred_check_branch
      %26 = sbr.rel (0) target = $region9
    $region8: #{fwd.1} parent=1 // pred_region
      %s28 = ssub.s32 12288, 12288
      %29 = vsyncadd [#allocation6], %s28
      %s30 = sshll.u32 [#allocation5], 4
      %s31 = int_to_ptr.vmem [resolvable:$true] %s30
      %36 = dma.hbm_to_vmem [thread:$0]  %s1, 12288, %s31, [#allocation6], 128, 128, 8
    $region9: #{fwd.1} parent=1 // pred_fallthru
      _
    // Predicated region
    $region10: #{fwd.1} parent=1 // pred_check
      _
    $region11: #{fwd.1} parent=1 // pred_check_branch
      %38 = sbr.rel (0) target = $region13
    $region12: #{fwd.1} parent=1 // pred_region
      %39 = dma.done [#allocation3], 4864
    $region13: #{fwd.1} parent=1 // pred_fallthru
      _
    // Predicated region
    $region14: #{fwd.1} parent=1 // pred_check
      _
    $region15: #{fwd.1} parent=1 // pred_check_branch
      %41 = sbr.rel (0) target = $region17
    $region16: #{fwd.1} parent=1 // pred_region
      %42 = dma.done [#allocation6], 12288
    $region17: #{fwd.1} parent=1 // pred_fallthru
      _
    %v43 = vld [vmem:[#allocation2] sm:$0xf]
    %v44 = vld [vmem:[#allocation2 + $0x8] sm:$0xf]
    %v45 = vld [vmem:[#allocation5 + $0x278] sm:$0xff]
    %v46 = vld [vmem:[#allocation5 + $0x280] sm:$0xff]
    %v47 = vld [vmem:[#allocation5 + $0x288] sm:$0xff]
    %v48 = vld [vmem:[#allocation5 + $0x290] sm:$0x1]
    %v49 = vld [vmem:[#allocation5 + $0x298] sm:$0x1]
    %v50 = vlaneseq
    %v51 = vshrl.u32 %v50, 7
    %v52 = vsub.s32 0, %v51
    %v53 = vrot.slane %v49, %v52
    %vm54 = vcmask 203776
    %v56 = vsel %vm54, %v43, 0
    %vm58 = vcmask 1040384
    %v60 = vsel %vm58, %v48, 0
    %62 = vmatprep.subr.mxu0 0.0
    %63 = vmatpush1.msra.mxu0 0.0
    %64 = vmatprep.subr.mxu0 0.0
    %65 = vmatpush1.msra.mxu0 0.0
    %66 = vmatprep.subr.mxu0 0.0
    %67 = vmatpush1.msra.mxu0 0.0
    %68 = vmatprep.subr.mxu0 0.0
    %69 = vmatpush1.msra.mxu0 0.0
    %70 = vmatprep.subr.mxu0 0.0
    %71 = vmatpush1.msra.mxu0 0.0
    %72 = vmatprep.subr.mxu0 0.0
    %73 = vmatpush1.msra.mxu0 0.0
    %74 = vmatprep.subr.mxu0 0.0
    %75 = vmatpush1.msra.mxu0 0.0
    %76 = vmatprep.subr.mxu0 0.0
    %77 = vmatpush1.msra.mxu0 0.0
    %78 = vmatprep.subr.mxu0 0.0
    %79 = vmatpush1.msra.mxu0 0.0
    %80 = vmatprep.subr.mxu0 0.0
    %81 = vmatpush1.msra.mxu0 0.0
    %82 = vmatprep.subr.mxu0 0.0
    %83 = vmatpush1.msra.mxu0 0.0
    %84 = vmatprep.subr.mxu0 0.0
    %85 = vmatpush1.msra.mxu0 0.0
    %86 = vmatprep.subr.mxu0 0.0
    %87 = vmatpush1.msra.mxu0 %v60
    %88 = vmatprep.subr.mxu0 0.0
    %89 = vmatpush1.msra.mxu0 %v47
    %90 = vmatprep.subr.mxu0 0.0
    %91 = vmatpush1.msra.mxu0 %v46
    %92 = vmatprep.subr.mxu0 0.0
    %93 = vmatpush1.msra.mxu0 %v45
    %94 = vmatprep.subr.mxu0 0.0
    %95 = vmatpush2.msra.mxu0 0.0
    %96 = vmatprep.subr.mxu0 0.0
    %97 = vmatpush2.msra.mxu0 0.0
    %98 = vmatprep.subr.mxu0 0.0
    %99 = vmatpush2.msra.mxu0 0.0
    %100 = vmatprep.subr.mxu0 0.0
    %101 = vmatpush2.msra.mxu0 0.0
    %102 = vmatprep.subr.mxu0 0.0
    %103 = vmatpush2.msra.mxu0 0.0
    %104 = vmatprep.subr.mxu0 0.0
    %105 = vmatpush2.msra.mxu0 0.0
    %106 = vmatprep.subr.mxu0 0.0
    %107 = vmatpush2.msra.mxu0 0.0
    %108 = vmatprep.subr.mxu0 0.0
    %109 = vmatpush2.msra.mxu0 0.0
    %110 = vmatprep.subr.mxu0 0.0
    %111 = vmatpush2.msra.mxu0 0.0
    %112 = vmatprep.subr.mxu0 0.0
    %113 = vmatpush2.msra.mxu0 0.0
    %114 = vmatprep.subr.mxu0 0.0
    %115 = vmatpush2.msra.mxu0 0.0
    %116 = vmatprep.subr.mxu0 0.0
    %117 = vmatpush2.msra.mxu0 0.0
    %118 = vmatprep.subr.mxu0 0.0
    %119 = vmatpush2.msra.mxu0 0.0
    %120 = vmatprep.subr.mxu0 0.0
    %121 = vmatpush2.msra.mxu0 0.0
    %122 = vmatprep.subr.mxu0 0.0
    %123 = vmatpush2.msra.mxu0 0.0
    %124 = vmatprep.subr.mxu0 0.0
    %125 = vmatpush2.msra.mxu0 0.0
    %126 = vmatprep.mubr.f32.mxu0 0.0
    %127 = vmatmul.mubr.f32.gmra.mxu0 %v56
    %v128 = vpop.f32.mrf.mxu0
    %v129 = vadd.f32 %v53, %v128
    %v130 = vpop.f32.mrf.mxu0
    %131 = vdwg.mxu0
    %v132 = vmax.f32 %v129, 0.0
    %v133 = vld [vmem:[#allocation5 + $0x2a0] sm:$0xff]
    %v134 = vld [vmem:[#allocation5 + $0x2a8] sm:$0xff]
    %v135 = vld [vmem:[#allocation5 + $0x2b0] sm:$0xff]
    %v136 = vld [vmem:[#allocation5 + $0x2b8] sm:$0xff]
    %v137 = vld [vmem:[#allocation5 + $0x2c0] sm:$0x1]
    %v138 = vlaneseq
    %v139 = vshrl.u32 %v138, 7
    %v140 = vsub.s32 0, %v139
    %v141 = vrot.slane %v137, %v140
    %vm142 = vcmask 261120
    %v144 = vsel %vm142, %v132, 0
    %146 = vmatprep.subr.mxu0 0.0
    %147 = vmatpush1.msra.mxu0 0.0
    %148 = vmatprep.subr.mxu0 0.0
    %149 = vmatpush1.msra.mxu0 0.0
    %150 = vmatprep.subr.mxu0 0.0
    %151 = vmatpush1.msra.mxu0 0.0
    %152 = vmatprep.subr.mxu0 0.0
    %153 = vmatpush1.msra.mxu0 0.0
    %154 = vmatprep.subr.mxu0 0.0
    %155 = vmatpush1.msra.mxu0 0.0
    %156 = vmatprep.subr.mxu0 0.0
    %157 = vmatpush1.msra.mxu0 0.0
    %158 = vmatprep.subr.mxu0 0.0
    %159 = vmatpush1.msra.mxu0 0.0
    %160 = vmatprep.subr.mxu0 0.0
    %161 = vmatpush1.msra.mxu0 0.0
    %162 = vmatprep.subr.mxu0 0.0
    %163 = vmatpush1.msra.mxu0 0.0
    %164 = vmatprep.subr.mxu0 0.0
    %165 = vmatpush1.msra.mxu0 0.0
    %166 = vmatprep.subr.mxu0 0.0
    %167 = vmatpush1.msra.mxu0 0.0
    %168 = vmatprep.subr.mxu0 0.0
    %169 = vmatpush1.msra.mxu0 0.0
    %170 = vmatprep.subr.mxu0 0.0
    %171 = vmatpush1.msra.mxu0 %v136
    %172 = vmatprep.subr.mxu0 0.0
    %173 = vmatpush1.msra.mxu0 %v135
    %174 = vmatprep.subr.mxu0 0.0
    %175 = vmatpush1.msra.mxu0 %v134
    %176 = vmatprep.subr.mxu0 0.0
    %177 = vmatpush1.msra.mxu0 %v133
    %178 = vmatprep.subr.mxu0 0.0
    %179 = vmatpush2.msra.mxu0 0.0
    %180 = vmatprep.subr.mxu0 0.0
    %181 = vmatpush2.msra.mxu0 0.0
    %182 = vmatprep.subr.mxu0 0.0
    %183 = vmatpush2.msra.mxu0 0.0
    %184 = vmatprep.subr.mxu0 0.0
    %185 = vmatpush2.msra.mxu0 0.0
    %186 = vmatprep.subr.mxu0 0.0
    %187 = vmatpush2.msra.mxu0 0.0
    %188 = vmatprep.subr.mxu0 0.0
    %189 = vmatpush2.msra.mxu0 0.0
    %190 = vmatprep.subr.mxu0 0.0
    %191 = vmatpush2.msra.mxu0 0.0
    %192 = vmatprep.subr.mxu0 0.0
    %193 = vmatpush2.msra.mxu0 0.0
    %194 = vmatprep.subr.mxu0 0.0
    %195 = vmatpush2.msra.mxu0 0.0
    %196 = vmatprep.subr.mxu0 0.0
    %197 = vmatpush2.msra.mxu0 0.0
    %198 = vmatprep.subr.mxu0 0.0
    %199 = vmatpush2.msra.mxu0 0.0
    %200 = vmatprep.subr.mxu0 0.0
    %201 = vmatpush2.msra.mxu0 0.0
    %202 = vmatprep.subr.mxu0 0.0
    %203 = vmatpush2.msra.mxu0 0.0
    %204 = vmatprep.subr.mxu0 0.0
    %205 = vmatpush2.msra.mxu0 0.0
    %206 = vmatprep.subr.mxu0 0.0
    %207 = vmatpush2.msra.mxu0 0.0
    %208 = vmatprep.subr.mxu0 0.0
    %209 = vmatpush2.msra.mxu0 0.0
    %210 = vmatprep.mubr.f32.mxu0 0.0
    %211 = vmatmul.mubr.f32.gmra.mxu0 %v144
    %v212 = vpop.f32.mrf.mxu0
    %v213 = vadd.f32 %v141, %v212
    %v214 = vpop.f32.mrf.mxu0
    %215 = vdwg.mxu0
    %v216 = vmax.f32 %v213, 0.0
    %v217 = vld [vmem:[#allocation5 + $0x2c8] sm:$0xff]
    %v218 = vld [vmem:[#allocation5 + $0x2d0] sm:$0xff]
    %v219 = vld [vmem:[#allocation5 + $0x2d8] sm:$0xff]
    %v220 = vld [vmem:[#allocation5 + $0x2e0] sm:$0xff]
    %v221 = vld [vmem:[#allocation5 + $0x2e8] sm:$0x1]
    %v222 = vlaneseq
    %v223 = vshrl.u32 %v222, 7
    %v224 = vsub.s32 0, %v223
    %v225 = vrot.slane %v221, %v224
    %v227 = vsel %vm142, %v216, 0
    %229 = vmatprep.subr.mxu0 0.0
    %230 = vmatpush1.msra.mxu0 0.0
    %231 = vmatprep.subr.mxu0 0.0
    %232 = vmatpush1.msra.mxu0 0.0
    %233 = vmatprep.subr.mxu0 0.0
    %234 = vmatpush1.msra.mxu0 0.0
    %235 = vmatprep.subr.mxu0 0.0
    %236 = vmatpush1.msra.mxu0 0.0
    %237 = vmatprep.subr.mxu0 0.0
    %238 = vmatpush1.msra.mxu0 0.0
    %239 = vmatprep.subr.mxu0 0.0
    %240 = vmatpush1.msra.mxu0 0.0
    %241 = vmatprep.subr.mxu0 0.0
    %242 = vmatpush1.msra.mxu0 0.0
    %243 = vmatprep.subr.mxu0 0.0
    %244 = vmatpush1.msra.mxu0 0.0
    %245 = vmatprep.subr.mxu0 0.0
    %246 = vmatpush1.msra.mxu0 0.0
    %247 = vmatprep.subr.mxu0 0.0
    %248 = vmatpush1.msra.mxu0 0.0
    %249 = vmatprep.subr.mxu0 0.0
    %250 = vmatpush1.msra.mxu0 0.0
    %251 = vmatprep.subr.mxu0 0.0
    %252 = vmatpush1.msra.mxu0 0.0
    %253 = vmatprep.subr.mxu0 0.0
    %254 = vmatpush1.msra.mxu0 %v220
    %255 = vmatprep.subr.mxu0 0.0
    %256 = vmatpush1.msra.mxu0 %v219
    %257 = vmatprep.subr.mxu0 0.0
    %258 = vmatpush1.msra.mxu0 %v218
    %259 = vmatprep.subr.mxu0 0.0
    %260 = vmatpush1.msra.mxu0 %v217
    %261 = vmatprep.subr.mxu0 0.0
    %262 = vmatpush2.msra.mxu0 0.0
    %263 = vmatprep.subr.mxu0 0.0
    %264 = vmatpush2.msra.mxu0 0.0
    %265 = vmatprep.subr.mxu0 0.0
    %266 = vmatpush2.msra.mxu0 0.0
    %267 = vmatprep.subr.mxu0 0.0
    %268 = vmatpush2.msra.mxu0 0.0
    %269 = vmatprep.subr.mxu0 0.0
    %270 = vmatpush2.msra.mxu0 0.0
    %271 = vmatprep.subr.mxu0 0.0
    %272 = vmatpush2.msra.mxu0 0.0
    %273 = vmatprep.subr.mxu0 0.0
    %274 = vmatpush2.msra.mxu0 0.0
    %275 = vmatprep.subr.mxu0 0.0
    %276 = vmatpush2.msra.mxu0 0.0
    %277 = vmatprep.subr.mxu0 0.0
    %278 = vmatpush2.msra.mxu0 0.0
    %279 = vmatprep.subr.mxu0 0.0
    %280 = vmatpush2.msra.mxu0 0.0
    %281 = vmatprep.subr.mxu0 0.0
    %282 = vmatpush2.msra.mxu0 0.0
    %283 = vmatprep.subr.mxu0 0.0
    %284 = vmatpush2.msra.mxu0 0.0
    %285 = vmatprep.subr.mxu0 0.0
    %286 = vmatpush2.msra.mxu0 0.0
    %287 = vmatprep.subr.mxu0 0.0
    %288 = vmatpush2.msra.mxu0 0.0
    %289 = vmatprep.subr.mxu0 0.0
    %290 = vmatpush2.msra.mxu0 0.0
    %291 = vmatprep.subr.mxu0 0.0
    %292 = vmatpush2.msra.mxu0 0.0
    %293 = vmatprep.mubr.f32.mxu0 0.0
    %294 = vmatmul.mubr.f32.gmra.mxu0 %v227
    %v295 = vpop.f32.mrf.mxu0
    %v296 = vadd.f32 %v225, %v295
    %v297 = vpop.f32.mrf.mxu0
    %298 = vdwg.mxu0
    %v299 = vmul.f32 %v296, 0.5
    %v300 = vmul.f32 %v299, 1.442695
    %v301 = vpow.pop %v300
    %303 = vrot.lane.b32.xlu0 %v301, 120
    %v304 = vpop.permute.xlu0 %303
    %v306 = vmul.f32 %v44, %v304
    %v307 = vadd.f32 %v296, %v306
    %v308 = vld [vmem:[#allocation5 + $0x2f0] sm:$0xff]
    %v309 = vld [vmem:[#allocation5 + $0x2f8] sm:$0x1]
    %v310 = vlaneseq
    %v311 = vshrl.u32 %v310, 7
    %v312 = vsub.s32 0, %v311
    %v313 = vrot.slane %v309, %v312
    %vm314 = vcmask 64512
    %v316 = vsel %vm314, %v307, 0
    %318 = vmatprep.subr.mxu0 0.0
    %319 = vmatpush1.msra.mxu0 0.0
    %320 = vmatprep.subr.mxu0 0.0
    %321 = vmatpush1.msra.mxu0 0.0
    %322 = vmatprep.subr.mxu0 0.0
    %323 = vmatpush1.msra.mxu0 0.0
    %324 = vmatprep.subr.mxu0 0.0
    %325 = vmatpush1.msra.mxu0 0.0
    %326 = vmatprep.subr.mxu0 0.0
    %327 = vmatpush1.msra.mxu0 0.0
    %328 = vmatprep.subr.mxu0 0.0
    %329 = vmatpush1.msra.mxu0 0.0
    %330 = vmatprep.subr.mxu0 0.0
    %331 = vmatpush1.msra.mxu0 0.0
    %332 = vmatprep.subr.mxu0 0.0
    %333 = vmatpush1.msra.mxu0 0.0
    %334 = vmatprep.subr.mxu0 0.0
    %335 = vmatpush1.msra.mxu0 0.0
    %336 = vmatprep.subr.mxu0 0.0
    %337 = vmatpush1.msra.mxu0 0.0
    %338 = vmatprep.subr.mxu0 0.0
    %339 = vmatpush1.msra.mxu0 0.0
    %340 = vmatprep.subr.mxu0 0.0
    %341 = vmatpush1.msra.mxu0 0.0
    %342 = vmatprep.subr.mxu0 0.0
    %343 = vmatpush1.msra.mxu0 0.0
    %344 = vmatprep.subr.mxu0 0.0
    %345 = vmatpush1.msra.mxu0 0.0
    %346 = vmatprep.subr.mxu0 0.0
    %347 = vmatpush1.msra.mxu0 0.0
    %348 = vmatprep.subr.mxu0 0.0
    %349 = vmatpush1.msra.mxu0 %v308
    %350 = vmatprep.subr.mxu0 0.0
    %351 = vmatpush2.msra.mxu0 0.0
    %352 = vmatprep.subr.mxu0 0.0
    %353 = vmatpush2.msra.mxu0 0.0
    %354 = vmatprep.subr.mxu0 0.0
    %355 = vmatpush2.msra.mxu0 0.0
    %356 = vmatprep.subr.mxu0 0.0
    %357 = vmatpush2.msra.mxu0 0.0
    %358 = vmatprep.subr.mxu0 0.0
    %359 = vmatpush2.msra.mxu0 0.0
    %360 = vmatprep.subr.mxu0 0.0
    %361 = vmatpush2.msra.mxu0 0.0
    %362 = vmatprep.subr.mxu0 0.0
    %363 = vmatpush2.msra.mxu0 0.0
    %364 = vmatprep.subr.mxu0 0.0
    %365 = vmatpush2.msra.mxu0 0.0
    %366 = vmatprep.subr.mxu0 0.0
    %367 = vmatpush2.msra.mxu0 0.0
    %368 = vmatprep.subr.mxu0 0.0
    %369 = vmatpush2.msra.mxu0 0.0
    %370 = vmatprep.subr.mxu0 0.0
    %371 = vmatpush2.msra.mxu0 0.0
    %372 = vmatprep.subr.mxu0 0.0
    %373 = vmatpush2.msra.mxu0 0.0
    %374 = vmatprep.subr.mxu0 0.0
    %375 = vmatpush2.msra.mxu0 0.0
    %376 = vmatprep.subr.mxu0 0.0
    %377 = vmatpush2.msra.mxu0 0.0
    %378 = vmatprep.subr.mxu0 0.0
    %379 = vmatpush2.msra.mxu0 0.0
    %380 = vmatprep.subr.mxu0 0.0
    %381 = vmatpush2.msra.mxu0 0.0
    %382 = vmatprep.mubr.f32.mxu0 0.0
    %383 = vmatmul.mubr.f32.gmra.mxu0 %v316
    %v384 = vpop.f32.mrf.mxu0
    %v385 = vadd.f32 %v313, %v384
    %v386 = vpop.f32.mrf.mxu0
    %387 = vdwg.mxu0
    %vm388 = vcmask 60416
    %v389 = vsel %vm388, %v385, -inf
    %390 = vmax.xlane.f32.xlu0 %v389
    %v391 = vpop.xlane.xlu0 %390
    %v392 = vsub.f32 %v385, %v391
    %v393 = vmul.f32 %v392, 1.442695
    %v394 = vpow.pop %v393
    %v395 = vsel %vm388, %v394, 0.0
    %396 = vadd.xlane.f32.xlu0 %v395
    %v397 = vpop.xlane.xlu0 %396
    %v398 = vrcp.pop %v397
    %v399 = vmul.f32 %v394, %v398
    %v400 = vld [vmem:[#allocation5 + $0x250] sm:$0xff]
    %v401 = vld [vmem:[#allocation5 + $0x258] sm:$0xff]
    %v402 = vld [vmem:[#allocation5 + $0x260] sm:$0xff]
    %v403 = vld [vmem:[#allocation5 + $0x268] sm:$0xff]
    %v404 = vld [vmem:[#allocation5 + $0x270] sm:$0x1]
    %v406 = vsel %vm142, %v400, 0
    %v409 = vsel %vm142, %v401, 0
    %v412 = vsel %vm142, %v402, 0
    %v415 = vsel %vm142, %v403, 0
    %v418 = vsel %vm142, %v404, 0
    %420 = vmatprep.subr.mxu0 0.0
    %421 = vmatpush1.xpose.msra.mxu0 0.0
    %422 = vmatprep.subr.mxu0 0.0
    %423 = vmatpush1.xpose.msra.mxu0 0.0
    %424 = vmatprep.subr.mxu0 0.0
    %425 = vmatpush1.xpose.msra.mxu0 0.0
    %426 = vmatprep.subr.mxu0 0.0
    %427 = vmatpush1.xpose.msra.mxu0 0.0
    %428 = vmatprep.subr.mxu0 0.0
    %429 = vmatpush1.xpose.msra.mxu0 0.0
    %430 = vmatprep.subr.mxu0 0.0
    %431 = vmatpush1.xpose.msra.mxu0 0.0
    %432 = vmatprep.subr.mxu0 0.0
    %433 = vmatpush1.xpose.msra.mxu0 0.0
    %434 = vmatprep.subr.mxu0 0.0
    %435 = vmatpush1.xpose.msra.mxu0 0.0
    %436 = vmatprep.subr.mxu0 0.0
    %437 = vmatpush1.xpose.msra.mxu0 0.0
    %438 = vmatprep.subr.mxu0 0.0
    %439 = vmatpush1.xpose.msra.mxu0 0.0
    %440 = vmatprep.subr.mxu0 0.0
    %441 = vmatpush1.xpose.msra.mxu0 0.0
    %442 = vmatprep.subr.mxu0 0.0
    %443 = vmatpush1.xpose.msra.mxu0 0.0
    %444 = vmatprep.subr.mxu0 0.0
    %445 = vmatpush1.xpose.msra.mxu0 %v418
    %446 = vmatprep.subr.mxu0 0.0
    %447 = vmatpush1.xpose.msra.mxu0 %v415
    %448 = vmatprep.subr.mxu0 0.0
    %449 = vmatpush1.xpose.msra.mxu0 %v412
    %450 = vmatprep.subr.mxu0 0.0
    %451 = vmatpush1.xpose.msra.mxu0 %v409
    %452 = vmatprep.subr.mxu0 0.0
    %453 = vmatpush2.xpose.msra.mxu0 0.0
    %454 = vmatprep.subr.mxu0 0.0
    %455 = vmatpush2.xpose.msra.mxu0 0.0
    %456 = vmatprep.subr.mxu0 0.0
    %457 = vmatpush2.xpose.msra.mxu0 0.0
    %458 = vmatprep.subr.mxu0 0.0
    %459 = vmatpush2.xpose.msra.mxu0 0.0
    %460 = vmatprep.subr.mxu0 0.0
    %461 = vmatpush2.xpose.msra.mxu0 0.0
    %462 = vmatprep.subr.mxu0 0.0
    %463 = vmatpush2.xpose.msra.mxu0 0.0
    %464 = vmatprep.subr.mxu0 0.0
    %465 = vmatpush2.xpose.msra.mxu0 0.0
    %466 = vmatprep.subr.mxu0 0.0
    %467 = vmatpush2.xpose.msra.mxu0 0.0
    %468 = vmatprep.subr.mxu0 0.0
    %469 = vmatpush2.xpose.msra.mxu0 0.0
    %470 = vmatprep.subr.mxu0 0.0
    %471 = vmatpush2.xpose.msra.mxu0 0.0
    %472 = vmatprep.subr.mxu0 0.0
    %473 = vmatpush2.xpose.msra.mxu0 0.0
    %474 = vmatprep.subr.mxu0 0.0
    %475 = vmatpush2.xpose.msra.mxu0 0.0
    %476 = vmatprep.subr.mxu0 0.0
    %477 = vmatpush2.xpose.msra.mxu0 0.0
    %478 = vmatprep.subr.mxu0 0.0
    %479 = vmatpush2.xpose.msra.mxu0 0.0
    %480 = vmatprep.subr.mxu0 0.0
    %481 = vmatpush2.xpose.msra.mxu0 0.0
    %482 = vmatprep.subr.mxu0 0.0
    %483 = vmatpush2.xpose.msra.mxu0 0.0
    %484 = vmatprep.mubr.f32.mxu0 0.0
    %485 = vmatmul.mubr.f32.gmra.mxu0 %v406
    %v486 = vpop.f32.mrf.mxu0
    %v487 = vadd.f32 0.0, %v486
    %v488 = vpop.f32.mrf.mxu0
    %489 = vdwg.mxu0
    %v490 = vsel %vm54, %v487, -inf
    %491 = vmax.xlane.f32.xlu0 %v490
    %v492 = vpop.xlane.xlu0 %491
    %v493 = vsub.f32 %v487, %v492
    %v494 = vmul.f32 %v493, 1.442695
    %v495 = vpow.pop %v494
    %v496 = vsel %vm54, %v495, 0.0
    %497 = vadd.xlane.f32.xlu0 %v496
    %v498 = vpop.xlane.xlu0 %497
    %v499 = vrcp.pop %v498
    %v500 = vmul.f32 %v495, %v499
    %v501 = vmul.f32 %v296, %v296
    %v502 = vsub.f32 1.0, %v501
    %v503 = vmul.f32 %v296, 2.0
    %505 = vrot.lane.b32.xlu0 %v503, 120
    %v506 = vpop.permute.xlu0 %505
    %v508 = vadd.f32 %v502, %v506
    %v509 = vmul.f32 %v503, 1.442695
    %v510 = vpow.pop %v509
    %512 = vrot.lane.b32.xlu0 %v510, 120
    %v513 = vpop.permute.xlu0 %512
    %v515 = vsub.f32 %v508, %v513
    %v516 = vsel %vm388, %v515, 0.0
    %517 = vadd.xlane.f32.xlu0 %v516
    %v518 = vpop.xlane.xlu0 %517
    %v519 = vmul.f32 %v518, -0.5
    %v521 = vsel %vm314, %v399, 0
    %523 = vmatprep.subr.mxu0 0.0
    %524 = vmatpush1.msra.mxu0 0.0
    %525 = vmatprep.subr.mxu0 0.0
    %526 = vmatpush1.msra.mxu0 0.0
    %527 = vmatprep.subr.mxu0 0.0
    %528 = vmatpush1.msra.mxu0 0.0
    %529 = vmatprep.subr.mxu0 0.0
    %530 = vmatpush1.msra.mxu0 0.0
    %531 = vmatprep.subr.mxu0 0.0
    %532 = vmatpush1.msra.mxu0 0.0
    %533 = vmatprep.subr.mxu0 0.0
    %534 = vmatpush1.msra.mxu0 0.0
    %535 = vmatprep.subr.mxu0 0.0
    %536 = vmatpush1.msra.mxu0 0.0
    %537 = vmatprep.subr.mxu0 0.0
    %538 = vmatpush1.msra.mxu0 0.0
    %539 = vmatprep.subr.mxu0 0.0
    %540 = vmatpush1.msra.mxu0 0.0
    %541 = vmatprep.subr.mxu0 0.0
    %542 = vmatpush1.msra.mxu0 0.0
    %543 = vmatprep.subr.mxu0 0.0
    %544 = vmatpush1.msra.mxu0 0.0
    %545 = vmatprep.subr.mxu0 0.0
    %546 = vmatpush1.msra.mxu0 0.0
    %547 = vmatprep.subr.mxu0 0.0
    %548 = vmatpush1.msra.mxu0 0.0
    %549 = vmatprep.subr.mxu0 0.0
    %550 = vmatpush1.msra.mxu0 0.0
    %551 = vmatprep.subr.mxu0 0.0
    %552 = vmatpush1.msra.mxu0 0.0
    %553 = vmatprep.subr.mxu0 0.0
    %554 = vmatpush1.msra.mxu0 %v500
    %555 = vmatprep.subr.mxu0 0.0
    %556 = vmatpush2.msra.mxu0 0.0
    %557 = vmatprep.subr.mxu0 0.0
    %558 = vmatpush2.msra.mxu0 0.0
    %559 = vmatprep.subr.mxu0 0.0
    %560 = vmatpush2.msra.mxu0 0.0
    %561 = vmatprep.subr.mxu0 0.0
    %562 = vmatpush2.msra.mxu0 0.0
    %563 = vmatprep.subr.mxu0 0.0
    %564 = vmatpush2.msra.mxu0 0.0
    %565 = vmatprep.subr.mxu0 0.0
    %566 = vmatpush2.msra.mxu0 0.0
    %567 = vmatprep.subr.mxu0 0.0
    %568 = vmatpush2.msra.mxu0 0.0
    %569 = vmatprep.subr.mxu0 0.0
    %570 = vmatpush2.msra.mxu0 0.0
    %571 = vmatprep.subr.mxu0 0.0
    %572 = vmatpush2.msra.mxu0 0.0
    %573 = vmatprep.subr.mxu0 0.0
    %574 = vmatpush2.msra.mxu0 0.0
    %575 = vmatprep.subr.mxu0 0.0
    %576 = vmatpush2.msra.mxu0 0.0
    %577 = vmatprep.subr.mxu0 0.0
    %578 = vmatpush2.msra.mxu0 0.0
    %579 = vmatprep.subr.mxu0 0.0
    %580 = vmatpush2.msra.mxu0 0.0
    %581 = vmatprep.subr.mxu0 0.0
    %582 = vmatpush2.msra.mxu0 0.0
    %583 = vmatprep.subr.mxu0 0.0
    %584 = vmatpush2.msra.mxu0 0.0
    %585 = vmatprep.subr.mxu0 0.0
    %586 = vmatpush2.msra.mxu0 0.0
    %587 = vmatprep.mubr.f32.mxu0 0.0
    %588 = vmatmul.mubr.f32.gmra.mxu0 %v521
    %v589 = vpop.f32.mrf.mxu0
    %v590 = vadd.f32 1e-32, %v589
    %v591 = vpop.f32.mrf.mxu0
    %592 = vdwg.mxu0
    %v593 = vlog2.pop %v590
    %v594 = vmul.f32 %v593, 0.6931472
    %v595 = vmul.f32 %v43, %v594
    %vm596 = vcmask 199680
    %v597 = vsel %vm596, %v595, 0.0
    %598 = vadd.xlane.f32.xlu0 %v597
    %v599 = vpop.xlane.xlu0 %598
    %v600 = vsub.f32 0.0, %v599
    %v601 = vadd.f32 %v600, %v519
    %vm602 = vcmask 1043456
    %v603 = vsel %vm602, %v601, 0.0
    %v604 = vrot.slane %v603, 4
    %v605 = vadd.f32 %v603, %v604
    %v606 = vrot.slane %v605, 2
    %v607 = vadd.f32 %v605, %v606
    %v608 = vrot.slane %v607, 1
    %v609 = vadd.f32 %v607, %v608
    %v610 = vrcp.pop 4.0
    %v611 = vmul.f32 %v609, %v610
    %v612 = vld [vmem:[#allocation2 + $0x10] sm:$0xff]
    %v613 = vld [vmem:[#allocation2 + $0x18] sm:$0xff]
    %v614 = vld [vmem:[#allocation2 + $0x20] sm:$0xff]
    %v615 = vld [vmem:[#allocation2 + $0x28] sm:$0xff]
    %v616 = vld [vmem:[#allocation5] sm:$0xff]
    %v617 = vld [vmem:[#allocation5 + $0x8] sm:$0xff]
    %v618 = vld [vmem:[#allocation5 + $0x10] sm:$0x1f]
    %vm619 = vcmask 171008
    %v621 = vsel %vm619, %v612, 0
    %v624 = vsel %vm619, %v613, 0
    %v627 = vsel %vm619, %v614, 0
    %v630 = vsel %vm619, %v615, 0
    %vm632 = vcmask 1044480
    %v634 = vsel %vm632, %v618, 0
    %636 = vmatprep.subr.mxu0 0.0
    %637 = vmatpush1.msra.mxu0 0.0
    %638 = vmatprep.subr.mxu0 0.0
    %639 = vmatpush1.msra.mxu0 0.0
    %640 = vmatprep.subr.mxu0 0.0
    %641 = vmatpush1.msra.mxu0 0.0
    %642 = vmatprep.subr.mxu0 0.0
    %643 = vmatpush1.msra.mxu0 0.0
    %644 = vmatprep.subr.mxu0 0.0
    %645 = vmatpush1.msra.mxu0 0.0
    %646 = vmatprep.subr.mxu0 0.0
    %647 = vmatpush1.msra.mxu0 0.0
    %648 = vmatprep.subr.mxu0 0.0
    %649 = vmatpush1.msra.mxu0 0.0
    %650 = vmatprep.subr.mxu0 0.0
    %651 = vmatpush1.msra.mxu0 0.0
    %652 = vmatprep.subr.mxu0 0.0
    %653 = vmatpush1.msra.mxu0 0.0
    %654 = vmatprep.subr.mxu0 0.0
    %655 = vmatpush1.msra.mxu0 0.0
    %656 = vmatprep.subr.mxu0 0.0
    %657 = vmatpush1.msra.mxu0 0.0
    %658 = vmatprep.subr.mxu0 0.0
    %659 = vmatpush1.msra.mxu0 0.0
    %660 = vmatprep.subr.mxu0 0.0
    %661 = vmatpush1.msra.mxu0 0.0
    %662 = vmatprep.subr.mxu0 0.0
    %663 = vmatpush1.msra.mxu0 %v634
    %664 = vmatprep.subr.mxu0 0.0
    %665 = vmatpush1.msra.mxu0 %v617
    %666 = vmatprep.subr.mxu0 0.0
    %667 = vmatpush1.msra.mxu0 %v616
    %668 = vmatprep.subr.mxu0 0.0
    %669 = vmatpush2.msra.mxu0 0.0
    %670 = vmatprep.subr.mxu0 0.0
    %671 = vmatpush2.msra.mxu0 0.0
    %672 = vmatprep.subr.mxu0 0.0
    %673 = vmatpush2.msra.mxu0 0.0
    %674 = vmatprep.subr.mxu0 0.0
    %675 = vmatpush2.msra.mxu0 0.0
    %676 = vmatprep.subr.mxu0 0.0
    %677 = vmatpush2.msra.mxu0 0.0
    %678 = vmatprep.subr.mxu0 0.0
    %679 = vmatpush2.msra.mxu0 0.0
    %680 = vmatprep.subr.mxu0 0.0
    %681 = vmatpush2.msra.mxu0 0.0
    %682 = vmatprep.subr.mxu0 0.0
    %683 = vmatpush2.msra.mxu0 0.0
    %684 = vmatprep.subr.mxu0 0.0
    %685 = vmatpush2.msra.mxu0 0.0
    %686 = vmatprep.subr.mxu0 0.0
    %687 = vmatpush2.msra.mxu0 0.0
    %688 = vmatprep.subr.mxu0 0.0
    %689 = vmatpush2.msra.mxu0 0.0
    %690 = vmatprep.subr.mxu0 0.0
    %691 = vmatpush2.msra.mxu0 0.0
    %692 = vmatprep.subr.mxu0 0.0
    %693 = vmatpush2.msra.mxu0 0.0
    %694 = vmatprep.subr.mxu0 0.0
    %695 = vmatpush2.msra.mxu0 0.0
    %696 = vmatprep.subr.mxu0 0.0
    %697 = vmatpush2.msra.mxu0 0.0
    %698 = vmatprep.subr.mxu0 0.0
    %699 = vmatpush2.msra.mxu0 0.0
    %700 = vmatprep.mubr.f32.mxu0 0.0
    %701 = vmatmul.mubr.f32.gmra.mxu0 %v621
    %v702 = vpop.f32.mrf.mxu0
    %v703 = vadd.f32 0.0, %v702
    %v704 = vpop.f32.mrf.mxu0
    %705 = vmatprep.mubr.f32.mxu0 0.0
    %706 = vmatmul.mubr.f32.gmra.mxu0 %v624
    %v707 = vpop.f32.mrf.mxu0
    %v708 = vadd.f32 0.0, %v707
    %v709 = vpop.f32.mrf.mxu0
    %710 = vmatprep.mubr.f32.mxu0 0.0
    %711 = vmatmul.mubr.f32.gmra.mxu0 %v627
    %v712 = vpop.f32.mrf.mxu0
    %v713 = vadd.f32 0.0, %v712
    %v714 = vpop.f32.mrf.mxu0
    %715 = vmatprep.mubr.f32.mxu0 0.0
    %716 = vmatmul.mubr.f32.gmra.mxu0 %v630
    %v717 = vpop.f32.mrf.mxu0
    %v718 = vadd.f32 0.0, %v717
    %v719 = vpop.f32.mrf.mxu0
    %720 = vdwg.mxu0
    %v721 = vld [vmem:[#allocation5 + $0xa0] sm:$0xff]
    %v722 = vld [vmem:[#allocation5 + $0xa8] sm:$0xff]
    %v723 = vld [vmem:[#allocation5 + $0xb0] sm:$0xff]
    %v724 = vld [vmem:[#allocation5 + $0xb8] sm:$0xff]
    %v725 = vld [vmem:[#allocation5 + $0xc0] sm:$0x1]
    %v726 = vlaneseq
    %v727 = vshrl.u32 %v726, 7
    %v728 = vsub.s32 0, %v727
    %v729 = vrot.slane %v725, %v728
    %v731 = vsel %vm142, %v703, 0
    %v734 = vsel %vm142, %v708, 0
    %v737 = vsel %vm142, %v713, 0
    %v740 = vsel %vm142, %v718, 0
    %742 = vmatprep.subr.mxu0 0.0
    %743 = vmatpush1.msra.mxu0 0.0
    %744 = vmatprep.subr.mxu0 0.0
    %745 = vmatpush1.msra.mxu0 0.0
    %746 = vmatprep.subr.mxu0 0.0
    %747 = vmatpush1.msra.mxu0 0.0
    %748 = vmatprep.subr.mxu0 0.0
    %749 = vmatpush1.msra.mxu0 0.0
    %750 = vmatprep.subr.mxu0 0.0
    %751 = vmatpush1.msra.mxu0 0.0
    %752 = vmatprep.subr.mxu0 0.0
    %753 = vmatpush1.msra.mxu0 0.0
    %754 = vmatprep.subr.mxu0 0.0
    %755 = vmatpush1.msra.mxu0 0.0
    %756 = vmatprep.subr.mxu0 0.0
    %757 = vmatpush1.msra.mxu0 0.0
    %758 = vmatprep.subr.mxu0 0.0
    %759 = vmatpush1.msra.mxu0 0.0
    %760 = vmatprep.subr.mxu0 0.0
    %761 = vmatpush1.msra.mxu0 0.0
    %762 = vmatprep.subr.mxu0 0.0
    %763 = vmatpush1.msra.mxu0 0.0
    %764 = vmatprep.subr.mxu0 0.0
    %765 = vmatpush1.msra.mxu0 0.0
    %766 = vmatprep.subr.mxu0 0.0
    %767 = vmatpush1.msra.mxu0 %v724
    %768 = vmatprep.subr.mxu0 0.0
    %769 = vmatpush1.msra.mxu0 %v723
    %770 = vmatprep.subr.mxu0 0.0
    %771 = vmatpush1.msra.mxu0 %v722
    %772 = vmatprep.subr.mxu0 0.0
    %773 = vmatpush1.msra.mxu0 %v721
    %774 = vmatprep.subr.mxu0 0.0
    %775 = vmatpush2.msra.mxu0 0.0
    %776 = vmatprep.subr.mxu0 0.0
    %777 = vmatpush2.msra.mxu0 0.0
    %778 = vmatprep.subr.mxu0 0.0
    %779 = vmatpush2.msra.mxu0 0.0
    %780 = vmatprep.subr.mxu0 0.0
    %781 = vmatpush2.msra.mxu0 0.0
    %782 = vmatprep.subr.mxu0 0.0
    %783 = vmatpush2.msra.mxu0 0.0
    %784 = vmatprep.subr.mxu0 0.0
    %785 = vmatpush2.msra.mxu0 0.0
    %786 = vmatprep.subr.mxu0 0.0
    %787 = vmatpush2.msra.mxu0 0.0
    %788 = vmatprep.subr.mxu0 0.0
    %789 = vmatpush2.msra.mxu0 0.0
    %790 = vmatprep.subr.mxu0 0.0
    %791 = vmatpush2.msra.mxu0 0.0
    %792 = vmatprep.subr.mxu0 0.0
    %793 = vmatpush2.msra.mxu0 0.0
    %794 = vmatprep.subr.mxu0 0.0
    %795 = vmatpush2.msra.mxu0 0.0
    %796 = vmatprep.subr.mxu0 0.0
    %797 = vmatpush2.msra.mxu0 0.0
    %798 = vmatprep.subr.mxu0 0.0
    %799 = vmatpush2.msra.mxu0 0.0
    %800 = vmatprep.subr.mxu0 0.0
    %801 = vmatpush2.msra.mxu0 0.0
    %802 = vmatprep.subr.mxu0 0.0
    %803 = vmatpush2.msra.mxu0 0.0
    %804 = vmatprep.subr.mxu0 0.0
    %805 = vmatpush2.msra.mxu0 0.0
    %806 = vmatprep.mubr.f32.mxu0 0.0
    %807 = vmatmul.mubr.f32.gmra.mxu0 %v731
    %v808 = vpop.f32.mrf.mxu0
    %v809 = vadd.f32 %v729, %v808
    %v810 = vpop.f32.mrf.mxu0
    %811 = vmatprep.mubr.f32.mxu0 0.0
    %812 = vmatmul.mubr.f32.gmra.mxu0 %v734
    %v813 = vpop.f32.mrf.mxu0
    %v814 = vadd.f32 %v729, %v813
    %v815 = vpop.f32.mrf.mxu0
    %816 = vmatprep.mubr.f32.mxu0 0.0
    %817 = vmatmul.mubr.f32.gmra.mxu0 %v737
    %v818 = vpop.f32.mrf.mxu0
    %v819 = vadd.f32 %v729, %v818
    %v820 = vpop.f32.mrf.mxu0
    %821 = vmatprep.mubr.f32.mxu0 0.0
    %822 = vmatmul.mubr.f32.gmra.mxu0 %v740
    %v823 = vpop.f32.mrf.mxu0
    %v824 = vadd.f32 %v729, %v823
    %v825 = vpop.f32.mrf.mxu0
    %826 = vdwg.mxu0
    %v827 = vld [vmem:[#allocation2 + $0x30] sm:$0xff]
    %v828 = vld [vmem:[#allocation2 + $0x38] sm:$0xff]
    %v829 = vld [vmem:[#allocation2 + $0x40] sm:$0xff]
    %v830 = vld [vmem:[#allocation2 + $0x48] sm:$0xff]
    %v831 = vld [vmem:[#allocation5 + $0xc8] sm:$0x1]
    %v832 = vlaneseq
    %v833 = vshrl.u32 %v832, 7
    %v834 = vsub.s32 0, %v833
    %v835 = vrot.slane %v831, %v834
    %v837 = vsel %vm142, %v827, 0
    %v840 = vsel %vm142, %v828, 0
    %v843 = vsel %vm142, %v829, 0
    %v846 = vsel %vm142, %v830, 0
    %848 = vmatprep.subr.mxu0 0.0
    %849 = vmatpush1.msra.mxu0 0.0
    %850 = vmatprep.subr.mxu0 0.0
    %851 = vmatpush1.msra.mxu0 0.0
    %852 = vmatprep.subr.mxu0 0.0
    %853 = vmatpush1.msra.mxu0 0.0
    %854 = vmatprep.subr.mxu0 0.0
    %855 = vmatpush1.msra.mxu0 0.0
    %856 = vmatprep.subr.mxu0 0.0
    %857 = vmatpush1.msra.mxu0 0.0
    %858 = vmatprep.subr.mxu0 0.0
    %859 = vmatpush1.msra.mxu0 0.0
    %860 = vmatprep.subr.mxu0 0.0
    %861 = vmatpush1.msra.mxu0 0.0
    %862 = vmatprep.subr.mxu0 0.0
    %863 = vmatpush1.msra.mxu0 0.0
    %864 = vmatprep.subr.mxu0 0.0
    %865 = vmatpush1.msra.mxu0 0.0
    %866 = vmatprep.subr.mxu0 0.0
    %867 = vmatpush1.msra.mxu0 0.0
    %868 = vmatprep.subr.mxu0 0.0
    %869 = vmatpush1.msra.mxu0 0.0
    %870 = vmatprep.subr.mxu0 0.0
    %871 = vmatpush1.msra.mxu0 0.0
    %872 = vmatprep.subr.mxu0 0.0
    %873 = vmatpush1.msra.mxu0 %v824
    %874 = vmatprep.subr.mxu0 0.0
    %875 = vmatpush1.msra.mxu0 %v819
    %876 = vmatprep.subr.mxu0 0.0
    %877 = vmatpush1.msra.mxu0 %v814
    %878 = vmatprep.subr.mxu0 0.0
    %879 = vmatpush1.msra.mxu0 %v809
    %880 = vmatprep.subr.mxu0 0.0
    %881 = vmatpush2.msra.mxu0 0.0
    %882 = vmatprep.subr.mxu0 0.0
    %883 = vmatpush2.msra.mxu0 0.0
    %884 = vmatprep.subr.mxu0 0.0
    %885 = vmatpush2.msra.mxu0 0.0
    %886 = vmatprep.subr.mxu0 0.0
    %887 = vmatpush2.msra.mxu0 0.0
    %888 = vmatprep.subr.mxu0 0.0
    %889 = vmatpush2.msra.mxu0 0.0
    %890 = vmatprep.subr.mxu0 0.0
    %891 = vmatpush2.msra.mxu0 0.0
    %892 = vmatprep.subr.mxu0 0.0
    %893 = vmatpush2.msra.mxu0 0.0
    %894 = vmatprep.subr.mxu0 0.0
    %895 = vmatpush2.msra.mxu0 0.0
    %896 = vmatprep.subr.mxu0 0.0
    %897 = vmatpush2.msra.mxu0 0.0
    %898 = vmatprep.subr.mxu0 0.0
    %899 = vmatpush2.msra.mxu0 0.0
    %900 = vmatprep.subr.mxu0 0.0
    %901 = vmatpush2.msra.mxu0 0.0
    %902 = vmatprep.subr.mxu0 0.0
    %903 = vmatpush2.msra.mxu0 0.0
    %904 = vmatprep.subr.mxu0 0.0
    %905 = vmatpush2.msra.mxu0 0.0
    %906 = vmatprep.subr.mxu0 0.0
    %907 = vmatpush2.msra.mxu0 0.0
    %908 = vmatprep.subr.mxu0 0.0
    %909 = vmatpush2.msra.mxu0 0.0
    %910 = vmatprep.subr.mxu0 0.0
    %911 = vmatpush2.msra.mxu0 0.0
    %912 = vmatprep.mubr.f32.mxu0 0.0
    %913 = vmatmul.mubr.f32.gmra.mxu0 %v837
    %v914 = vpop.f32.mrf.mxu0
    %v915 = vadd.f32 %v835, %v914
    %v916 = vpop.f32.mrf.mxu0
    %917 = vmatprep.mubr.f32.mxu0 0.0
    %918 = vmatmul.mubr.f32.gmra.mxu0 %v840
    %v919 = vpop.f32.mrf.mxu0
    %v920 = vadd.f32 %v835, %v919
    %v921 = vpop.f32.mrf.mxu0
    %922 = vmatprep.mubr.f32.mxu0 0.0
    %923 = vmatmul.mubr.f32.gmra.mxu0 %v843
    %v924 = vpop.f32.mrf.mxu0
    %v925 = vadd.f32 %v835, %v924
    %v926 = vpop.f32.mrf.mxu0
    %927 = vmatprep.mubr.f32.mxu0 0.0
    %928 = vmatmul.mubr.f32.gmra.mxu0 %v846
    %v929 = vpop.f32.mrf.mxu0
    %v930 = vadd.f32 %v835, %v929
    %v931 = vpop.f32.mrf.mxu0
    %932 = vdwg.mxu0
    %v933 = vld [vmem:[#allocation2 + $0x50] sm:$0xff]
    %v934 = vld [vmem:[#allocation2 + $0x58] sm:$0xff]
    %v935 = vld [vmem:[#allocation2 + $0x60] sm:$0xff]
    %v936 = vld [vmem:[#allocation2 + $0x68] sm:$0xff]
    %v937 = vld [vmem:[#allocation5 + $0xd0] sm:$0x1]
    %v938 = vlaneseq
    %v939 = vshrl.u32 %v938, 7
    %v940 = vsub.s32 0, %v939
    %v941 = vrot.slane %v937, %v940
    %946 = vrot.lane.b32.xlu0 %v809, 96
    %v947 = vpop.permute.xlu0 %946
    %948 = vrot.lane.b32.xlu0 %v814, 96
    %v949 = vpop.permute.xlu0 %948
    %950 = vrot.lane.b32.xlu0 %v819, 96
    %v951 = vpop.permute.xlu0 %950
    %952 = vrot.lane.b32.xlu0 %v824, 96
    %v953 = vpop.permute.xlu0 %952
    %v959 = vsel %vm142, %v933, 0
    %v962 = vsel %vm142, %v934, 0
    %v965 = vsel %vm142, %v935, 0
    %v968 = vsel %vm142, %v936, 0
    %970 = vmatprep.subr.mxu0 0.0
    %971 = vmatpush1.msra.mxu0 0.0
    %972 = vmatprep.subr.mxu0 0.0
    %973 = vmatpush1.msra.mxu0 0.0
    %974 = vmatprep.subr.mxu0 0.0
    %975 = vmatpush1.msra.mxu0 0.0
    %976 = vmatprep.subr.mxu0 0.0
    %977 = vmatpush1.msra.mxu0 0.0
    %978 = vmatprep.subr.mxu0 0.0
    %979 = vmatpush1.msra.mxu0 0.0
    %980 = vmatprep.subr.mxu0 0.0
    %981 = vmatpush1.msra.mxu0 0.0
    %982 = vmatprep.subr.mxu0 0.0
    %983 = vmatpush1.msra.mxu0 0.0
    %984 = vmatprep.subr.mxu0 0.0
    %985 = vmatpush1.msra.mxu0 0.0
    %986 = vmatprep.subr.mxu0 0.0
    %987 = vmatpush1.msra.mxu0 0.0
    %988 = vmatprep.subr.mxu0 0.0
    %989 = vmatpush1.msra.mxu0 0.0
    %990 = vmatprep.subr.mxu0 0.0
    %991 = vmatpush1.msra.mxu0 0.0
    %992 = vmatprep.subr.mxu0 0.0
    %993 = vmatpush1.msra.mxu0 0.0
    %994 = vmatprep.subr.mxu0 0.0
    %995 = vmatpush1.msra.mxu0 %v953
    %996 = vmatprep.subr.mxu0 0.0
    %997 = vmatpush1.msra.mxu0 %v951
    %998 = vmatprep.subr.mxu0 0.0
    %999 = vmatpush1.msra.mxu0 %v949
    %1000 = vmatprep.subr.mxu0 0.0
    %1001 = vmatpush1.msra.mxu0 %v947
    %1002 = vmatprep.subr.mxu0 0.0
    %1003 = vmatpush2.msra.mxu0 0.0
    %1004 = vmatprep.subr.mxu0 0.0
    %1005 = vmatpush2.msra.mxu0 0.0
    %1006 = vmatprep.subr.mxu0 0.0
    %1007 = vmatpush2.msra.mxu0 0.0
    %1008 = vmatprep.subr.mxu0 0.0
    %1009 = vmatpush2.msra.mxu0 0.0
    %1010 = vmatprep.subr.mxu0 0.0
    %1011 = vmatpush2.msra.mxu0 0.0
    %1012 = vmatprep.subr.mxu0 0.0
    %1013 = vmatpush2.msra.mxu0 0.0
    %1014 = vmatprep.subr.mxu0 0.0
    %1015 = vmatpush2.msra.mxu0 0.0
    %1016 = vmatprep.subr.mxu0 0.0
    %1017 = vmatpush2.msra.mxu0 0.0
    %1018 = vmatprep.subr.mxu0 0.0
    %1019 = vmatpush2.msra.mxu0 0.0
    %1020 = vmatprep.subr.mxu0 0.0
    %1021 = vmatpush2.msra.mxu0 0.0
    %1022 = vmatprep.subr.mxu0 0.0
    %1023 = vmatpush2.msra.mxu0 0.0
    %1024 = vmatprep.subr.mxu0 0.0
    %1025 = vmatpush2.msra.mxu0 0.0
    %1026 = vmatprep.subr.mxu0 0.0
    %1027 = vmatpush2.msra.mxu0 0.0
    %1028 = vmatprep.subr.mxu0 0.0
    %1029 = vmatpush2.msra.mxu0 0.0
    %1030 = vmatprep.subr.mxu0 0.0
    %1031 = vmatpush2.msra.mxu0 0.0
    %1032 = vmatprep.subr.mxu0 0.0
    %1033 = vmatpush2.msra.mxu0 0.0
    %1034 = vmatprep.mubr.f32.mxu0 0.0
    %1035 = vmatmul.mubr.f32.gmra.mxu0 %v959
    %v1036 = vpop.f32.mrf.mxu0
    %v1037 = vadd.f32 %v941, %v1036
    %v1038 = vpop.f32.mrf.mxu0
    %1039 = vmatprep.mubr.f32.mxu0 0.0
    %1040 = vmatmul.mubr.f32.gmra.mxu0 %v962
    %v1041 = vpop.f32.mrf.mxu0
    %v1042 = vadd.f32 %v941, %v1041
    %v1043 = vpop.f32.mrf.mxu0
    %1044 = vmatprep.mubr.f32.mxu0 0.0
    %1045 = vmatmul.mubr.f32.gmra.mxu0 %v965
    %v1046 = vpop.f32.mrf.mxu0
    %v1047 = vadd.f32 %v941, %v1046
    %v1048 = vpop.f32.mrf.mxu0
    %1049 = vmatprep.mubr.f32.mxu0 0.0
    %1050 = vmatmul.mubr.f32.gmra.mxu0 %v968
    %v1051 = vpop.f32.mrf.mxu0
    %v1052 = vadd.f32 %v941, %v1051
    %v1053 = vpop.f32.mrf.mxu0
    %1054 = vdwg.mxu0
    %v1055 = vld [vmem:[#allocation5 + $0xd8] sm:$0xff]
    %v1056 = vld [vmem:[#allocation5 + $0xe0] sm:$0xff]
    %v1057 = vld [vmem:[#allocation5 + $0xe8] sm:$0xff]
    %v1058 = vld [vmem:[#allocation5 + $0xf0] sm:$0xff]
    %v1059 = vld [vmem:[#allocation5 + $0xf8] sm:$0xff]
    %v1060 = vld [vmem:[#allocation5 + $0x100] sm:$0xff]
    %v1061 = vld [vmem:[#allocation5 + $0x108] sm:$0xff]
    %v1062 = vld [vmem:[#allocation5 + $0x110] sm:$0xff]
    %v1064 = vsel %vm142, %v1037, 0
    %v1067 = vsel %vm142, %v1042, 0
    %v1070 = vsel %vm142, %v1047, 0
    %v1073 = vsel %vm142, %v1052, 0
    %1075 = vmatprep.subr.mxu0 0.0
    %1076 = vmatpush1.msra.mxu0 0.0
    %1077 = vmatprep.subr.mxu0 0.0
    %1078 = vmatpush1.msra.mxu0 0.0
    %1079 = vmatprep.subr.mxu0 0.0
    %1080 = vmatpush1.msra.mxu0 0.0
    %1081 = vmatprep.subr.mxu0 0.0
    %1082 = vmatpush1.msra.mxu0 0.0
    %1083 = vmatprep.subr.mxu0 0.0
    %1084 = vmatpush1.msra.mxu0 0.0
    %1085 = vmatprep.subr.mxu0 0.0
    %1086 = vmatpush1.msra.mxu0 0.0
    %1087 = vmatprep.subr.mxu0 0.0
    %1088 = vmatpush1.msra.mxu0 0.0
    %1089 = vmatprep.subr.mxu0 0.0
    %1090 = vmatpush1.msra.mxu0 0.0
    %1091 = vmatprep.subr.mxu0 0.0
    %1092 = vmatpush1.msra.mxu0 0.0
    %1093 = vmatprep.subr.mxu0 0.0
    %1094 = vmatpush1.msra.mxu0 0.0
    %1095 = vmatprep.subr.mxu0 0.0
    %1096 = vmatpush1.msra.mxu0 0.0
    %1097 = vmatprep.subr.mxu0 0.0
    %1098 = vmatpush1.msra.mxu0 0.0
    %1099 = vmatprep.subr.mxu0 0.0
    %1100 = vmatpush1.msra.mxu0 %v1062
    %1101 = vmatprep.subr.mxu0 0.0
    %1102 = vmatpush1.msra.mxu0 %v1061
    %1103 = vmatprep.subr.mxu0 0.0
    %1104 = vmatpush1.msra.mxu0 %v1060
    %1105 = vmatprep.subr.mxu0 0.0
    %1106 = vmatpush1.msra.mxu0 %v1059
    %1107 = vmatprep.subr.mxu0 0.0
    %1108 = vmatpush2.msra.mxu0 0.0
    %1109 = vmatprep.subr.mxu0 0.0
    %1110 = vmatpush2.msra.mxu0 0.0
    %1111 = vmatprep.subr.mxu0 0.0
    %1112 = vmatpush2.msra.mxu0 0.0
    %1113 = vmatprep.subr.mxu0 0.0
    %1114 = vmatpush2.msra.mxu0 0.0
    %1115 = vmatprep.subr.mxu0 0.0
    %1116 = vmatpush2.msra.mxu0 0.0
    %1117 = vmatprep.subr.mxu0 0.0
    %1118 = vmatpush2.msra.mxu0 0.0
    %1119 = vmatprep.subr.mxu0 0.0
    %1120 = vmatpush2.msra.mxu0 0.0
    %1121 = vmatprep.subr.mxu0 0.0
    %1122 = vmatpush2.msra.mxu0 0.0
    %1123 = vmatprep.subr.mxu0 0.0
    %1124 = vmatpush2.msra.mxu0 0.0
    %1125 = vmatprep.subr.mxu0 0.0
    %1126 = vmatpush2.msra.mxu0 0.0
    %1127 = vmatprep.subr.mxu0 0.0
    %1128 = vmatpush2.msra.mxu0 0.0
    %1129 = vmatprep.subr.mxu0 0.0
    %1130 = vmatpush2.msra.mxu0 0.0
    %1131 = vmatprep.subr.mxu0 0.0
    %1132 = vmatpush2.msra.mxu0 0.0
    %1133 = vmatprep.subr.mxu0 0.0
    %1134 = vmatpush2.msra.mxu0 0.0
    %1135 = vmatprep.subr.mxu0 0.0
    %1136 = vmatpush2.msra.mxu0 0.0
    %1137 = vmatprep.subr.mxu0 0.0
    %1138 = vmatpush2.msra.mxu0 0.0
    %1139 = vmatprep.mubr.f32.mxu0 0.0
    %1140 = vmatmul.mubr.f32.gmra.mxu0 %v1064
    %v1141 = vpop.f32.mrf.mxu0
    %v1142 = vadd.f32 0.0, %v1141
    %v1143 = vpop.f32.mrf.mxu0
    %1144 = vmatprep.mubr.f32.mxu0 0.0
    %1145 = vmatmul.mubr.f32.gmra.mxu0 %v1067
    %v1146 = vpop.f32.mrf.mxu0
    %v1147 = vadd.f32 0.0, %v1146
    %v1148 = vpop.f32.mrf.mxu0
    %1149 = vmatprep.mubr.f32.mxu0 0.0
    %1150 = vmatmul.mubr.f32.gmra.mxu0 %v1070
    %v1151 = vpop.f32.mrf.mxu0
    %v1152 = vadd.f32 0.0, %v1151
    %v1153 = vpop.f32.mrf.mxu0
    %1154 = vmatprep.mubr.f32.mxu0 0.0
    %1155 = vmatmul.mubr.f32.gmra.mxu0 %v1073
    %v1156 = vpop.f32.mrf.mxu0
    %v1157 = vadd.f32 0.0, %v1156
    %v1158 = vpop.f32.mrf.mxu0
    %1159 = vdwg.mxu0
    %v1161 = vsel %vm142, %v915, 0
    %v1164 = vsel %vm142, %v920, 0
    %v1167 = vsel %vm142, %v925, 0
    %v1170 = vsel %vm142, %v930, 0
    %1172 = vmatprep.subr.mxu0 0.0
    %1173 = vmatpush1.msra.mxu0 0.0
    %1174 = vmatprep.subr.mxu0 0.0
    %1175 = vmatpush1.msra.mxu0 0.0
    %1176 = vmatprep.subr.mxu0 0.0
    %1177 = vmatpush1.msra.mxu0 0.0
    %1178 = vmatprep.subr.mxu0 0.0
    %1179 = vmatpush1.msra.mxu0 0.0
    %1180 = vmatprep.subr.mxu0 0.0
    %1181 = vmatpush1.msra.mxu0 0.0
    %1182 = vmatprep.subr.mxu0 0.0
    %1183 = vmatpush1.msra.mxu0 0.0
    %1184 = vmatprep.subr.mxu0 0.0
    %1185 = vmatpush1.msra.mxu0 0.0
    %1186 = vmatprep.subr.mxu0 0.0
    %1187 = vmatpush1.msra.mxu0 0.0
    %1188 = vmatprep.subr.mxu0 0.0
    %1189 = vmatpush1.msra.mxu0 0.0
    %1190 = vmatprep.subr.mxu0 0.0
    %1191 = vmatpush1.msra.mxu0 0.0
    %1192 = vmatprep.subr.mxu0 0.0
    %1193 = vmatpush1.msra.mxu0 0.0
    %1194 = vmatprep.subr.mxu0 0.0
    %1195 = vmatpush1.msra.mxu0 0.0
    %1196 = vmatprep.subr.mxu0 0.0
    %1197 = vmatpush1.msra.mxu0 %v1058
    %1198 = vmatprep.subr.mxu0 0.0
    %1199 = vmatpush1.msra.mxu0 %v1057
    %1200 = vmatprep.subr.mxu0 0.0
    %1201 = vmatpush1.msra.mxu0 %v1056
    %1202 = vmatprep.subr.mxu0 0.0
    %1203 = vmatpush1.msra.mxu0 %v1055
    %1204 = vmatprep.subr.mxu0 0.0
    %1205 = vmatpush2.msra.mxu0 0.0
    %1206 = vmatprep.subr.mxu0 0.0
    %1207 = vmatpush2.msra.mxu0 0.0
    %1208 = vmatprep.subr.mxu0 0.0
    %1209 = vmatpush2.msra.mxu0 0.0
    %1210 = vmatprep.subr.mxu0 0.0
    %1211 = vmatpush2.msra.mxu0 0.0
    %1212 = vmatprep.subr.mxu0 0.0
    %1213 = vmatpush2.msra.mxu0 0.0
    %1214 = vmatprep.subr.mxu0 0.0
    %1215 = vmatpush2.msra.mxu0 0.0
    %1216 = vmatprep.subr.mxu0 0.0
    %1217 = vmatpush2.msra.mxu0 0.0
    %1218 = vmatprep.subr.mxu0 0.0
    %1219 = vmatpush2.msra.mxu0 0.0
    %1220 = vmatprep.subr.mxu0 0.0
    %1221 = vmatpush2.msra.mxu0 0.0
    %1222 = vmatprep.subr.mxu0 0.0
    %1223 = vmatpush2.msra.mxu0 0.0
    %1224 = vmatprep.subr.mxu0 0.0
    %1225 = vmatpush2.msra.mxu0 0.0
    %1226 = vmatprep.subr.mxu0 0.0
    %1227 = vmatpush2.msra.mxu0 0.0
    %1228 = vmatprep.subr.mxu0 0.0
    %1229 = vmatpush2.msra.mxu0 0.0
    %1230 = vmatprep.subr.mxu0 0.0
    %1231 = vmatpush2.msra.mxu0 0.0
    %1232 = vmatprep.subr.mxu0 0.0
    %1233 = vmatpush2.msra.mxu0 0.0
    %1234 = vmatprep.subr.mxu0 0.0
    %1235 = vmatpush2.msra.mxu0 0.0
    %1236 = vmatprep.mubr.f32.mxu0 0.0
    %1237 = vmatmul.mubr.f32.gmra.mxu0 %v1161
    %v1238 = vpop.f32.mrf.mxu0
    %v1239 = vadd.f32 %v1142, %v1238
    %v1240 = vpop.f32.mrf.mxu0
    %1241 = vmatprep.mubr.f32.mxu0 0.0
    %1242 = vmatmul.mubr.f32.gmra.mxu0 %v1164
    %v1243 = vpop.f32.mrf.mxu0
    %v1244 = vadd.f32 %v1147, %v1243
    %v1245 = vpop.f32.mrf.mxu0
    %1246 = vmatprep.mubr.f32.mxu0 0.0
    %1247 = vmatmul.mubr.f32.gmra.mxu0 %v1167
    %v1248 = vpop.f32.mrf.mxu0
    %v1249 = vadd.f32 %v1152, %v1248
    %v1250 = vpop.f32.mrf.mxu0
    %1251 = vmatprep.mubr.f32.mxu0 0.0
    %1252 = vmatmul.mubr.f32.gmra.mxu0 %v1170
    %v1253 = vpop.f32.mrf.mxu0
    %v1254 = vadd.f32 %v1157, %v1253
    %v1255 = vpop.f32.mrf.mxu0
    %1256 = vdwg.mxu0
    %v1257 = vld [vmem:[#allocation5 + $0x118] sm:$0x1]
    %v1258 = vlaneseq
    %v1259 = vshrl.u32 %v1258, 7
    %v1260 = vsub.s32 0, %v1259
    %v1261 = vrot.slane %v1257, %v1260
    %v1262 = vadd.f32 %v1239, %v1261
    %v1263 = vadd.f32 %v1244, %v1261
    %v1264 = vadd.f32 %v1249, %v1261
    %v1265 = vadd.f32 %v1254, %v1261
    %v1266 = vld [vmem:[#allocation5 + $0x120] sm:$0xff]
    %v1267 = vld [vmem:[#allocation5 + $0x128] sm:$0xff]
    %v1268 = vld [vmem:[#allocation5 + $0x130] sm:$0xff]
    %v1269 = vld [vmem:[#allocation5 + $0x138] sm:$0xff]
    %v1270 = vld [vmem:[#allocation5 + $0x140] sm:$0x1]
    %v1271 = vlaneseq
    %v1272 = vshrl.u32 %v1271, 7
    %v1273 = vsub.s32 0, %v1272
    %v1274 = vrot.slane %v1270, %v1273
    %1275 = vmatprep.subr.mxu0 0.0
    %1276 = vmatpush1.msra.mxu0 0.0
    %1277 = vmatprep.subr.mxu0 0.0
    %1278 = vmatpush1.msra.mxu0 0.0
    %1279 = vmatprep.subr.mxu0 0.0
    %1280 = vmatpush1.msra.mxu0 0.0
    %1281 = vmatprep.subr.mxu0 0.0
    %1282 = vmatpush1.msra.mxu0 0.0
    %1283 = vmatprep.subr.mxu0 0.0
    %1284 = vmatpush1.msra.mxu0 0.0
    %1285 = vmatprep.subr.mxu0 0.0
    %1286 = vmatpush1.msra.mxu0 0.0
    %1287 = vmatprep.subr.mxu0 0.0
    %1288 = vmatpush1.msra.mxu0 0.0
    %1289 = vmatprep.subr.mxu0 0.0
    %1290 = vmatpush1.msra.mxu0 0.0
    %1291 = vmatprep.subr.mxu0 0.0
    %1292 = vmatpush1.msra.mxu0 0.0
    %1293 = vmatprep.subr.mxu0 0.0
    %1294 = vmatpush1.msra.mxu0 0.0
    %1295 = vmatprep.subr.mxu0 0.0
    %1296 = vmatpush1.msra.mxu0 0.0
    %1297 = vmatprep.subr.mxu0 0.0
    %1298 = vmatpush1.msra.mxu0 0.0
    %1299 = vmatprep.subr.mxu0 0.0
    %1300 = vmatpush1.msra.mxu0 %v1269
    %1301 = vmatprep.subr.mxu0 0.0
    %1302 = vmatpush1.msra.mxu0 %v1268
    %1303 = vmatprep.subr.mxu0 0.0
    %1304 = vmatpush1.msra.mxu0 %v1267
    %1305 = vmatprep.subr.mxu0 0.0
    %1306 = vmatpush1.msra.mxu0 %v1266
    %1307 = vmatprep.subr.mxu0 0.0
    %1308 = vmatpush2.msra.mxu0 0.0
    %1309 = vmatprep.subr.mxu0 0.0
    %1310 = vmatpush2.msra.mxu0 0.0
    %1311 = vmatprep.subr.mxu0 0.0
    %1312 = vmatpush2.msra.mxu0 0.0
    %1313 = vmatprep.subr.mxu0 0.0
    %1314 = vmatpush2.msra.mxu0 0.0
    %1315 = vmatprep.subr.mxu0 0.0
    %1316 = vmatpush2.msra.mxu0 0.0
    %1317 = vmatprep.subr.mxu0 0.0
    %1318 = vmatpush2.msra.mxu0 0.0
    %1319 = vmatprep.subr.mxu0 0.0
    %1320 = vmatpush2.msra.mxu0 0.0
    %1321 = vmatprep.subr.mxu0 0.0
    %1322 = vmatpush2.msra.mxu0 0.0
    %1323 = vmatprep.subr.mxu0 0.0
    %1324 = vmatpush2.msra.mxu0 0.0
    %1325 = vmatprep.subr.mxu0 0.0
    %1326 = vmatpush2.msra.mxu0 0.0
    %1327 = vmatprep.subr.mxu0 0.0
    %1328 = vmatpush2.msra.mxu0 0.0
    %1329 = vmatprep.subr.mxu0 0.0
    %1330 = vmatpush2.msra.mxu0 0.0
    %1331 = vmatprep.subr.mxu0 0.0
    %1332 = vmatpush2.msra.mxu0 0.0
    %1333 = vmatprep.subr.mxu0 0.0
    %1334 = vmatpush2.msra.mxu0 0.0
    %1335 = vmatprep.subr.mxu0 0.0
    %1336 = vmatpush2.msra.mxu0 0.0
    %1337 = vmatprep.subr.mxu0 0.0
    %1338 = vmatpush2.msra.mxu0 0.0
    %1339 = vmatprep.mubr.f32.mxu0 0.0
    %1340 = vmatmul.mubr.f32.gmra.mxu0 %v731
    %v1341 = vpop.f32.mrf.mxu0
    %v1342 = vadd.f32 %v1274, %v1341
    %v1343 = vpop.f32.mrf.mxu0
    %1344 = vmatprep.mubr.f32.mxu0 0.0
    %1345 = vmatmul.mubr.f32.gmra.mxu0 %v734
    %v1346 = vpop.f32.mrf.mxu0
    %v1347 = vadd.f32 %v1274, %v1346
    %v1348 = vpop.f32.mrf.mxu0
    %1349 = vmatprep.mubr.f32.mxu0 0.0
    %1350 = vmatmul.mubr.f32.gmra.mxu0 %v737
    %v1351 = vpop.f32.mrf.mxu0
    %v1352 = vadd.f32 %v1274, %v1351
    %v1353 = vpop.f32.mrf.mxu0
    %1354 = vmatprep.mubr.f32.mxu0 0.0
    %1355 = vmatmul.mubr.f32.gmra.mxu0 %v740
    %v1356 = vpop.f32.mrf.mxu0
    %v1357 = vadd.f32 %v1274, %v1356
    %v1358 = vpop.f32.mrf.mxu0
    %1359 = vdwg.mxu0
    %v1360 = vadd.f32 %v1262, %v1342
    %v1361 = vadd.f32 %v1263, %v1347
    %v1362 = vadd.f32 %v1264, %v1352
    %v1363 = vadd.f32 %v1265, %v1357
    %v1364 = vxor.u32 %v1360, 2147483648
    %v1365 = vxor.u32 %v1361, 2147483648
    %v1366 = vxor.u32 %v1362, 2147483648
    %v1367 = vxor.u32 %v1363, 2147483648
    %v1368 = vmul.f32 %v1364, 1.442695
    %v1369 = vpow.pop %v1368
    %v1370 = vmul.f32 %v1365, 1.442695
    %v1371 = vpow.pop %v1370
    %v1372 = vmul.f32 %v1366, 1.442695
    %v1373 = vpow.pop %v1372
    %v1374 = vmul.f32 %v1367, 1.442695
    %v1375 = vpow.pop %v1374
    %v1376 = vadd.f32 %v1369, 1.0
    %v1377 = vadd.f32 %v1371, 1.0
    %v1378 = vadd.f32 %v1373, 1.0
    %v1379 = vadd.f32 %v1375, 1.0
    %v1380 = vrcp.pop %v1376
    %v1381 = vmul.f32 1.0, %v1380
    %v1382 = vrcp.pop %v1377
    %v1383 = vmul.f32 1.0, %v1382
    %v1384 = vrcp.pop %v1378
    %v1385 = vmul.f32 1.0, %v1384
    %v1386 = vrcp.pop %v1379
    %v1387 = vmul.f32 1.0, %v1386
    %1392 = vrot.lane.b32.xlu0 %v1342, 64
    %v1393 = vpop.permute.xlu0 %1392
    %1394 = vrot.lane.b32.xlu0 %v1347, 64
    %v1395 = vpop.permute.xlu0 %1394
    %1396 = vrot.lane.b32.xlu0 %v1352, 64
    %v1397 = vpop.permute.xlu0 %1396
    %1398 = vrot.lane.b32.xlu0 %v1357, 64
    %v1399 = vpop.permute.xlu0 %1398
    %v1404 = vmul.f32 %v1381, %v1393
    %v1405 = vmul.f32 %v1383, %v1395
    %v1406 = vmul.f32 %v1385, %v1397
    %v1407 = vmul.f32 %v1387, %v1399
    %1412 = vrot.lane.b32.xlu0 %v1404, 64
    %v1413 = vpop.permute.xlu0 %1412
    %1414 = vrot.lane.b32.xlu0 %v1405, 64
    %v1415 = vpop.permute.xlu0 %1414
    %1416 = vrot.lane.b32.xlu0 %v1406, 64
    %v1417 = vpop.permute.xlu0 %1416
    %1418 = vrot.lane.b32.xlu0 %v1407, 64
    %v1419 = vpop.permute.xlu0 %1418
    %v1424 = vadd.f32 %v1262, %v1413
    %v1425 = vadd.f32 %v1263, %v1415
    %v1426 = vadd.f32 %v1264, %v1417
    %v1427 = vadd.f32 %v1265, %v1419
    %v1428 = vtanh.pop %v1424
    %v1429 = vtanh.pop %v1425
    %v1430 = vtanh.pop %v1426
    %v1431 = vtanh.pop %v1427
    %1436 = vrot.lane.b32.xlu0 %v1428, 64
    %v1437 = vpop.permute.xlu0 %1436
    %1438 = vrot.lane.b32.xlu0 %v1429, 64
    %v1439 = vpop.permute.xlu0 %1438
    %1440 = vrot.lane.b32.xlu0 %v1430, 64
    %v1441 = vpop.permute.xlu0 %1440
    %1442 = vrot.lane.b32.xlu0 %v1431, 64
    %v1443 = vpop.permute.xlu0 %1442
    %v1448 = vsub.f32 %v703, %v1437
    %v1449 = vsub.f32 %v708, %v1439
    %v1450 = vsub.f32 %v713, %v1441
    %v1451 = vsub.f32 %v718, %v1443
    %1456 = vrot.lane.b32.xlu0 %v1448, 32
    %v1457 = vpop.permute.xlu0 %1456
    %1458 = vrot.lane.b32.xlu0 %v1449, 32
    %v1459 = vpop.permute.xlu0 %1458
    %1460 = vrot.lane.b32.xlu0 %v1450, 32
    %v1461 = vpop.permute.xlu0 %1460
    %1462 = vrot.lane.b32.xlu0 %v1451, 32
    %v1463 = vpop.permute.xlu0 %1462
    %v1468 = vmul.f32 %v1381, %v1457
    %v1469 = vmul.f32 %v1383, %v1459
    %v1470 = vmul.f32 %v1385, %v1461
    %v1471 = vmul.f32 %v1387, %v1463
    %1476 = vrot.lane.b32.xlu0 %v1468, 32
    %v1477 = vpop.permute.xlu0 %1476
    %1478 = vrot.lane.b32.xlu0 %v1469, 32
    %v1479 = vpop.permute.xlu0 %1478
    %1480 = vrot.lane.b32.xlu0 %v1470, 32
    %v1481 = vpop.permute.xlu0 %1480
    %1482 = vrot.lane.b32.xlu0 %v1471, 32
    %v1483 = vpop.permute.xlu0 %1482
    %v1488 = vadd.f32 %v1428, %v1477
    %v1489 = vadd.f32 %v1429, %v1479
    %v1490 = vadd.f32 %v1430, %v1481
    %v1491 = vadd.f32 %v1431, %v1483
    %v1492 = vld [vmem:[#allocation2 + $0x70] sm:$0xff]
    %v1493 = vld [vmem:[#allocation2 + $0x78] sm:$0xff]
    %v1494 = vld [vmem:[#allocation2 + $0x80] sm:$0xff]
    %v1495 = vld [vmem:[#allocation2 + $0x88] sm:$0xff]
    %1500 = vrot.lane.b32.xlu0 %v1488, 64
    %v1501 = vpop.permute.xlu0 %1500
    %1502 = vrot.lane.b32.xlu0 %v1489, 64
    %v1503 = vpop.permute.xlu0 %1502
    %1504 = vrot.lane.b32.xlu0 %v1490, 64
    %v1505 = vpop.permute.xlu0 %1504
    %1506 = vrot.lane.b32.xlu0 %v1491, 64
    %v1507 = vpop.permute.xlu0 %1506
    %v1513 = vsel %vm142, %v1492, 0
    %v1516 = vsel %vm142, %v1493, 0
    %v1519 = vsel %vm142, %v1494, 0
    %v1522 = vsel %vm142, %v1495, 0
    %1524 = vmatprep.subr.mxu0 0.0
    %1525 = vmatpush1.msra.mxu0 0.0
    %1526 = vmatprep.subr.mxu0 0.0
    %1527 = vmatpush1.msra.mxu0 0.0
    %1528 = vmatprep.subr.mxu0 0.0
    %1529 = vmatpush1.msra.mxu0 0.0
    %1530 = vmatprep.subr.mxu0 0.0
    %1531 = vmatpush1.msra.mxu0 0.0
    %1532 = vmatprep.subr.mxu0 0.0
    %1533 = vmatpush1.msra.mxu0 0.0
    %1534 = vmatprep.subr.mxu0 0.0
    %1535 = vmatpush1.msra.mxu0 0.0
    %1536 = vmatprep.subr.mxu0 0.0
    %1537 = vmatpush1.msra.mxu0 0.0
    %1538 = vmatprep.subr.mxu0 0.0
    %1539 = vmatpush1.msra.mxu0 0.0
    %1540 = vmatprep.subr.mxu0 0.0
    %1541 = vmatpush1.msra.mxu0 0.0
    %1542 = vmatprep.subr.mxu0 0.0
    %1543 = vmatpush1.msra.mxu0 0.0
    %1544 = vmatprep.subr.mxu0 0.0
    %1545 = vmatpush1.msra.mxu0 0.0
    %1546 = vmatprep.subr.mxu0 0.0
    %1547 = vmatpush1.msra.mxu0 0.0
    %1548 = vmatprep.subr.mxu0 0.0
    %1549 = vmatpush1.msra.mxu0 %v1507
    %1550 = vmatprep.subr.mxu0 0.0
    %1551 = vmatpush1.msra.mxu0 %v1505
    %1552 = vmatprep.subr.mxu0 0.0
    %1553 = vmatpush1.msra.mxu0 %v1503
    %1554 = vmatprep.subr.mxu0 0.0
    %1555 = vmatpush1.msra.mxu0 %v1501
    %1556 = vmatprep.subr.mxu0 0.0
    %1557 = vmatpush2.msra.mxu0 0.0
    %1558 = vmatprep.subr.mxu0 0.0
    %1559 = vmatpush2.msra.mxu0 0.0
    %1560 = vmatprep.subr.mxu0 0.0
    %1561 = vmatpush2.msra.mxu0 0.0
    %1562 = vmatprep.subr.mxu0 0.0
    %1563 = vmatpush2.msra.mxu0 0.0
    %1564 = vmatprep.subr.mxu0 0.0
    %1565 = vmatpush2.msra.mxu0 0.0
    %1566 = vmatprep.subr.mxu0 0.0
    %1567 = vmatpush2.msra.mxu0 0.0
    %1568 = vmatprep.subr.mxu0 0.0
    %1569 = vmatpush2.msra.mxu0 0.0
    %1570 = vmatprep.subr.mxu0 0.0
    %1571 = vmatpush2.msra.mxu0 0.0
    %1572 = vmatprep.subr.mxu0 0.0
    %1573 = vmatpush2.msra.mxu0 0.0
    %1574 = vmatprep.subr.mxu0 0.0
    %1575 = vmatpush2.msra.mxu0 0.0
    %1576 = vmatprep.subr.mxu0 0.0
    %1577 = vmatpush2.msra.mxu0 0.0
    %1578 = vmatprep.subr.mxu0 0.0
    %1579 = vmatpush2.msra.mxu0 0.0
    %1580 = vmatprep.subr.mxu0 0.0
    %1581 = vmatpush2.msra.mxu0 0.0
    %1582 = vmatprep.subr.mxu0 0.0
    %1583 = vmatpush2.msra.mxu0 0.0
    %1584 = vmatprep.subr.mxu0 0.0
    %1585 = vmatpush2.msra.mxu0 0.0
    %1586 = vmatprep.subr.mxu0 0.0
    %1587 = vmatpush2.msra.mxu0 0.0
    %1588 = vmatprep.mubr.f32.mxu0 0.0
    %1589 = vmatmul.mubr.f32.gmra.mxu0 %v1513
    %v1590 = vpop.f32.mrf.mxu0
    %v1591 = vadd.f32 0.0, %v1590
    %v1592 = vpop.f32.mrf.mxu0
    %1593 = vmatprep.mubr.f32.mxu0 0.0
    %1594 = vmatmul.mubr.f32.gmra.mxu0 %v1516
    %v1595 = vpop.f32.mrf.mxu0
    %v1596 = vadd.f32 0.0, %v1595
    %v1597 = vpop.f32.mrf.mxu0
    %1598 = vmatprep.mubr.f32.mxu0 0.0
    %1599 = vmatmul.mubr.f32.gmra.mxu0 %v1519
    %v1600 = vpop.f32.mrf.mxu0
    %v1601 = vadd.f32 0.0, %v1600
    %v1602 = vpop.f32.mrf.mxu0
    %1603 = vmatprep.mubr.f32.mxu0 0.0
    %1604 = vmatmul.mubr.f32.gmra.mxu0 %v1522
    %v1605 = vpop.f32.mrf.mxu0
    %v1606 = vadd.f32 0.0, %v1605
    %v1607 = vpop.f32.mrf.mxu0
    %1608 = vdwg.mxu0
    %v1609 = vld [vmem:[#allocation5 + $0x148] sm:$0xff]
    %v1610 = vld [vmem:[#allocation5 + $0x150] sm:$0xff]
    %v1611 = vld [vmem:[#allocation5 + $0x158] sm:$0xff]
    %v1612 = vld [vmem:[#allocation5 + $0x160] sm:$0xff]
    %v1613 = vld [vmem:[#allocation5 + $0x168] sm:$0x1]
    %v1614 = vlaneseq
    %v1615 = vshrl.u32 %v1614, 7
    %v1616 = vsub.s32 0, %v1615
    %v1617 = vrot.slane %v1613, %v1616
    %v1619 = vsel %vm142, %v1591, 0
    %v1622 = vsel %vm142, %v1596, 0
    %v1625 = vsel %vm142, %v1601, 0
    %v1628 = vsel %vm142, %v1606, 0
    %1630 = vmatprep.subr.mxu0 0.0
    %1631 = vmatpush1.msra.mxu0 0.0
    %1632 = vmatprep.subr.mxu0 0.0
    %1633 = vmatpush1.msra.mxu0 0.0
    %1634 = vmatprep.subr.mxu0 0.0
    %1635 = vmatpush1.msra.mxu0 0.0
    %1636 = vmatprep.subr.mxu0 0.0
    %1637 = vmatpush1.msra.mxu0 0.0
    %1638 = vmatprep.subr.mxu0 0.0
    %1639 = vmatpush1.msra.mxu0 0.0
    %1640 = vmatprep.subr.mxu0 0.0
    %1641 = vmatpush1.msra.mxu0 0.0
    %1642 = vmatprep.subr.mxu0 0.0
    %1643 = vmatpush1.msra.mxu0 0.0
    %1644 = vmatprep.subr.mxu0 0.0
    %1645 = vmatpush1.msra.mxu0 0.0
    %1646 = vmatprep.subr.mxu0 0.0
    %1647 = vmatpush1.msra.mxu0 0.0
    %1648 = vmatprep.subr.mxu0 0.0
    %1649 = vmatpush1.msra.mxu0 0.0
    %1650 = vmatprep.subr.mxu0 0.0
    %1651 = vmatpush1.msra.mxu0 0.0
    %1652 = vmatprep.subr.mxu0 0.0
    %1653 = vmatpush1.msra.mxu0 0.0
    %1654 = vmatprep.subr.mxu0 0.0
    %1655 = vmatpush1.msra.mxu0 %v1612
    %1656 = vmatprep.subr.mxu0 0.0
    %1657 = vmatpush1.msra.mxu0 %v1611
    %1658 = vmatprep.subr.mxu0 0.0
    %1659 = vmatpush1.msra.mxu0 %v1610
    %1660 = vmatprep.subr.mxu0 0.0
    %1661 = vmatpush1.msra.mxu0 %v1609
    %1662 = vmatprep.subr.mxu0 0.0
    %1663 = vmatpush2.msra.mxu0 0.0
    %1664 = vmatprep.subr.mxu0 0.0
    %1665 = vmatpush2.msra.mxu0 0.0
    %1666 = vmatprep.subr.mxu0 0.0
    %1667 = vmatpush2.msra.mxu0 0.0
    %1668 = vmatprep.subr.mxu0 0.0
    %1669 = vmatpush2.msra.mxu0 0.0
    %1670 = vmatprep.subr.mxu0 0.0
    %1671 = vmatpush2.msra.mxu0 0.0
    %1672 = vmatprep.subr.mxu0 0.0
    %1673 = vmatpush2.msra.mxu0 0.0
    %1674 = vmatprep.subr.mxu0 0.0
    %1675 = vmatpush2.msra.mxu0 0.0
    %1676 = vmatprep.subr.mxu0 0.0
    %1677 = vmatpush2.msra.mxu0 0.0
    %1678 = vmatprep.subr.mxu0 0.0
    %1679 = vmatpush2.msra.mxu0 0.0
    %1680 = vmatprep.subr.mxu0 0.0
    %1681 = vmatpush2.msra.mxu0 0.0
    %1682 = vmatprep.subr.mxu0 0.0
    %1683 = vmatpush2.msra.mxu0 0.0
    %1684 = vmatprep.subr.mxu0 0.0
    %1685 = vmatpush2.msra.mxu0 0.0
    %1686 = vmatprep.subr.mxu0 0.0
    %1687 = vmatpush2.msra.mxu0 0.0
    %1688 = vmatprep.subr.mxu0 0.0
    %1689 = vmatpush2.msra.mxu0 0.0
    %1690 = vmatprep.subr.mxu0 0.0
    %1691 = vmatpush2.msra.mxu0 0.0
    %1692 = vmatprep.subr.mxu0 0.0
    %1693 = vmatpush2.msra.mxu0 0.0
    %1694 = vmatprep.mubr.f32.mxu0 0.0
    %1695 = vmatmul.mubr.f32.gmra.mxu0 %v1619
    %v1696 = vpop.f32.mrf.mxu0
    %v1697 = vadd.f32 %v1617, %v1696
    %v1698 = vpop.f32.mrf.mxu0
    %1699 = vmatprep.mubr.f32.mxu0 0.0
    %1700 = vmatmul.mubr.f32.gmra.mxu0 %v1622
    %v1701 = vpop.f32.mrf.mxu0
    %v1702 = vadd.f32 %v1617, %v1701
    %v1703 = vpop.f32.mrf.mxu0
    %1704 = vmatprep.mubr.f32.mxu0 0.0
    %1705 = vmatmul.mubr.f32.gmra.mxu0 %v1625
    %v1706 = vpop.f32.mrf.mxu0
    %v1707 = vadd.f32 %v1617, %v1706
    %v1708 = vpop.f32.mrf.mxu0
    %1709 = vmatprep.mubr.f32.mxu0 0.0
    %1710 = vmatmul.mubr.f32.gmra.mxu0 %v1628
    %v1711 = vpop.f32.mrf.mxu0
    %v1712 = vadd.f32 %v1617, %v1711
    %v1713 = vpop.f32.mrf.mxu0
    %1714 = vdwg.mxu0
    %v1715 = vxor.u32 %v1697, 2147483648
    %v1716 = vxor.u32 %v1702, 2147483648
    %v1717 = vxor.u32 %v1707, 2147483648
    %v1718 = vxor.u32 %v1712, 2147483648
    %v1719 = vmul.f32 %v1715, 1.442695
    %v1720 = vpow.pop %v1719
    %v1721 = vmul.f32 %v1716, 1.442695
    %v1722 = vpow.pop %v1721
    %v1723 = vmul.f32 %v1717, 1.442695
    %v1724 = vpow.pop %v1723
    %v1725 = vmul.f32 %v1718, 1.442695
    %v1726 = vpow.pop %v1725
    %v1727 = vadd.f32 %v1720, 1.0
    %v1728 = vadd.f32 %v1722, 1.0
    %v1729 = vadd.f32 %v1724, 1.0
    %v1730 = vadd.f32 %v1726, 1.0
    %v1731 = vrcp.pop %v1727
    %v1732 = vmul.f32 1.0, %v1731
    %v1733 = vrcp.pop %v1728
    %v1734 = vmul.f32 1.0, %v1733
    %v1735 = vrcp.pop %v1729
    %v1736 = vmul.f32 1.0, %v1735
    %v1737 = vrcp.pop %v1730
    %v1738 = vmul.f32 1.0, %v1737
    %v1739 = vld [vmem:[#allocation5 + $0x170] sm:$0xff]
    %v1740 = vld [vmem:[#allocation5 + $0x178] sm:$0xff]
    %v1741 = vld [vmem:[#allocation5 + $0x180] sm:$0xff]
    %v1742 = vld [vmem:[#allocation5 + $0x188] sm:$0xff]
    %v1743 = vld [vmem:[#allocation5 + $0x190] sm:$0x1]
    %v1744 = vlaneseq
    %v1745 = vshrl.u32 %v1744, 7
    %v1746 = vsub.s32 0, %v1745
    %v1747 = vrot.slane %v1743, %v1746
    %v1749 = vsel %vm142, %v1732, 0
    %v1752 = vsel %vm142, %v1734, 0
    %v1755 = vsel %vm142, %v1736, 0
    %v1758 = vsel %vm142, %v1738, 0
    %1760 = vmatprep.subr.mxu0 0.0
    %1761 = vmatpush1.msra.mxu0 0.0
    %1762 = vmatprep.subr.mxu0 0.0
    %1763 = vmatpush1.msra.mxu0 0.0
    %1764 = vmatprep.subr.mxu0 0.0
    %1765 = vmatpush1.msra.mxu0 0.0
    %1766 = vmatprep.subr.mxu0 0.0
    %1767 = vmatpush1.msra.mxu0 0.0
    %1768 = vmatprep.subr.mxu0 0.0
    %1769 = vmatpush1.msra.mxu0 0.0
    %1770 = vmatprep.subr.mxu0 0.0
    %1771 = vmatpush1.msra.mxu0 0.0
    %1772 = vmatprep.subr.mxu0 0.0
    %1773 = vmatpush1.msra.mxu0 0.0
    %1774 = vmatprep.subr.mxu0 0.0
    %1775 = vmatpush1.msra.mxu0 0.0
    %1776 = vmatprep.subr.mxu0 0.0
    %1777 = vmatpush1.msra.mxu0 0.0
    %1778 = vmatprep.subr.mxu0 0.0
    %1779 = vmatpush1.msra.mxu0 0.0
    %1780 = vmatprep.subr.mxu0 0.0
    %1781 = vmatpush1.msra.mxu0 0.0
    %1782 = vmatprep.subr.mxu0 0.0
    %1783 = vmatpush1.msra.mxu0 0.0
    %1784 = vmatprep.subr.mxu0 0.0
    %1785 = vmatpush1.msra.mxu0 %v1742
    %1786 = vmatprep.subr.mxu0 0.0
    %1787 = vmatpush1.msra.mxu0 %v1741
    %1788 = vmatprep.subr.mxu0 0.0
    %1789 = vmatpush1.msra.mxu0 %v1740
    %1790 = vmatprep.subr.mxu0 0.0
    %1791 = vmatpush1.msra.mxu0 %v1739
    %1792 = vmatprep.subr.mxu0 0.0
    %1793 = vmatpush2.msra.mxu0 0.0
    %1794 = vmatprep.subr.mxu0 0.0
    %1795 = vmatpush2.msra.mxu0 0.0
    %1796 = vmatprep.subr.mxu0 0.0
    %1797 = vmatpush2.msra.mxu0 0.0
    %1798 = vmatprep.subr.mxu0 0.0
    %1799 = vmatpush2.msra.mxu0 0.0
    %1800 = vmatprep.subr.mxu0 0.0
    %1801 = vmatpush2.msra.mxu0 0.0
    %1802 = vmatprep.subr.mxu0 0.0
    %1803 = vmatpush2.msra.mxu0 0.0
    %1804 = vmatprep.subr.mxu0 0.0
    %1805 = vmatpush2.msra.mxu0 0.0
    %1806 = vmatprep.subr.mxu0 0.0
    %1807 = vmatpush2.msra.mxu0 0.0
    %1808 = vmatprep.subr.mxu0 0.0
    %1809 = vmatpush2.msra.mxu0 0.0
    %1810 = vmatprep.subr.mxu0 0.0
    %1811 = vmatpush2.msra.mxu0 0.0
    %1812 = vmatprep.subr.mxu0 0.0
    %1813 = vmatpush2.msra.mxu0 0.0
    %1814 = vmatprep.subr.mxu0 0.0
    %1815 = vmatpush2.msra.mxu0 0.0
    %1816 = vmatprep.subr.mxu0 0.0
    %1817 = vmatpush2.msra.mxu0 0.0
    %1818 = vmatprep.subr.mxu0 0.0
    %1819 = vmatpush2.msra.mxu0 0.0
    %1820 = vmatprep.subr.mxu0 0.0
    %1821 = vmatpush2.msra.mxu0 0.0
    %1822 = vmatprep.subr.mxu0 0.0
    %1823 = vmatpush2.msra.mxu0 0.0
    %1824 = vmatprep.mubr.f32.mxu0 0.0
    %1825 = vmatmul.mubr.f32.gmra.mxu0 %v1749
    %v1826 = vpop.f32.mrf.mxu0
    %v1827 = vadd.f32 %v1747, %v1826
    %v1828 = vpop.f32.mrf.mxu0
    %1829 = vmatprep.mubr.f32.mxu0 0.0
    %1830 = vmatmul.mubr.f32.gmra.mxu0 %v1752
    %v1831 = vpop.f32.mrf.mxu0
    %v1832 = vadd.f32 %v1747, %v1831
    %v1833 = vpop.f32.mrf.mxu0
    %1834 = vmatprep.mubr.f32.mxu0 0.0
    %1835 = vmatmul.mubr.f32.gmra.mxu0 %v1755
    %v1836 = vpop.f32.mrf.mxu0
    %v1837 = vadd.f32 %v1747, %v1836
    %v1838 = vpop.f32.mrf.mxu0
    %1839 = vmatprep.mubr.f32.mxu0 0.0
    %1840 = vmatmul.mubr.f32.gmra.mxu0 %v1758
    %v1841 = vpop.f32.mrf.mxu0
    %v1842 = vadd.f32 %v1747, %v1841
    %v1843 = vpop.f32.mrf.mxu0
    %1844 = vdwg.mxu0
    %v1845 = vld [vmem:[#allocation2 + $0x90] sm:$0xf]
    %1847 = vset.pattern.permute.xlu0 0
    %1848 = vperm.xlu0 %1847, %v1827
    %v1849 = vpop.permute.xlu0 %1848
    %1852 = vset.pattern.permute.xlu0 0
    %1853 = vperm.xlu0 %1852, %v1832
    %v1854 = vpop.permute.xlu0 %1853
    %1857 = vset.pattern.permute.xlu0 0
    %1858 = vperm.xlu0 %1857, %v1837
    %v1859 = vpop.permute.xlu0 %1858
    %1862 = vset.pattern.permute.xlu0 0
    %1863 = vperm.xlu0 %1862, %v1842
    %v1864 = vpop.permute.xlu0 %1863
    %v1866 = vmul.f32 %v1849, %v1591
    %v1867 = vmul.f32 %v1854, %v1596
    %v1868 = vmul.f32 %v1859, %v1601
    %v1869 = vmul.f32 %v1864, %v1606
    %v1871 = vsel %vm142, %v1845, 0
    %1873 = vmatprep.subr.mxu0 0.0
    %1874 = vmatpush1.msra.mxu0 0.0
    %1875 = vmatprep.subr.mxu0 0.0
    %1876 = vmatpush1.msra.mxu0 0.0
    %1877 = vmatprep.subr.mxu0 0.0
    %1878 = vmatpush1.msra.mxu0 0.0
    %1879 = vmatprep.subr.mxu0 0.0
    %1880 = vmatpush1.msra.mxu0 0.0
    %1881 = vmatprep.subr.mxu0 0.0
    %1882 = vmatpush1.msra.mxu0 0.0
    %1883 = vmatprep.subr.mxu0 0.0
    %1884 = vmatpush1.msra.mxu0 0.0
    %1885 = vmatprep.subr.mxu0 0.0
    %1886 = vmatpush1.msra.mxu0 0.0
    %1887 = vmatprep.subr.mxu0 0.0
    %1888 = vmatpush1.msra.mxu0 0.0
    %1889 = vmatprep.subr.mxu0 0.0
    %1890 = vmatpush1.msra.mxu0 0.0
    %1891 = vmatprep.subr.mxu0 0.0
    %1892 = vmatpush1.msra.mxu0 0.0
    %1893 = vmatprep.subr.mxu0 0.0
    %1894 = vmatpush1.msra.mxu0 0.0
    %1895 = vmatprep.subr.mxu0 0.0
    %1896 = vmatpush1.msra.mxu0 0.0
    %1897 = vmatprep.subr.mxu0 0.0
    %1898 = vmatpush1.msra.mxu0 %v1869
    %1899 = vmatprep.subr.mxu0 0.0
    %1900 = vmatpush1.msra.mxu0 %v1868
    %1901 = vmatprep.subr.mxu0 0.0
    %1902 = vmatpush1.msra.mxu0 %v1867
    %1903 = vmatprep.subr.mxu0 0.0
    %1904 = vmatpush1.msra.mxu0 %v1866
    %1905 = vmatprep.subr.mxu0 0.0
    %1906 = vmatpush2.msra.mxu0 0.0
    %1907 = vmatprep.subr.mxu0 0.0
    %1908 = vmatpush2.msra.mxu0 0.0
    %1909 = vmatprep.subr.mxu0 0.0
    %1910 = vmatpush2.msra.mxu0 0.0
    %1911 = vmatprep.subr.mxu0 0.0
    %1912 = vmatpush2.msra.mxu0 0.0
    %1913 = vmatprep.subr.mxu0 0.0
    %1914 = vmatpush2.msra.mxu0 0.0
    %1915 = vmatprep.subr.mxu0 0.0
    %1916 = vmatpush2.msra.mxu0 0.0
    %1917 = vmatprep.subr.mxu0 0.0
    %1918 = vmatpush2.msra.mxu0 0.0
    %1919 = vmatprep.subr.mxu0 0.0
    %1920 = vmatpush2.msra.mxu0 0.0
    %1921 = vmatprep.subr.mxu0 0.0
    %1922 = vmatpush2.msra.mxu0 0.0
    %1923 = vmatprep.subr.mxu0 0.0
    %1924 = vmatpush2.msra.mxu0 0.0
    %1925 = vmatprep.subr.mxu0 0.0
    %1926 = vmatpush2.msra.mxu0 0.0
    %1927 = vmatprep.subr.mxu0 0.0
    %1928 = vmatpush2.msra.mxu0 0.0
    %1929 = vmatprep.subr.mxu0 0.0
    %1930 = vmatpush2.msra.mxu0 0.0
    %1931 = vmatprep.subr.mxu0 0.0
    %1932 = vmatpush2.msra.mxu0 0.0
    %1933 = vmatprep.subr.mxu0 0.0
    %1934 = vmatpush2.msra.mxu0 0.0
    %1935 = vmatprep.subr.mxu0 0.0
    %1936 = vmatpush2.msra.mxu0 0.0
    %1937 = vmatprep.mubr.f32.mxu0 0.0
    %1938 = vmatmul.mubr.f32.gmra.mxu0 %v1871
    %v1939 = vpop.f32.mrf.mxu0
    %v1940 = vadd.f32 0.0, %v1939
    %v1941 = vpop.f32.mrf.mxu0
    %1942 = vdwg.mxu0
    %v1943 = vld [vmem:[#allocation2 + $0x98] sm:$0xf]
    %v1944 = vld [vmem:[#allocation5 + $0x18] sm:$0xff]
    %v1946 = vsel %vm314, %v1943, 0
    %1948 = vmatprep.subr.mxu0 0.0
    %1949 = vmatpush1.msra.mxu0 0.0
    %1950 = vmatprep.subr.mxu0 0.0
    %1951 = vmatpush1.msra.mxu0 0.0
    %1952 = vmatprep.subr.mxu0 0.0
    %1953 = vmatpush1.msra.mxu0 0.0
    %1954 = vmatprep.subr.mxu0 0.0
    %1955 = vmatpush1.msra.mxu0 0.0
    %1956 = vmatprep.subr.mxu0 0.0
    %1957 = vmatpush1.msra.mxu0 0.0
    %1958 = vmatprep.subr.mxu0 0.0
    %1959 = vmatpush1.msra.mxu0 0.0
    %1960 = vmatprep.subr.mxu0 0.0
    %1961 = vmatpush1.msra.mxu0 0.0
    %1962 = vmatprep.subr.mxu0 0.0
    %1963 = vmatpush1.msra.mxu0 0.0
    %1964 = vmatprep.subr.mxu0 0.0
    %1965 = vmatpush1.msra.mxu0 0.0
    %1966 = vmatprep.subr.mxu0 0.0
    %1967 = vmatpush1.msra.mxu0 0.0
    %1968 = vmatprep.subr.mxu0 0.0
    %1969 = vmatpush1.msra.mxu0 0.0
    %1970 = vmatprep.subr.mxu0 0.0
    %1971 = vmatpush1.msra.mxu0 0.0
    %1972 = vmatprep.subr.mxu0 0.0
    %1973 = vmatpush1.msra.mxu0 0.0
    %1974 = vmatprep.subr.mxu0 0.0
    %1975 = vmatpush1.msra.mxu0 0.0
    %1976 = vmatprep.subr.mxu0 0.0
    %1977 = vmatpush1.msra.mxu0 0.0
    %1978 = vmatprep.subr.mxu0 0.0
    %1979 = vmatpush1.msra.mxu0 %v1944
    %1980 = vmatprep.subr.mxu0 0.0
    %1981 = vmatpush2.msra.mxu0 0.0
    %1982 = vmatprep.subr.mxu0 0.0
    %1983 = vmatpush2.msra.mxu0 0.0
    %1984 = vmatprep.subr.mxu0 0.0
    %1985 = vmatpush2.msra.mxu0 0.0
    %1986 = vmatprep.subr.mxu0 0.0
    %1987 = vmatpush2.msra.mxu0 0.0
    %1988 = vmatprep.subr.mxu0 0.0
    %1989 = vmatpush2.msra.mxu0 0.0
    %1990 = vmatprep.subr.mxu0 0.0
    %1991 = vmatpush2.msra.mxu0 0.0
    %1992 = vmatprep.subr.mxu0 0.0
    %1993 = vmatpush2.msra.mxu0 0.0
    %1994 = vmatprep.subr.mxu0 0.0
    %1995 = vmatpush2.msra.mxu0 0.0
    %1996 = vmatprep.subr.mxu0 0.0
    %1997 = vmatpush2.msra.mxu0 0.0
    %1998 = vmatprep.subr.mxu0 0.0
    %1999 = vmatpush2.msra.mxu0 0.0
    %2000 = vmatprep.subr.mxu0 0.0
    %2001 = vmatpush2.msra.mxu0 0.0
    %2002 = vmatprep.subr.mxu0 0.0
    %2003 = vmatpush2.msra.mxu0 0.0
    %2004 = vmatprep.subr.mxu0 0.0
    %2005 = vmatpush2.msra.mxu0 0.0
    %2006 = vmatprep.subr.mxu0 0.0
    %2007 = vmatpush2.msra.mxu0 0.0
    %2008 = vmatprep.subr.mxu0 0.0
    %2009 = vmatpush2.msra.mxu0 0.0
    %2010 = vmatprep.subr.mxu0 0.0
    %2011 = vmatpush2.msra.mxu0 0.0
    %2012 = vmatprep.mubr.f32.mxu0 0.0
    %2013 = vmatmul.mubr.f32.gmra.mxu0 %v1946
    %v2014 = vpop.f32.mrf.mxu0
    %v2015 = vadd.f32 0.0, %v2014
    %v2016 = vpop.f32.mrf.mxu0
    %2017 = vdwg.mxu0
    %v2018 = vld [vmem:[#allocation5 + $0x198] sm:$0xff]
    %v2019 = vld [vmem:[#allocation5 + $0x1a0] sm:$0xff]
    %v2020 = vld [vmem:[#allocation5 + $0x1a8] sm:$0xff]
    %v2021 = vld [vmem:[#allocation5 + $0x1b0] sm:$0xff]
    %v2022 = vld [vmem:[#allocation5 + $0x1b8] sm:$0x1]
    %v2023 = vlaneseq
    %v2024 = vshrl.u32 %v2023, 7
    %v2025 = vsub.s32 0, %v2024
    %v2026 = vrot.slane %v2022, %v2025
    %v2028 = vsel %vm142, %v1940, 0
    %2030 = vmatprep.subr.mxu0 0.0
    %2031 = vmatpush1.msra.mxu0 0.0
    %2032 = vmatprep.subr.mxu0 0.0
    %2033 = vmatpush1.msra.mxu0 0.0
    %2034 = vmatprep.subr.mxu0 0.0
    %2035 = vmatpush1.msra.mxu0 0.0
    %2036 = vmatprep.subr.mxu0 0.0
    %2037 = vmatpush1.msra.mxu0 0.0
    %2038 = vmatprep.subr.mxu0 0.0
    %2039 = vmatpush1.msra.mxu0 0.0
    %2040 = vmatprep.subr.mxu0 0.0
    %2041 = vmatpush1.msra.mxu0 0.0
    %2042 = vmatprep.subr.mxu0 0.0
    %2043 = vmatpush1.msra.mxu0 0.0
    %2044 = vmatprep.subr.mxu0 0.0
    %2045 = vmatpush1.msra.mxu0 0.0
    %2046 = vmatprep.subr.mxu0 0.0
    %2047 = vmatpush1.msra.mxu0 0.0
    %2048 = vmatprep.subr.mxu0 0.0
    %2049 = vmatpush1.msra.mxu0 0.0
    %2050 = vmatprep.subr.mxu0 0.0
    %2051 = vmatpush1.msra.mxu0 0.0
    %2052 = vmatprep.subr.mxu0 0.0
    %2053 = vmatpush1.msra.mxu0 0.0
    %2054 = vmatprep.subr.mxu0 0.0
    %2055 = vmatpush1.msra.mxu0 %v2021
    %2056 = vmatprep.subr.mxu0 0.0
    %2057 = vmatpush1.msra.mxu0 %v2020
    %2058 = vmatprep.subr.mxu0 0.0
    %2059 = vmatpush1.msra.mxu0 %v2019
    %2060 = vmatprep.subr.mxu0 0.0
    %2061 = vmatpush1.msra.mxu0 %v2018
    %2062 = vmatprep.subr.mxu0 0.0
    %2063 = vmatpush2.msra.mxu0 0.0
    %2064 = vmatprep.subr.mxu0 0.0
    %2065 = vmatpush2.msra.mxu0 0.0
    %2066 = vmatprep.subr.mxu0 0.0
    %2067 = vmatpush2.msra.mxu0 0.0
    %2068 = vmatprep.subr.mxu0 0.0
    %2069 = vmatpush2.msra.mxu0 0.0
    %2070 = vmatprep.subr.mxu0 0.0
    %2071 = vmatpush2.msra.mxu0 0.0
    %2072 = vmatprep.subr.mxu0 0.0
    %2073 = vmatpush2.msra.mxu0 0.0
    %2074 = vmatprep.subr.mxu0 0.0
    %2075 = vmatpush2.msra.mxu0 0.0
    %2076 = vmatprep.subr.mxu0 0.0
    %2077 = vmatpush2.msra.mxu0 0.0
    %2078 = vmatprep.subr.mxu0 0.0
    %2079 = vmatpush2.msra.mxu0 0.0
    %2080 = vmatprep.subr.mxu0 0.0
    %2081 = vmatpush2.msra.mxu0 0.0
    %2082 = vmatprep.subr.mxu0 0.0
    %2083 = vmatpush2.msra.mxu0 0.0
    %2084 = vmatprep.subr.mxu0 0.0
    %2085 = vmatpush2.msra.mxu0 0.0
    %2086 = vmatprep.subr.mxu0 0.0
    %2087 = vmatpush2.msra.mxu0 0.0
    %2088 = vmatprep.subr.mxu0 0.0
    %2089 = vmatpush2.msra.mxu0 0.0
    %2090 = vmatprep.subr.mxu0 0.0
    %2091 = vmatpush2.msra.mxu0 0.0
    %2092 = vmatprep.subr.mxu0 0.0
    %2093 = vmatpush2.msra.mxu0 0.0
    %2094 = vmatprep.mubr.f32.mxu0 0.0
    %2095 = vmatmul.mubr.f32.gmra.mxu0 %v2028
    %v2096 = vpop.f32.mrf.mxu0
    %v2097 = vadd.f32 %v2026, %v2096
    %v2098 = vpop.f32.mrf.mxu0
    %2099 = vdwg.mxu0
    %v2100 = vtanh.pop %v2097
    %v2101 = vld [vmem:[#allocation5 + $0x20] sm:$0xff]
    %v2102 = vld [vmem:[#allocation5 + $0x28] sm:$0xff]
    %v2103 = vld [vmem:[#allocation5 + $0x30] sm:$0xff]
    %v2104 = vld [vmem:[#allocation5 + $0x38] sm:$0xff]
    %v2105 = vld [vmem:[#allocation5 + $0x40] sm:$0xff]
    %v2106 = vld [vmem:[#allocation5 + $0x48] sm:$0xff]
    %v2107 = vld [vmem:[#allocation5 + $0x50] sm:$0xff]
    %v2108 = vld [vmem:[#allocation5 + $0x58] sm:$0xff]
    %v2109 = vld [vmem:[#allocation5 + $0x60] sm:$0xff]
    %v2110 = vld [vmem:[#allocation5 + $0x68] sm:$0xff]
    %v2111 = vld [vmem:[#allocation5 + $0x70] sm:$0xff]
    %v2112 = vld [vmem:[#allocation5 + $0x78] sm:$0xff]
    %v2113 = vld [vmem:[#allocation5 + $0x80] sm:$0xff]
    %v2114 = vld [vmem:[#allocation5 + $0x88] sm:$0xff]
    %v2115 = vld [vmem:[#allocation5 + $0x90] sm:$0xff]
    %v2116 = vld [vmem:[#allocation5 + $0x98] sm:$0xff]
    %v2117 = vld [vmem:[#allocation5 + $0x1c0] sm:$0xff]
    %v2118 = vld [vmem:[#allocation5 + $0x1c8] sm:$0xff]
    %v2119 = vld [vmem:[#allocation5 + $0x1d0] sm:$0xff]
    %v2120 = vld [vmem:[#allocation5 + $0x1d8] sm:$0xff]
    %v2122 = vsel %vm142, %v2101, 0
    %v2125 = vsel %vm142, %v2102, 0
    %v2128 = vsel %vm142, %v2103, 0
    %v2131 = vsel %vm142, %v2104, 0
    %v2134 = vsel %vm142, %v2105, 0
    %v2137 = vsel %vm142, %v2106, 0
    %v2140 = vsel %vm142, %v2107, 0
    %v2143 = vsel %vm142, %v2108, 0
    %v2146 = vsel %vm142, %v2109, 0
    %v2149 = vsel %vm142, %v2110, 0
    %v2152 = vsel %vm142, %v2111, 0
    %v2155 = vsel %vm142, %v2112, 0
    %v2158 = vsel %vm142, %v2113, 0
    %v2161 = vsel %vm142, %v2114, 0
    %v2164 = vsel %vm142, %v2115, 0
    %v2167 = vsel %vm142, %v2116, 0
    %2169 = vmatprep.subr.mxu0 0.0
    %2170 = vmatpush1.msra.mxu0 0.0
    %2171 = vmatprep.subr.mxu0 0.0
    %2172 = vmatpush1.msra.mxu0 0.0
    %2173 = vmatprep.subr.mxu0 0.0
    %2174 = vmatpush1.msra.mxu0 0.0
    %2175 = vmatprep.subr.mxu0 0.0
    %2176 = vmatpush1.msra.mxu0 0.0
    %2177 = vmatprep.subr.mxu0 0.0
    %2178 = vmatpush1.msra.mxu0 0.0
    %2179 = vmatprep.subr.mxu0 0.0
    %2180 = vmatpush1.msra.mxu0 0.0
    %2181 = vmatprep.subr.mxu0 0.0
    %2182 = vmatpush1.msra.mxu0 0.0
    %2183 = vmatprep.subr.mxu0 0.0
    %2184 = vmatpush1.msra.mxu0 0.0
    %2185 = vmatprep.subr.mxu0 0.0
    %2186 = vmatpush1.msra.mxu0 0.0
    %2187 = vmatprep.subr.mxu0 0.0
    %2188 = vmatpush1.msra.mxu0 0.0
    %2189 = vmatprep.subr.mxu0 0.0
    %2190 = vmatpush1.msra.mxu0 0.0
    %2191 = vmatprep.subr.mxu0 0.0
    %2192 = vmatpush1.msra.mxu0 0.0
    %2193 = vmatprep.subr.mxu0 0.0
    %2194 = vmatpush1.msra.mxu0 %v2120
    %2195 = vmatprep.subr.mxu0 0.0
    %2196 = vmatpush1.msra.mxu0 %v2119
    %2197 = vmatprep.subr.mxu0 0.0
    %2198 = vmatpush1.msra.mxu0 %v2118
    %2199 = vmatprep.subr.mxu0 0.0
    %2200 = vmatpush1.msra.mxu0 %v2117
    %2201 = vmatprep.subr.mxu0 0.0
    %2202 = vmatpush2.msra.mxu0 0.0
    %2203 = vmatprep.subr.mxu0 0.0
    %2204 = vmatpush2.msra.mxu0 0.0
    %2205 = vmatprep.subr.mxu0 0.0
    %2206 = vmatpush2.msra.mxu0 0.0
    %2207 = vmatprep.subr.mxu0 0.0
    %2208 = vmatpush2.msra.mxu0 0.0
    %2209 = vmatprep.subr.mxu0 0.0
    %2210 = vmatpush2.msra.mxu0 0.0
    %2211 = vmatprep.subr.mxu0 0.0
    %2212 = vmatpush2.msra.mxu0 0.0
    %2213 = vmatprep.subr.mxu0 0.0
    %2214 = vmatpush2.msra.mxu0 0.0
    %2215 = vmatprep.subr.mxu0 0.0
    %2216 = vmatpush2.msra.mxu0 0.0
    %2217 = vmatprep.subr.mxu0 0.0
    %2218 = vmatpush2.msra.mxu0 0.0
    %2219 = vmatprep.subr.mxu0 0.0
    %2220 = vmatpush2.msra.mxu0 0.0
    %2221 = vmatprep.subr.mxu0 0.0
    %2222 = vmatpush2.msra.mxu0 0.0
    %2223 = vmatprep.subr.mxu0 0.0
    %2224 = vmatpush2.msra.mxu0 0.0
    %2225 = vmatprep.subr.mxu0 0.0
    %2226 = vmatpush2.msra.mxu0 0.0
    %2227 = vmatprep.subr.mxu0 0.0
    %2228 = vmatpush2.msra.mxu0 0.0
    %2229 = vmatprep.subr.mxu0 0.0
    %2230 = vmatpush2.msra.mxu0 0.0
    %2231 = vmatprep.subr.mxu0 0.0
    %2232 = vmatpush2.msra.mxu0 0.0
    %2233 = vmatprep.mubr.f32.mxu0 0.0
    %2234 = vmatmul.mubr.f32.gmra.mxu0 %v2122
    %v2235 = vpop.f32.mrf.mxu0
    %v2236 = vadd.f32 0.0, %v2235
    %v2237 = vpop.f32.mrf.mxu0
    %2238 = vmatprep.mubr.f32.mxu0 0.0
    %2239 = vmatmul.mubr.f32.gmra.mxu0 %v2125
    %v2240 = vpop.f32.mrf.mxu0
    %v2241 = vadd.f32 0.0, %v2240
    %v2242 = vpop.f32.mrf.mxu0
    %2243 = vmatprep.mubr.f32.mxu0 0.0
    %2244 = vmatmul.mubr.f32.gmra.mxu0 %v2128
    %v2245 = vpop.f32.mrf.mxu0
    %v2246 = vadd.f32 0.0, %v2245
    %v2247 = vpop.f32.mrf.mxu0
    %2248 = vmatprep.mubr.f32.mxu0 0.0
    %2249 = vmatmul.mubr.f32.gmra.mxu0 %v2131
    %v2250 = vpop.f32.mrf.mxu0
    %v2251 = vadd.f32 0.0, %v2250
    %v2252 = vpop.f32.mrf.mxu0
    %2253 = vmatprep.mubr.f32.mxu0 0.0
    %2254 = vmatmul.mubr.f32.gmra.mxu0 %v2134
    %v2255 = vpop.f32.mrf.mxu0
    %v2256 = vadd.f32 0.0, %v2255
    %v2257 = vpop.f32.mrf.mxu0
    %2258 = vmatprep.mubr.f32.mxu0 0.0
    %2259 = vmatmul.mubr.f32.gmra.mxu0 %v2137
    %v2260 = vpop.f32.mrf.mxu0
    %v2261 = vadd.f32 0.0, %v2260
    %v2262 = vpop.f32.mrf.mxu0
    %2263 = vmatprep.mubr.f32.mxu0 0.0
    %2264 = vmatmul.mubr.f32.gmra.mxu0 %v2140
    %v2265 = vpop.f32.mrf.mxu0
    %v2266 = vadd.f32 0.0, %v2265
    %v2267 = vpop.f32.mrf.mxu0
    %2268 = vmatprep.mubr.f32.mxu0 0.0
    %2269 = vmatmul.mubr.f32.gmra.mxu0 %v2143
    %v2270 = vpop.f32.mrf.mxu0
    %v2271 = vadd.f32 0.0, %v2270
    %v2272 = vpop.f32.mrf.mxu0
    %2273 = vmatprep.mubr.f32.mxu0 0.0
    %2274 = vmatmul.mubr.f32.gmra.mxu0 %v2146
    %v2275 = vpop.f32.mrf.mxu0
    %v2276 = vadd.f32 0.0, %v2275
    %v2277 = vpop.f32.mrf.mxu0
    %2278 = vmatprep.mubr.f32.mxu0 0.0
    %2279 = vmatmul.mubr.f32.gmra.mxu0 %v2149
    %v2280 = vpop.f32.mrf.mxu0
    %v2281 = vadd.f32 0.0, %v2280
    %v2282 = vpop.f32.mrf.mxu0
    %2283 = vmatprep.mubr.f32.mxu0 0.0
    %2284 = vmatmul.mubr.f32.gmra.mxu0 %v2152
    %v2285 = vpop.f32.mrf.mxu0
    %v2286 = vadd.f32 0.0, %v2285
    %v2287 = vpop.f32.mrf.mxu0
    %2288 = vmatprep.mubr.f32.mxu0 0.0
    %2289 = vmatmul.mubr.f32.gmra.mxu0 %v2155
    %v2290 = vpop.f32.mrf.mxu0
    %v2291 = vadd.f32 0.0, %v2290
    %v2292 = vpop.f32.mrf.mxu0
    %2293 = vmatprep.mubr.f32.mxu0 0.0
    %2294 = vmatmul.mubr.f32.gmra.mxu0 %v2158
    %v2295 = vpop.f32.mrf.mxu0
    %v2296 = vadd.f32 0.0, %v2295
    %v2297 = vpop.f32.mrf.mxu0
    %2298 = vmatprep.mubr.f32.mxu0 0.0
    %2299 = vmatmul.mubr.f32.gmra.mxu0 %v2161
    %v2300 = vpop.f32.mrf.mxu0
    %v2301 = vadd.f32 0.0, %v2300
    %v2302 = vpop.f32.mrf.mxu0
    %2303 = vmatprep.mubr.f32.mxu0 0.0
    %2304 = vmatmul.mubr.f32.gmra.mxu0 %v2164
    %v2305 = vpop.f32.mrf.mxu0
    %v2306 = vadd.f32 0.0, %v2305
    %v2307 = vpop.f32.mrf.mxu0
    %2308 = vmatprep.mubr.f32.mxu0 0.0
    %2309 = vmatmul.mubr.f32.gmra.mxu0 %v2167
    %v2310 = vpop.f32.mrf.mxu0
    %v2311 = vadd.f32 0.0, %v2310
    %v2312 = vpop.f32.mrf.mxu0
    %2313 = vdwg.mxu0
    %v2314 = vld [vmem:[#allocation2 + $0xa0] sm:$0xff]
    %v2315 = vld [vmem:[#allocation2 + $0xa8] sm:$0xff]
    %v2316 = vld [vmem:[#allocation2 + $0xb0] sm:$0xff]
    %v2317 = vld [vmem:[#allocation2 + $0xb8] sm:$0xff]
    %v2318 = vld [vmem:[#allocation2 + $0xc0] sm:$0xff]
    %v2319 = vld [vmem:[#allocation2 + $0xc8] sm:$0xff]
    %v2320 = vld [vmem:[#allocation2 + $0xd0] sm:$0xff]
    %v2321 = vld [vmem:[#allocation2 + $0xd8] sm:$0xff]
    %v2322 = vld [vmem:[#allocation2 + $0xe0] sm:$0xff]
    %v2323 = vld [vmem:[#allocation2 + $0xe8] sm:$0xff]
    %v2324 = vld [vmem:[#allocation2 + $0xf0] sm:$0xff]
    %v2325 = vld [vmem:[#allocation2 + $0xf8] sm:$0xff]
    %v2326 = vld [vmem:[#allocation2 + $0x100] sm:$0xff]
    %v2327 = vld [vmem:[#allocation2 + $0x108] sm:$0xff]
    %v2328 = vld [vmem:[#allocation2 + $0x110] sm:$0xff]
    %v2329 = vld [vmem:[#allocation2 + $0x118] sm:$0xff]
    %v2330 = vld [vmem:[#allocation5 + $0x1e0] sm:$0x1]
    %v2331 = vlaneseq
    %v2332 = vshrl.u32 %v2331, 7
    %v2333 = vsub.s32 0, %v2332
    %v2334 = vrot.slane %v2330, %v2333
    %2335 = vmatprep.subr.mxu0 0.0
    %2336 = vmatpush1.msra.mxu0 %v2311
    %2337 = vmatprep.subr.mxu0 0.0
    %2338 = vmatpush1.msra.mxu0 %v2306
    %2339 = vmatprep.subr.mxu0 0.0
    %2340 = vmatpush1.msra.mxu0 %v2301
    %2341 = vmatprep.subr.mxu0 0.0
    %2342 = vmatpush1.msra.mxu0 %v2296
    %2343 = vmatprep.subr.mxu0 0.0
    %2344 = vmatpush1.msra.mxu0 %v2291
    %2345 = vmatprep.subr.mxu0 0.0
    %2346 = vmatpush1.msra.mxu0 %v2286
    %2347 = vmatprep.subr.mxu0 0.0
    %2348 = vmatpush1.msra.mxu0 %v2281
    %2349 = vmatprep.subr.mxu0 0.0
    %2350 = vmatpush1.msra.mxu0 %v2276
    %2351 = vmatprep.subr.mxu0 0.0
    %2352 = vmatpush1.msra.mxu0 %v2271
    %2353 = vmatprep.subr.mxu0 0.0
    %2354 = vmatpush1.msra.mxu0 %v2266
    %2355 = vmatprep.subr.mxu0 0.0
    %2356 = vmatpush1.msra.mxu0 %v2261
    %2357 = vmatprep.subr.mxu0 0.0
    %2358 = vmatpush1.msra.mxu0 %v2256
    %2359 = vmatprep.subr.mxu0 0.0
    %2360 = vmatpush1.msra.mxu0 %v2251
    %2361 = vmatprep.subr.mxu0 0.0
    %2362 = vmatpush1.msra.mxu0 %v2246
    %2363 = vmatprep.subr.mxu0 0.0
    %2364 = vmatpush1.msra.mxu0 %v2241
    %2365 = vmatprep.subr.mxu0 0.0
    %2366 = vmatpush1.msra.mxu0 %v2236
    %2367 = vmatprep.subr.mxu0 0.0
    %2368 = vmatpush2.msra.mxu0 0.0
    %2369 = vmatprep.subr.mxu0 0.0
    %2370 = vmatpush2.msra.mxu0 0.0
    %2371 = vmatprep.subr.mxu0 0.0
    %2372 = vmatpush2.msra.mxu0 0.0
    %2373 = vmatprep.subr.mxu0 0.0
    %2374 = vmatpush2.msra.mxu0 0.0
    %2375 = vmatprep.subr.mxu0 0.0
    %2376 = vmatpush2.msra.mxu0 0.0
    %2377 = vmatprep.subr.mxu0 0.0
    %2378 = vmatpush2.msra.mxu0 0.0
    %2379 = vmatprep.subr.mxu0 0.0
    %2380 = vmatpush2.msra.mxu0 0.0
    %2381 = vmatprep.subr.mxu0 0.0
    %2382 = vmatpush2.msra.mxu0 0.0
    %2383 = vmatprep.subr.mxu0 0.0
    %2384 = vmatpush2.msra.mxu0 0.0
    %2385 = vmatprep.subr.mxu0 0.0
    %2386 = vmatpush2.msra.mxu0 0.0
    %2387 = vmatprep.subr.mxu0 0.0
    %2388 = vmatpush2.msra.mxu0 0.0
    %2389 = vmatprep.subr.mxu0 0.0
    %2390 = vmatpush2.msra.mxu0 0.0
    %2391 = vmatprep.subr.mxu0 0.0
    %2392 = vmatpush2.msra.mxu0 0.0
    %2393 = vmatprep.subr.mxu0 0.0
    %2394 = vmatpush2.msra.mxu0 0.0
    %2395 = vmatprep.subr.mxu0 0.0
    %2396 = vmatpush2.msra.mxu0 0.0
    %2397 = vmatprep.subr.mxu0 0.0
    %2398 = vmatpush2.msra.mxu0 0.0
    %2399 = vmatprep.mubr.f32.mxu0 0.0
    %2400 = vmatmul.mubr.f32.gmra.mxu0 %v2314
    %v2401 = vpop.f32.mrf.mxu0
    %v2402 = vadd.f32 %v2334, %v2401
    %v2403 = vpop.f32.mrf.mxu0
    %2404 = vmatprep.mubr.f32.mxu0 0.0
    %2405 = vmatmul.mubr.f32.gmra.mxu0 %v2315
    %v2406 = vpop.f32.mrf.mxu0
    %v2407 = vadd.f32 %v2334, %v2406
    %v2408 = vpop.f32.mrf.mxu0
    %2409 = vmatprep.mubr.f32.mxu0 0.0
    %2410 = vmatmul.mubr.f32.gmra.mxu0 %v2316
    %v2411 = vpop.f32.mrf.mxu0
    %v2412 = vadd.f32 %v2334, %v2411
    %v2413 = vpop.f32.mrf.mxu0
    %2414 = vmatprep.mubr.f32.mxu0 0.0
    %2415 = vmatmul.mubr.f32.gmra.mxu0 %v2317
    %v2416 = vpop.f32.mrf.mxu0
    %v2417 = vadd.f32 %v2334, %v2416
    %v2418 = vpop.f32.mrf.mxu0
    %2419 = vmatprep.mubr.f32.mxu0 0.0
    %2420 = vmatmul.mubr.f32.gmra.mxu0 %v2318
    %v2421 = vpop.f32.mrf.mxu0
    %v2422 = vadd.f32 %v2334, %v2421
    %v2423 = vpop.f32.mrf.mxu0
    %2424 = vmatprep.mubr.f32.mxu0 0.0
    %2425 = vmatmul.mubr.f32.gmra.mxu0 %v2319
    %v2426 = vpop.f32.mrf.mxu0
    %v2427 = vadd.f32 %v2334, %v2426
    %v2428 = vpop.f32.mrf.mxu0
    %2429 = vmatprep.mubr.f32.mxu0 0.0
    %2430 = vmatmul.mubr.f32.gmra.mxu0 %v2320
    %v2431 = vpop.f32.mrf.mxu0
    %v2432 = vadd.f32 %v2334, %v2431
    %v2433 = vpop.f32.mrf.mxu0
    %2434 = vmatprep.mubr.f32.mxu0 0.0
    %2435 = vmatmul.mubr.f32.gmra.mxu0 %v2321
    %v2436 = vpop.f32.mrf.mxu0
    %v2437 = vadd.f32 %v2334, %v2436
    %v2438 = vpop.f32.mrf.mxu0
    %2439 = vmatprep.mubr.f32.mxu0 0.0
    %2440 = vmatmul.mubr.f32.gmra.mxu0 %v2322
    %v2441 = vpop.f32.mrf.mxu0
    %v2442 = vadd.f32 %v2334, %v2441
    %v2443 = vpop.f32.mrf.mxu0
    %2444 = vmatprep.mubr.f32.mxu0 0.0
    %2445 = vmatmul.mubr.f32.gmra.mxu0 %v2323
    %v2446 = vpop.f32.mrf.mxu0
    %v2447 = vadd.f32 %v2334, %v2446
    %v2448 = vpop.f32.mrf.mxu0
    %2449 = vmatprep.mubr.f32.mxu0 0.0
    %2450 = vmatmul.mubr.f32.gmra.mxu0 %v2324
    %v2451 = vpop.f32.mrf.mxu0
    %v2452 = vadd.f32 %v2334, %v2451
    %v2453 = vpop.f32.mrf.mxu0
    %2454 = vmatprep.mubr.f32.mxu0 0.0
    %2455 = vmatmul.mubr.f32.gmra.mxu0 %v2325
    %v2456 = vpop.f32.mrf.mxu0
    %v2457 = vadd.f32 %v2334, %v2456
    %v2458 = vpop.f32.mrf.mxu0
    %2459 = vmatprep.mubr.f32.mxu0 0.0
    %2460 = vmatmul.mubr.f32.gmra.mxu0 %v2326
    %v2461 = vpop.f32.mrf.mxu0
    %v2462 = vadd.f32 %v2334, %v2461
    %v2463 = vpop.f32.mrf.mxu0
    %2464 = vmatprep.mubr.f32.mxu0 0.0
    %2465 = vmatmul.mubr.f32.gmra.mxu0 %v2327
    %v2466 = vpop.f32.mrf.mxu0
    %v2467 = vadd.f32 %v2334, %v2466
    %v2468 = vpop.f32.mrf.mxu0
    %2469 = vmatprep.mubr.f32.mxu0 0.0
    %2470 = vmatmul.mubr.f32.gmra.mxu0 %v2328
    %v2471 = vpop.f32.mrf.mxu0
    %v2472 = vadd.f32 %v2334, %v2471
    %v2473 = vpop.f32.mrf.mxu0
    %2474 = vmatprep.mubr.f32.mxu0 0.0
    %2475 = vmatmul.mubr.f32.gmra.mxu0 %v2329
    %v2476 = vpop.f32.mrf.mxu0
    %v2477 = vadd.f32 %v2334, %v2476
    %v2478 = vpop.f32.mrf.mxu0
    %2479 = vdwg.mxu0
    %v2480 = vmax.f32 %v2402, 0.0
    %v2481 = vmax.f32 %v2407, 0.0
    %v2482 = vmax.f32 %v2412, 0.0
    %v2483 = vmax.f32 %v2417, 0.0
    %v2484 = vmax.f32 %v2422, 0.0
    %v2485 = vmax.f32 %v2427, 0.0
    %v2486 = vmax.f32 %v2432, 0.0
    %v2487 = vmax.f32 %v2437, 0.0
    %v2488 = vmax.f32 %v2442, 0.0
    %v2489 = vmax.f32 %v2447, 0.0
    %v2490 = vmax.f32 %v2452, 0.0
    %v2491 = vmax.f32 %v2457, 0.0
    %v2492 = vmax.f32 %v2462, 0.0
    %v2493 = vmax.f32 %v2467, 0.0
    %v2494 = vmax.f32 %v2472, 0.0
    %v2495 = vmax.f32 %v2477, 0.0
    %v2496 = vld [vmem:[#allocation5 + $0x1e8] sm:$0xff]
    %v2497 = vld [vmem:[#allocation5 + $0x1f0] sm:$0xff]
    %v2498 = vld [vmem:[#allocation5 + $0x1f8] sm:$0xff]
    %v2499 = vld [vmem:[#allocation5 + $0x200] sm:$0xff]
    %2500 = vmatprep.subr.mxu0 0.0
    %2501 = vmatpush1.msra.mxu0 0.0
    %2502 = vmatprep.subr.mxu0 0.0
    %2503 = vmatpush1.msra.mxu0 0.0
    %2504 = vmatprep.subr.mxu0 0.0
    %2505 = vmatpush1.msra.mxu0 0.0
    %2506 = vmatprep.subr.mxu0 0.0
    %2507 = vmatpush1.msra.mxu0 0.0
    %2508 = vmatprep.subr.mxu0 0.0
    %2509 = vmatpush1.msra.mxu0 0.0
    %2510 = vmatprep.subr.mxu0 0.0
    %2511 = vmatpush1.msra.mxu0 0.0
    %2512 = vmatprep.subr.mxu0 0.0
    %2513 = vmatpush1.msra.mxu0 0.0
    %2514 = vmatprep.subr.mxu0 0.0
    %2515 = vmatpush1.msra.mxu0 0.0
    %2516 = vmatprep.subr.mxu0 0.0
    %2517 = vmatpush1.msra.mxu0 0.0
    %2518 = vmatprep.subr.mxu0 0.0
    %2519 = vmatpush1.msra.mxu0 0.0
    %2520 = vmatprep.subr.mxu0 0.0
    %2521 = vmatpush1.msra.mxu0 0.0
    %2522 = vmatprep.subr.mxu0 0.0
    %2523 = vmatpush1.msra.mxu0 0.0
    %2524 = vmatprep.subr.mxu0 0.0
    %2525 = vmatpush1.msra.mxu0 %v2499
    %2526 = vmatprep.subr.mxu0 0.0
    %2527 = vmatpush1.msra.mxu0 %v2498
    %2528 = vmatprep.subr.mxu0 0.0
    %2529 = vmatpush1.msra.mxu0 %v2497
    %2530 = vmatprep.subr.mxu0 0.0
    %2531 = vmatpush1.msra.mxu0 %v2496
    %2532 = vmatprep.subr.mxu0 0.0
    %2533 = vmatpush2.msra.mxu0 0.0
    %2534 = vmatprep.subr.mxu0 0.0
    %2535 = vmatpush2.msra.mxu0 0.0
    %2536 = vmatprep.subr.mxu0 0.0
    %2537 = vmatpush2.msra.mxu0 0.0
    %2538 = vmatprep.subr.mxu0 0.0
    %2539 = vmatpush2.msra.mxu0 0.0
    %2540 = vmatprep.subr.mxu0 0.0
    %2541 = vmatpush2.msra.mxu0 0.0
    %2542 = vmatprep.subr.mxu0 0.0
    %2543 = vmatpush2.msra.mxu0 0.0
    %2544 = vmatprep.subr.mxu0 0.0
    %2545 = vmatpush2.msra.mxu0 0.0
    %2546 = vmatprep.subr.mxu0 0.0
    %2547 = vmatpush2.msra.mxu0 0.0
    %2548 = vmatprep.subr.mxu0 0.0
    %2549 = vmatpush2.msra.mxu0 0.0
    %2550 = vmatprep.subr.mxu0 0.0
    %2551 = vmatpush2.msra.mxu0 0.0
    %2552 = vmatprep.subr.mxu0 0.0
    %2553 = vmatpush2.msra.mxu0 0.0
    %2554 = vmatprep.subr.mxu0 0.0
    %2555 = vmatpush2.msra.mxu0 0.0
    %2556 = vmatprep.subr.mxu0 0.0
    %2557 = vmatpush2.msra.mxu0 0.0
    %2558 = vmatprep.subr.mxu0 0.0
    %2559 = vmatpush2.msra.mxu0 0.0
    %2560 = vmatprep.subr.mxu0 0.0
    %2561 = vmatpush2.msra.mxu0 0.0
    %2562 = vmatprep.subr.mxu0 0.0
    %2563 = vmatpush2.msra.mxu0 0.0
    %2564 = vmatprep.mubr.f32.mxu0 0.0
    %2565 = vmatmul.mubr.f32.gmra.mxu0 %v406
    %v2566 = vpop.f32.mrf.mxu0
    %v2567 = vadd.f32 0.0, %v2566
    %v2568 = vpop.f32.mrf.mxu0
    %2569 = vdwg.mxu0
    %v2571 = vsel %vm142, %v2567, 0
    %2573 = vmatprep.subr.mxu0 0.0
    %2574 = vmatpush1.xpose.msra.mxu0 0.0
    %2575 = vmatprep.subr.mxu0 0.0
    %2576 = vmatpush1.xpose.msra.mxu0 0.0
    %2577 = vmatprep.subr.mxu0 0.0
    %2578 = vmatpush1.xpose.msra.mxu0 0.0
    %2579 = vmatprep.subr.mxu0 0.0
    %2580 = vmatpush1.xpose.msra.mxu0 0.0
    %2581 = vmatprep.subr.mxu0 0.0
    %2582 = vmatpush1.xpose.msra.mxu0 0.0
    %2583 = vmatprep.subr.mxu0 0.0
    %2584 = vmatpush1.xpose.msra.mxu0 0.0
    %2585 = vmatprep.subr.mxu0 0.0
    %2586 = vmatpush1.xpose.msra.mxu0 0.0
    %2587 = vmatprep.subr.mxu0 0.0
    %2588 = vmatpush1.xpose.msra.mxu0 0.0
    %2589 = vmatprep.subr.mxu0 0.0
    %2590 = vmatpush1.xpose.msra.mxu0 0.0
    %2591 = vmatprep.subr.mxu0 0.0
    %2592 = vmatpush1.xpose.msra.mxu0 0.0
    %2593 = vmatprep.subr.mxu0 0.0
    %2594 = vmatpush1.xpose.msra.mxu0 0.0
    %2595 = vmatprep.subr.mxu0 0.0
    %2596 = vmatpush1.xpose.msra.mxu0 0.0
    %2597 = vmatprep.subr.mxu0 0.0
    %2598 = vmatpush1.xpose.msra.mxu0 0.0
    %2599 = vmatprep.subr.mxu0 0.0
    %2600 = vmatpush1.xpose.msra.mxu0 0.0
    %2601 = vmatprep.subr.mxu0 0.0
    %2602 = vmatpush1.xpose.msra.mxu0 0.0
    %2603 = vmatprep.subr.mxu0 0.0
    %2604 = vmatpush1.xpose.msra.mxu0 %v2571
    %2605 = vmatprep.subr.mxu0 0.0
    %2606 = vmatpush2.xpose.msra.mxu0 0.0
    %2607 = vmatprep.subr.mxu0 0.0
    %2608 = vmatpush2.xpose.msra.mxu0 0.0
    %2609 = vmatprep.subr.mxu0 0.0
    %2610 = vmatpush2.xpose.msra.mxu0 0.0
    %2611 = vmatprep.subr.mxu0 0.0
    %2612 = vmatpush2.xpose.msra.mxu0 0.0
    %2613 = vmatprep.subr.mxu0 0.0
    %2614 = vmatpush2.xpose.msra.mxu0 0.0
    %2615 = vmatprep.subr.mxu0 0.0
    %2616 = vmatpush2.xpose.msra.mxu0 0.0
    %2617 = vmatprep.subr.mxu0 0.0
    %2618 = vmatpush2.xpose.msra.mxu0 0.0
    %2619 = vmatprep.subr.mxu0 0.0
    %2620 = vmatpush2.xpose.msra.mxu0 0.0
    %2621 = vmatprep.subr.mxu0 0.0
    %2622 = vmatpush2.xpose.msra.mxu0 0.0
    %2623 = vmatprep.subr.mxu0 0.0
    %2624 = vmatpush2.xpose.msra.mxu0 0.0
    %2625 = vmatprep.subr.mxu0 0.0
    %2626 = vmatpush2.xpose.msra.mxu0 0.0
    %2627 = vmatprep.subr.mxu0 0.0
    %2628 = vmatpush2.xpose.msra.mxu0 0.0
    %2629 = vmatprep.subr.mxu0 0.0
    %2630 = vmatpush2.xpose.msra.mxu0 0.0
    %2631 = vmatprep.subr.mxu0 0.0
    %2632 = vmatpush2.xpose.msra.mxu0 0.0
    %2633 = vmatprep.subr.mxu0 0.0
    %2634 = vmatpush2.xpose.msra.mxu0 0.0
    %2635 = vmatprep.subr.mxu0 0.0
    %2636 = vmatpush2.xpose.msra.mxu0 0.0
    %2637 = vmatprep.mubr.f32.mxu0 0.0
    %2638 = vmatmul.mubr.f32.gmra.mxu0 %v2028
    %v2639 = vpop.f32.mrf.mxu0
    %v2640 = vadd.f32 0.0, %v2639
    %v2641 = vpop.f32.mrf.mxu0
    %2642 = vdwg.mxu0
    %v2643 = vsel %vm388, %v2640, -inf
    %2644 = vmax.xlane.f32.xlu0 %v2643
    %v2645 = vpop.xlane.xlu0 %2644
    %v2646 = vsub.f32 %v2640, %v2645
    %v2647 = vmul.f32 %v2646, 1.442695
    %v2648 = vpow.pop %v2647
    %v2649 = vsel %vm388, %v2648, 0.0
    %2650 = vadd.xlane.f32.xlu0 %v2649
    %v2651 = vpop.xlane.xlu0 %2650
    %v2652 = vrcp.pop %v2651
    %v2653 = vmul.f32 %v2648, %v2652
    %v2655 = vsel %vm314, %v2653, 0
    %2657 = vmatprep.subr.mxu0 0.0
    %2658 = vmatpush1.msra.mxu0 0.0
    %2659 = vmatprep.subr.mxu0 0.0
    %2660 = vmatpush1.msra.mxu0 0.0
    %2661 = vmatprep.subr.mxu0 0.0
    %2662 = vmatpush1.msra.mxu0 0.0
    %2663 = vmatprep.subr.mxu0 0.0
    %2664 = vmatpush1.msra.mxu0 0.0
    %2665 = vmatprep.subr.mxu0 0.0
    %2666 = vmatpush1.msra.mxu0 0.0
    %2667 = vmatprep.subr.mxu0 0.0
    %2668 = vmatpush1.msra.mxu0 0.0
    %2669 = vmatprep.subr.mxu0 0.0
    %2670 = vmatpush1.msra.mxu0 0.0
    %2671 = vmatprep.subr.mxu0 0.0
    %2672 = vmatpush1.msra.mxu0 0.0
    %2673 = vmatprep.subr.mxu0 0.0
    %2674 = vmatpush1.msra.mxu0 0.0
    %2675 = vmatprep.subr.mxu0 0.0
    %2676 = vmatpush1.msra.mxu0 0.0
    %2677 = vmatprep.subr.mxu0 0.0
    %2678 = vmatpush1.msra.mxu0 0.0
    %2679 = vmatprep.subr.mxu0 0.0
    %2680 = vmatpush1.msra.mxu0 0.0
    %2681 = vmatprep.subr.mxu0 0.0
    %2682 = vmatpush1.msra.mxu0 0.0
    %2683 = vmatprep.subr.mxu0 0.0
    %2684 = vmatpush1.msra.mxu0 0.0
    %2685 = vmatprep.subr.mxu0 0.0
    %2686 = vmatpush1.msra.mxu0 0.0
    %2687 = vmatprep.subr.mxu0 0.0
    %2688 = vmatpush1.msra.mxu0 %v400
    %2689 = vmatprep.subr.mxu0 0.0
    %2690 = vmatpush2.msra.mxu0 0.0
    %2691 = vmatprep.subr.mxu0 0.0
    %2692 = vmatpush2.msra.mxu0 0.0
    %2693 = vmatprep.subr.mxu0 0.0
    %2694 = vmatpush2.msra.mxu0 0.0
    %2695 = vmatprep.subr.mxu0 0.0
    %2696 = vmatpush2.msra.mxu0 0.0
    %2697 = vmatprep.subr.mxu0 0.0
    %2698 = vmatpush2.msra.mxu0 0.0
    %2699 = vmatprep.subr.mxu0 0.0
    %2700 = vmatpush2.msra.mxu0 0.0
    %2701 = vmatprep.subr.mxu0 0.0
    %2702 = vmatpush2.msra.mxu0 0.0
    %2703 = vmatprep.subr.mxu0 0.0
    %2704 = vmatpush2.msra.mxu0 0.0
    %2705 = vmatprep.subr.mxu0 0.0
    %2706 = vmatpush2.msra.mxu0 0.0
    %2707 = vmatprep.subr.mxu0 0.0
    %2708 = vmatpush2.msra.mxu0 0.0
    %2709 = vmatprep.subr.mxu0 0.0
    %2710 = vmatpush2.msra.mxu0 0.0
    %2711 = vmatprep.subr.mxu0 0.0
    %2712 = vmatpush2.msra.mxu0 0.0
    %2713 = vmatprep.subr.mxu0 0.0
    %2714 = vmatpush2.msra.mxu0 0.0
    %2715 = vmatprep.subr.mxu0 0.0
    %2716 = vmatpush2.msra.mxu0 0.0
    %2717 = vmatprep.subr.mxu0 0.0
    %2718 = vmatpush2.msra.mxu0 0.0
    %2719 = vmatprep.subr.mxu0 0.0
    %2720 = vmatpush2.msra.mxu0 0.0
    %2721 = vmatprep.mubr.f32.mxu0 0.0
    %2722 = vmatmul.mubr.f32.gmra.mxu0 %v2655
    %v2723 = vpop.f32.mrf.mxu0
    %v2724 = vadd.f32 0.0, %v2723
    %v2725 = vpop.f32.mrf.mxu0
    %2726 = vdwg.mxu0
    %v2727 = vld [vmem:[#allocation5 + $0x208] sm:$0xff]
    %v2728 = vld [vmem:[#allocation5 + $0x210] sm:$0xff]
    %v2729 = vld [vmem:[#allocation5 + $0x218] sm:$0xff]
    %v2730 = vld [vmem:[#allocation5 + $0x220] sm:$0xff]
    %v2731 = vld [vmem:[#allocation5 + $0x248] sm:$0x1]
    %v2732 = vlaneseq
    %v2733 = vshrl.u32 %v2732, 7
    %v2734 = vsub.s32 0, %v2733
    %v2735 = vrot.slane %v2731, %v2734
    %v2737 = vsel %vm142, %v2724, 0
    %2739 = vmatprep.subr.mxu0 0.0
    %2740 = vmatpush1.msra.mxu0 0.0
    %2741 = vmatprep.subr.mxu0 0.0
    %2742 = vmatpush1.msra.mxu0 0.0
    %2743 = vmatprep.subr.mxu0 0.0
    %2744 = vmatpush1.msra.mxu0 0.0
    %2745 = vmatprep.subr.mxu0 0.0
    %2746 = vmatpush1.msra.mxu0 0.0
    %2747 = vmatprep.subr.mxu0 0.0
    %2748 = vmatpush1.msra.mxu0 0.0
    %2749 = vmatprep.subr.mxu0 0.0
    %2750 = vmatpush1.msra.mxu0 0.0
    %2751 = vmatprep.subr.mxu0 0.0
    %2752 = vmatpush1.msra.mxu0 0.0
    %2753 = vmatprep.subr.mxu0 0.0
    %2754 = vmatpush1.msra.mxu0 0.0
    %2755 = vmatprep.subr.mxu0 0.0
    %2756 = vmatpush1.msra.mxu0 0.0
    %2757 = vmatprep.subr.mxu0 0.0
    %2758 = vmatpush1.msra.mxu0 0.0
    %2759 = vmatprep.subr.mxu0 0.0
    %2760 = vmatpush1.msra.mxu0 0.0
    %2761 = vmatprep.subr.mxu0 0.0
    %2762 = vmatpush1.msra.mxu0 0.0
    %2763 = vmatprep.subr.mxu0 0.0
    %2764 = vmatpush1.msra.mxu0 %v2730
    %2765 = vmatprep.subr.mxu0 0.0
    %2766 = vmatpush1.msra.mxu0 %v2729
    %2767 = vmatprep.subr.mxu0 0.0
    %2768 = vmatpush1.msra.mxu0 %v2728
    %2769 = vmatprep.subr.mxu0 0.0
    %2770 = vmatpush1.msra.mxu0 %v2727
    %2771 = vmatprep.subr.mxu0 0.0
    %2772 = vmatpush2.msra.mxu0 0.0
    %2773 = vmatprep.subr.mxu0 0.0
    %2774 = vmatpush2.msra.mxu0 0.0
    %2775 = vmatprep.subr.mxu0 0.0
    %2776 = vmatpush2.msra.mxu0 0.0
    %2777 = vmatprep.subr.mxu0 0.0
    %2778 = vmatpush2.msra.mxu0 0.0
    %2779 = vmatprep.subr.mxu0 0.0
    %2780 = vmatpush2.msra.mxu0 0.0
    %2781 = vmatprep.subr.mxu0 0.0
    %2782 = vmatpush2.msra.mxu0 0.0
    %2783 = vmatprep.subr.mxu0 0.0
    %2784 = vmatpush2.msra.mxu0 0.0
    %2785 = vmatprep.subr.mxu0 0.0
    %2786 = vmatpush2.msra.mxu0 0.0
    %2787 = vmatprep.subr.mxu0 0.0
    %2788 = vmatpush2.msra.mxu0 0.0
    %2789 = vmatprep.subr.mxu0 0.0
    %2790 = vmatpush2.msra.mxu0 0.0
    %2791 = vmatprep.subr.mxu0 0.0
    %2792 = vmatpush2.msra.mxu0 0.0
    %2793 = vmatprep.subr.mxu0 0.0
    %2794 = vmatpush2.msra.mxu0 0.0
    %2795 = vmatprep.subr.mxu0 0.0
    %2796 = vmatpush2.msra.mxu0 0.0
    %2797 = vmatprep.subr.mxu0 0.0
    %2798 = vmatpush2.msra.mxu0 0.0
    %2799 = vmatprep.subr.mxu0 0.0
    %2800 = vmatpush2.msra.mxu0 0.0
    %2801 = vmatprep.subr.mxu0 0.0
    %2802 = vmatpush2.msra.mxu0 0.0
    %2803 = vmatprep.mubr.f32.mxu0 0.0
    %2804 = vmatmul.mubr.f32.gmra.mxu0 %v2737
    %v2805 = vpop.f32.mrf.mxu0
    %v2806 = vadd.f32 %v2735, %v2805
    %v2807 = vpop.f32.mrf.mxu0
    %2808 = vdwg.mxu0
    %v2810 = vrot.slane %v2015, 4
    %v2812 = vsel %vm602, %v2100, %v2810
    %v2813 = vld [vmem:[#allocation5 + $0x228] sm:$0xff]
    %v2814 = vld [vmem:[#allocation5 + $0x230] sm:$0xff]
    %v2815 = vld [vmem:[#allocation5 + $0x238] sm:$0xff]
    %v2816 = vld [vmem:[#allocation5 + $0x240] sm:$0xff]
    %v2818 = vsel %vm142, %v2812, 0
    %2820 = vmatprep.subr.mxu0 0.0
    %2821 = vmatpush1.msra.mxu0 0.0
    %2822 = vmatprep.subr.mxu0 0.0
    %2823 = vmatpush1.msra.mxu0 0.0
    %2824 = vmatprep.subr.mxu0 0.0
    %2825 = vmatpush1.msra.mxu0 0.0
    %2826 = vmatprep.subr.mxu0 0.0
    %2827 = vmatpush1.msra.mxu0 0.0
    %2828 = vmatprep.subr.mxu0 0.0
    %2829 = vmatpush1.msra.mxu0 0.0
    %2830 = vmatprep.subr.mxu0 0.0
    %2831 = vmatpush1.msra.mxu0 0.0
    %2832 = vmatprep.subr.mxu0 0.0
    %2833 = vmatpush1.msra.mxu0 0.0
    %2834 = vmatprep.subr.mxu0 0.0
    %2835 = vmatpush1.msra.mxu0 0.0
    %2836 = vmatprep.subr.mxu0 0.0
    %2837 = vmatpush1.msra.mxu0 0.0
    %2838 = vmatprep.subr.mxu0 0.0
    %2839 = vmatpush1.msra.mxu0 0.0
    %2840 = vmatprep.subr.mxu0 0.0
    %2841 = vmatpush1.msra.mxu0 0.0
    %2842 = vmatprep.subr.mxu0 0.0
    %2843 = vmatpush1.msra.mxu0 0.0
    %2844 = vmatprep.subr.mxu0 0.0
    %2845 = vmatpush1.msra.mxu0 %v2816
    %2846 = vmatprep.subr.mxu0 0.0
    %2847 = vmatpush1.msra.mxu0 %v2815
    %2848 = vmatprep.subr.mxu0 0.0
    %2849 = vmatpush1.msra.mxu0 %v2814
    %2850 = vmatprep.subr.mxu0 0.0
    %2851 = vmatpush1.msra.mxu0 %v2813
    %2852 = vmatprep.subr.mxu0 0.0
    %2853 = vmatpush2.msra.mxu0 0.0
    %2854 = vmatprep.subr.mxu0 0.0
    %2855 = vmatpush2.msra.mxu0 0.0
    %2856 = vmatprep.subr.mxu0 0.0
    %2857 = vmatpush2.msra.mxu0 0.0
    %2858 = vmatprep.subr.mxu0 0.0
    %2859 = vmatpush2.msra.mxu0 0.0
    %2860 = vmatprep.subr.mxu0 0.0
    %2861 = vmatpush2.msra.mxu0 0.0
    %2862 = vmatprep.subr.mxu0 0.0
    %2863 = vmatpush2.msra.mxu0 0.0
    %2864 = vmatprep.subr.mxu0 0.0
    %2865 = vmatpush2.msra.mxu0 0.0
    %2866 = vmatprep.subr.mxu0 0.0
    %2867 = vmatpush2.msra.mxu0 0.0
    %2868 = vmatprep.subr.mxu0 0.0
    %2869 = vmatpush2.msra.mxu0 0.0
    %2870 = vmatprep.subr.mxu0 0.0
    %2871 = vmatpush2.msra.mxu0 0.0
    %2872 = vmatprep.subr.mxu0 0.0
    %2873 = vmatpush2.msra.mxu0 0.0
    %2874 = vmatprep.subr.mxu0 0.0
    %2875 = vmatpush2.msra.mxu0 0.0
    %2876 = vmatprep.subr.mxu0 0.0
    %2877 = vmatpush2.msra.mxu0 0.0
    %2878 = vmatprep.subr.mxu0 0.0
    %2879 = vmatpush2.msra.mxu0 0.0
    %2880 = vmatprep.subr.mxu0 0.0
    %2881 = vmatpush2.msra.mxu0 0.0
    %2882 = vmatprep.subr.mxu0 0.0
    %2883 = vmatpush2.msra.mxu0 0.0
    %2884 = vmatprep.mubr.f32.mxu0 0.0
    %2885 = vmatmul.mubr.f32.gmra.mxu0 %v2818
    %v2886 = vpop.f32.mrf.mxu0
    %v2887 = vadd.f32 0.0, %v2886
    %v2888 = vpop.f32.mrf.mxu0
    %2889 = vdwg.mxu0
    %v2891 = vrot.slane %v2806, 4
    %v2893 = vsel %vm602, %v2806, %v2891
    %v2894 = vadd.f32 %v2893, %v2887
    %v2895 = vmax.f32 %v2894, 0.0
    %v2897 = vsel %vm142, %v2895, 0
    %v2900 = vsel %vm142, %v2480, 0
    %v2903 = vsel %vm142, %v2481, 0
    %v2906 = vsel %vm142, %v2482, 0
    %v2909 = vsel %vm142, %v2483, 0
    %v2912 = vsel %vm142, %v2484, 0
    %v2915 = vsel %vm142, %v2485, 0
    %v2918 = vsel %vm142, %v2486, 0
    %v2921 = vsel %vm142, %v2487, 0
    %v2924 = vsel %vm142, %v2488, 0
    %v2927 = vsel %vm142, %v2489, 0
    %v2930 = vsel %vm142, %v2490, 0
    %v2933 = vsel %vm142, %v2491, 0
    %v2936 = vsel %vm142, %v2492, 0
    %v2939 = vsel %vm142, %v2493, 0
    %v2942 = vsel %vm142, %v2494, 0
    %v2945 = vsel %vm142, %v2495, 0
    %2947 = vmatprep.subr.mxu0 0.0
    %2948 = vmatpush1.xpose.msra.mxu0 %v2945
    %2949 = vmatprep.subr.mxu0 0.0
    %2950 = vmatpush1.xpose.msra.mxu0 %v2942
    %2951 = vmatprep.subr.mxu0 0.0
    %2952 = vmatpush1.xpose.msra.mxu0 %v2939
    %2953 = vmatprep.subr.mxu0 0.0
    %2954 = vmatpush1.xpose.msra.mxu0 %v2936
    %2955 = vmatprep.subr.mxu0 0.0
    %2956 = vmatpush1.xpose.msra.mxu0 %v2933
    %2957 = vmatprep.subr.mxu0 0.0
    %2958 = vmatpush1.xpose.msra.mxu0 %v2930
    %2959 = vmatprep.subr.mxu0 0.0
    %2960 = vmatpush1.xpose.msra.mxu0 %v2927
    %2961 = vmatprep.subr.mxu0 0.0
    %2962 = vmatpush1.xpose.msra.mxu0 %v2924
    %2963 = vmatprep.subr.mxu0 0.0
    %2964 = vmatpush1.xpose.msra.mxu0 %v2921
    %2965 = vmatprep.subr.mxu0 0.0
    %2966 = vmatpush1.xpose.msra.mxu0 %v2918
    %2967 = vmatprep.subr.mxu0 0.0
    %2968 = vmatpush1.xpose.msra.mxu0 %v2915
    %2969 = vmatprep.subr.mxu0 0.0
    %2970 = vmatpush1.xpose.msra.mxu0 %v2912
    %2971 = vmatprep.subr.mxu0 0.0
    %2972 = vmatpush1.xpose.msra.mxu0 %v2909
    %2973 = vmatprep.subr.mxu0 0.0
    %2974 = vmatpush1.xpose.msra.mxu0 %v2906
    %2975 = vmatprep.subr.mxu0 0.0
    %2976 = vmatpush1.xpose.msra.mxu0 %v2903
    %2977 = vmatprep.subr.mxu0 0.0
    %2978 = vmatpush1.xpose.msra.mxu0 %v2900
    %2979 = vmatprep.subr.mxu0 0.0
    %2980 = vmatpush2.xpose.msra.mxu0 0.0
    %2981 = vmatprep.subr.mxu0 0.0
    %2982 = vmatpush2.xpose.msra.mxu0 0.0
    %2983 = vmatprep.subr.mxu0 0.0
    %2984 = vmatpush2.xpose.msra.mxu0 0.0
    %2985 = vmatprep.subr.mxu0 0.0
    %2986 = vmatpush2.xpose.msra.mxu0 0.0
    %2987 = vmatprep.subr.mxu0 0.0
    %2988 = vmatpush2.xpose.msra.mxu0 0.0
    %2989 = vmatprep.subr.mxu0 0.0
    %2990 = vmatpush2.xpose.msra.mxu0 0.0
    %2991 = vmatprep.subr.mxu0 0.0
    %2992 = vmatpush2.xpose.msra.mxu0 0.0
    %2993 = vmatprep.subr.mxu0 0.0
    %2994 = vmatpush2.xpose.msra.mxu0 0.0
    %2995 = vmatprep.subr.mxu0 0.0
    %2996 = vmatpush2.xpose.msra.mxu0 0.0
    %2997 = vmatprep.subr.mxu0 0.0
    %2998 = vmatpush2.xpose.msra.mxu0 0.0
    %2999 = vmatprep.subr.mxu0 0.0
    %3000 = vmatpush2.xpose.msra.mxu0 0.0
    %3001 = vmatprep.subr.mxu0 0.0
    %3002 = vmatpush2.xpose.msra.mxu0 0.0
    %3003 = vmatprep.subr.mxu0 0.0
    %3004 = vmatpush2.xpose.msra.mxu0 0.0
    %3005 = vmatprep.subr.mxu0 0.0
    %3006 = vmatpush2.xpose.msra.mxu0 0.0
    %3007 = vmatprep.subr.mxu0 0.0
    %3008 = vmatpush2.xpose.msra.mxu0 0.0
    %3009 = vmatprep.subr.mxu0 0.0
    %3010 = vmatpush2.xpose.msra.mxu0 0.0
    %3011 = vmatprep.mubr.f32.mxu0 0.0
    %3012 = vmatmul.mubr.f32.gmra.mxu0 %v2897
    %v3013 = vpop.f32.mrf.mxu0
    %v3014 = vadd.f32 0.0, %v3013
    %v3015 = vpop.f32.mrf.mxu0
    %3016 = vdwg.mxu0
    %3017 = vst [vmem:[#allocation8] sm:$0xf] %v3014
    %v3018 = vlaneseq
    %v3019 = vshrl.u32 %v3018, 7
    %v3020 = vadd.s32 %v3019, 8
    %v3021 = vlaneseq
    %v3022 = vand.u32 %v3021, 127
    %v3023 = vmul.u32 %v3022, 4
    %vm3024 = vcmp.ge.s32.totalorder %v3019, %v3023
    %vm3025 = vcmp.ge.s32.totalorder %v3020, %v3023
    %v3026 = vadd.s32 %v3022, 1
    %v3027 = vmul.u32 %v3026, 4
    %vm3028 = vcmp.lt.s32.totalorder %v3019, %v3027
    %vm3029 = vcmp.lt.s32.totalorder %v3020, %v3027
    %vm3030 = vmand %vm3024, %vm3028
    %vm3031 = vmand %vm3025, %vm3029
    %v3032 = vsel %vm3030, 1, 0
    %v3033 = vsel %vm3031, 1, 0
    %v3034 = vcvt.s32.f32 %v3032
    %v3035 = vcvt.s32.f32 %v3033
    %v3037 = vrot.slane %v3014, 4
    %vm3038 = vcmask 31744
    %v3040 = vsel %vm3038, %v3034, 0
    %v3043 = vsel %vm3038, %v3035, 0
    %v3045 = vsel %vm602, %v3037, 0
    %3047 = vmatprep.subr.mxu0 0.0
    %3048 = vmatpush1.msra.mxu0 0.0
    %3049 = vmatprep.subr.mxu0 0.0
    %3050 = vmatpush1.msra.mxu0 0.0
    %3051 = vmatprep.subr.mxu0 0.0
    %3052 = vmatpush1.msra.mxu0 0.0
    %3053 = vmatprep.subr.mxu0 0.0
    %3054 = vmatpush1.msra.mxu0 0.0
    %3055 = vmatprep.subr.mxu0 0.0
    %3056 = vmatpush1.msra.mxu0 0.0
    %3057 = vmatprep.subr.mxu0 0.0
    %3058 = vmatpush1.msra.mxu0 0.0
    %3059 = vmatprep.subr.mxu0 0.0
    %3060 = vmatpush1.msra.mxu0 0.0
    %3061 = vmatprep.subr.mxu0 0.0
    %3062 = vmatpush1.msra.mxu0 0.0
    %3063 = vmatprep.subr.mxu0 0.0
    %3064 = vmatpush1.msra.mxu0 0.0
    %3065 = vmatprep.subr.mxu0 0.0
    %3066 = vmatpush1.msra.mxu0 0.0
    %3067 = vmatprep.subr.mxu0 0.0
    %3068 = vmatpush1.msra.mxu0 0.0
    %3069 = vmatprep.subr.mxu0 0.0
    %3070 = vmatpush1.msra.mxu0 0.0
    %3071 = vmatprep.subr.mxu0 0.0
    %3072 = vmatpush1.msra.mxu0 0.0
    %3073 = vmatprep.subr.mxu0 0.0
    %3074 = vmatpush1.msra.mxu0 0.0
    %3075 = vmatprep.subr.mxu0 0.0
    %3076 = vmatpush1.msra.mxu0 0.0
    %3077 = vmatprep.subr.mxu0 0.0
    %3078 = vmatpush1.msra.mxu0 %v3045
    %3079 = vmatprep.subr.mxu0 0.0
    %3080 = vmatpush2.msra.mxu0 0.0
    %3081 = vmatprep.subr.mxu0 0.0
    %3082 = vmatpush2.msra.mxu0 0.0
    %3083 = vmatprep.subr.mxu0 0.0
    %3084 = vmatpush2.msra.mxu0 0.0
    %3085 = vmatprep.subr.mxu0 0.0
    %3086 = vmatpush2.msra.mxu0 0.0
    %3087 = vmatprep.subr.mxu0 0.0
    %3088 = vmatpush2.msra.mxu0 0.0
    %3089 = vmatprep.subr.mxu0 0.0
    %3090 = vmatpush2.msra.mxu0 0.0
    %3091 = vmatprep.subr.mxu0 0.0
    %3092 = vmatpush2.msra.mxu0 0.0
    %3093 = vmatprep.subr.mxu0 0.0
    %3094 = vmatpush2.msra.mxu0 0.0
    %3095 = vmatprep.subr.mxu0 0.0
    %3096 = vmatpush2.msra.mxu0 0.0
    %3097 = vmatprep.subr.mxu0 0.0
    %3098 = vmatpush2.msra.mxu0 0.0
    %3099 = vmatprep.subr.mxu0 0.0
    %3100 = vmatpush2.msra.mxu0 0.0
    %3101 = vmatprep.subr.mxu0 0.0
    %3102 = vmatpush2.msra.mxu0 0.0
    %3103 = vmatprep.subr.mxu0 0.0
    %3104 = vmatpush2.msra.mxu0 0.0
    %3105 = vmatprep.subr.mxu0 0.0
    %3106 = vmatpush2.msra.mxu0 0.0
    %3107 = vmatprep.subr.mxu0 0.0
    %3108 = vmatpush2.msra.mxu0 0.0
    %3109 = vmatprep.subr.mxu0 0.0
    %3110 = vmatpush2.msra.mxu0 0.0
    %3111 = vmatprep.mubr.f32.mxu0 0.0
    %3112 = vmatmul.mubr.f32.gmra.mxu0 %v3040
    %v3113 = vpop.f32.mrf.mxu0
    %v3114 = vadd.f32 0.0, %v3113
    %v3115 = vpop.f32.mrf.mxu0
    %3116 = vmatprep.mubr.f32.mxu0 0.0
    %3117 = vmatmul.mubr.f32.gmra.mxu0 %v3043
    %v3118 = vpop.f32.mrf.mxu0
    %v3119 = vadd.f32 0.0, %v3118
    %v3120 = vpop.f32.mrf.mxu0
    %3121 = vdwg.mxu0
    %v3122 = vld [vmem:[#allocation2 + $0x120] sm:$0xff]
    %v3123 = vld [vmem:[#allocation2 + $0x128] sm:$0xff]
    %v3124 = vmul.f32 %v3122, %v3114
    %v3125 = vmul.f32 %v3123, %v3119
    %3126 = vadd.xlane.f32.xlu0 %v3124
    %v3127 = vpop.xlane.xlu0 %3126
    %3128 = vadd.xlane.f32.xlu0 %v3125
    %v3129 = vpop.xlane.xlu0 %3128
    %v3130 = vsub.f32 0.0, %v3127
    %v3131 = vsub.f32 0.0, %v3129
    %v3132 = vmax.f32 %v3130, 0.0
    %v3133 = vmax.f32 %v3131, 0.0
    %vm3134 = vcmp.ne.f32.partialorder %v3130, %v3130
    %vm3135 = vcmp.ne.f32.partialorder %v3131, %v3131
    %v3136 = vadd.f32 %v3130, 0.0
    %v3137 = vadd.f32 %v3131, 0.0
    %v3138 = vand.u32 2147483647, %v3130
    %v3139 = vand.u32 2147483647, %v3131
    %v3140 = vsub.f32 0.0, %v3138
    %v3141 = vsub.f32 0.0, %v3139
    %v3142 = vmul.f32 %v3140, 1.442695
    %v3143 = vpow.pop %v3142
    %v3144 = vmul.f32 %v3141, 1.442695
    %v3145 = vpow.pop %v3144
    %v3146 = vadd.f32 %v3143, 1.0
    %v3147 = vlog2.pop %v3146
    %v3148 = vmul.f32 %v3147, 0.6931472
    %v3149 = vmul.f32 -0.5, %v3143
    %v3150 = vadd.f32 %v3149, 1.0
    %v3151 = vmul.f32 %v3150, %v3143
    %v3152 = vand.u32 2147483647, %v3143
    %vm3153 = vcmp.lt.f32.partialorder %v3152, 0.0004427343
    %v3154 = vsel %vm3153, %v3151, %v3148
    %v3155 = vadd.f32 %v3145, 1.0
    %v3156 = vlog2.pop %v3155
    %v3157 = vmul.f32 %v3156, 0.6931472
    %v3158 = vmul.f32 -0.5, %v3145
    %v3159 = vadd.f32 %v3158, 1.0
    %v3160 = vmul.f32 %v3159, %v3145
    %v3161 = vand.u32 2147483647, %v3145
    %vm3162 = vcmp.lt.f32.partialorder %v3161, 0.0004427343
    %v3163 = vsel %vm3162, %v3160, %v3157
    %v3164 = vadd.f32 %v3132, %v3154
    %v3165 = vadd.f32 %v3133, %v3163
    %v3166 = vsel %vm3134, %v3136, %v3164
    %v3167 = vsel %vm3135, %v3137, %v3165
    %v3168 = vsub.f32 0.0, %v3166
    %v3169 = vsub.f32 0.0, %v3167
    %v3170 = vadd.f32 %v3168, %v3169
    %v3171 = vrot.slane %v3170, 4
    %v3172 = vadd.f32 %v3170, %v3171
    %v3173 = vrot.slane %v3172, 2
    %v3174 = vadd.f32 %v3172, %v3173
    %v3175 = vrot.slane %v3174, 1
    %v3176 = vadd.f32 %v3174, %v3175
    %v3177 = vsub.f32 0.0, %v3176
    %v3178 = vrcp.pop 16.0
    %v3179 = vmul.f32 %v3177, %v3178
    %v3180 = vsub.f32 %v2100, %v2015
    %v3181 = vmul.f32 %v3180, %v3180
    %vm3182 = vcmask 257024
    %v3183 = vsel %vm3182, %v3181, 0.0
    %3184 = vadd.xlane.f32.xlu0 %v3183
    %v3185 = vpop.xlane.xlu0 %3184
    %v3186 = vsel %vm602, %v3185, 0.0
    %v3187 = vrot.slane %v3186, 4
    %v3188 = vadd.f32 %v3186, %v3187
    %v3189 = vrot.slane %v3188, 2
    %v3190 = vadd.f32 %v3188, %v3189
    %v3191 = vrot.slane %v3190, 1
    %v3192 = vadd.f32 %v3190, %v3191
    %v3193 = vrcp.pop 128.0
    %v3194 = vmul.f32 %v3192, %v3193
    %v3195 = vmul.f32 %v3179, 0.05
    %v3196 = vmul.f32 %v3194, 0.05
    %v3197 = vadd.f32 %v3195, %v3196
    %v3198 = vmul.f32 %v611, 0.9
    %v3199 = vadd.f32 %v3197, %v3198
    %vm3200 = vcmask 0
    %3201 = vst.msk [vmem:[#allocation7] sm:$0x1] %vm3200, %v3199
    // Predicated region
    $region18: #{fwd.1} parent=1 // pred_check
      _
    $region19: #{fwd.1} parent=1 // pred_check_branch
      %3203 = sbr.rel (0) target = $region21
    $region20: #{fwd.1} parent=1 // pred_region
      %s3205 = ssub.s32 16, 16
      %3206 = vsyncadd [#allocation4], %s3205
      %s3208 = sshll.u32 [#allocation7], 4
      %s3209 = int_to_ptr.vmem [resolvable:$true] %s3208
      %3211 = dma.vmem_to_hbm [thread:$0]  %s3209, 16, %s2, [#allocation4]
    $region21: #{fwd.1} parent=1 // pred_fallthru
      _
    // Predicated region
    $region22: #{fwd.1} parent=1 // pred_check
      _
    $region23: #{fwd.1} parent=1 // pred_check_branch
      %3213 = sbr.rel (0) target = $region25
    $region24: #{fwd.1} parent=1 // pred_region
      %s3215 = ssub.s32 64, 64
      %3216 = vsyncadd [#allocation9], %s3215
      %s3218 = sshll.u32 [#allocation8], 4
      %s3219 = int_to_ptr.vmem [resolvable:$true] %s3218
      %3221 = dma.vmem_to_hbm [thread:$0]  %s3219, 64, %s3, [#allocation9]
    $region25: #{fwd.1} parent=1 // pred_fallthru
      _
    // Predicated region
    $region26: #{fwd.1} parent=1 // pred_check
      _
    $region27: #{fwd.1} parent=1 // pred_check_branch
      %3223 = sbr.rel (0) target = $region29
    $region28: #{fwd.1} parent=1 // pred_region
      %3224 = dma.done [#allocation4], 16
    $region29: #{fwd.1} parent=1 // pred_fallthru
      _
    // Predicated region
    $region30: #{fwd.1} parent=1 // pred_check
      _
    $region31: #{fwd.1} parent=1 // pred_check_branch
      %3226 = sbr.rel (0) target = $region33
    $region32: #{fwd.1} parent=1 // pred_region
      %3227 = dma.done [#allocation9], 64
    $region33: #{fwd.1} parent=1 // pred_fallthru
      _
    %3228 = vsyncpa [#allocation3], 1
    %3229 = vsyncpa [#allocation6], 1
    %3230 = vsyncpa [#allocation4], 1
    %3231 = vsyncpa [#allocation9], 1

</llo_original>
